<compile_context>
chip_gen: v7x
topology: tpu7x:2x2x1
jax: 0.10.0
libtpu: 0.0.40
codegen_flags: <defaults>
</compile_context>

<pallas_src>
import functools

import jax
import jax.numpy as jnp
import numpy as np
from jax.experimental import pallas as pl
from jax.experimental.pallas import tpu as pltpu


# ------------------------------ fused kernel --------------------------------

def _lenet_fused_kernel(xp_ref, s1_ref, b1m_ref, bias1_ref, shift1_ref,
                        t2_ref, u2_ref, bias2_ref, shift2_ref,
                        w3_ref, bias3_ref, w4_ref, bias4_ref, out_ref):
    f32 = jnp.float32
    dot = functools.partial(jnp.dot, preferred_element_type=f32)

    xp = xp_ref[...]                                 # (N*34, 34*Cin) padded input

    # ---- conv1 (8x8, stride 2, pad 3) + bias + ReLU; lanes = (wo, o1) ----
    acc1 = bias1_ref[...]                            # (1, 224) broadcast over rows
    for kh in range(s1_ref.shape[0]):                # 8 kernel rows
        rows = dot(s1_ref[kh], xp)                   # (N*14, 34*Cin): rows 2*ho+kh
        acc1 = acc1 + dot(rows, b1m_ref[kh])         # (N*14, 224): contracts (kw, c)
    y1 = jnp.maximum(acc1, 0.0)                      # (N*14, 224)

    # ---- maxpool1 2x2 stride 1, fused in-register ----
    h1 = jnp.maximum(y1, dot(y1, shift1_ref[...]))   # horizontal: exact 0/1 shift
    p1 = jnp.maximum(h1[:-1, :], h1[1:, :])          # vertical: sublane slice
                                                     # (N*14-1, 224)

    # ---- conv2 (4x4, stride 2) + bias + ReLU; lanes = (wo, o2) ----
    acc2 = bias2_ref[...]                            # (1, 160)
    for kh in range(t2_ref.shape[0]):                # 4 kernel rows
        rows = dot(t2_ref[kh], p1)                   # (N*5, 224)
        acc2 = acc2 + dot(rows, u2_ref[kh])          # (N*5, 160)
    y2 = jnp.maximum(acc2, 0.0)

    # ---- maxpool2 2x2 stride 1 ----
    h2 = jnp.maximum(y2, dot(y2, shift2_ref[...]))
    p2 = jnp.maximum(h2[:-1, :], h2[1:, :])          # (N*5-1, 160)

    # ---- classifier: fc1 512->32 + ReLU, fc2 32->n_classes (128 lanes) ----
    n_batch = out_ref.shape[0]
    rows_per_sample = t2_ref.shape[1] // n_batch     # = 5
    n_fc_rows = w3_ref.shape[0]                      # = 4 spatial rows
    for b in range(n_batch):
        acc3 = bias3_ref[...]                        # (1, 32)
        for i in range(n_fc_rows):
            r = b * rows_per_sample + i
            acc3 = acc3 + dot(p2[r:r + 1, :], w3_ref[i])
        hid = jnp.maximum(acc3, 0.0)                 # (1, 32)
        out_ref[b:b + 1, :] = dot(hid, w4_ref[...]) + bias4_ref[...]


# ------------------------- parameter / constant prep ------------------------

def prepare_params(params, n_classes, input_channel=1):
    """One-time, weight-only prep (free at runtime)."""
    f32 = jnp.float32
    C = input_channel

    # conv1: B1[kh, w*C + c, wo*16 + o] = w1[o, c, kh, w - 2*wo]  (0 outside)
    w1 = params["w1"].astype(f32)                       # (16, C, 8, 8)
    w1_t = jnp.transpose(w1, (2, 3, 1, 0))              # (kh, kw, c, o)
    kw = np.arange(34)[:, None] - 2 * np.arange(14)[None, :]          # (34, 14)
    valid = ((kw >= 0) & (kw < 8)).astype(np.float32)
    B1 = w1_t[:, np.clip(kw, 0, 7), :, :] * valid[None, :, :, None, None]
    B1 = jnp.transpose(B1, (0, 1, 3, 2, 4)).reshape(8, 34 * C, 14 * 16)

    # conv2: U2[kh, j*16 + c, wo*32 + o] = w2[o, c, kh, j - 2*wo]  (0 outside,
    # which also zeroes the garbage lane group j=13 produced by pooling).
    w2 = params["w2"].astype(f32)                       # (32, 16, 4, 4)
    w2_t = jnp.transpose(w2, (2, 3, 1, 0))              # (kh, kw, c, o)
    kw2 = np.arange(14)[:, None] - 2 * np.arange(5)[None, :]          # (14, 5)
    valid2 = ((kw2 >= 0) & (kw2 < 4)).astype(np.float32)
    U2 = w2_t[:, np.clip(kw2, 0, 3), :, :] * valid2[None, :, :, None, None]
    U2 = jnp.transpose(U2, (0, 1, 3, 2, 4)).reshape(4, 14 * 16, 5 * 32)

    # fc1: regroup torch's (c,i,j) flatten order into per-row-i blocks whose
    # columns follow the kernel's lane order (j*32 + c); pad the garbage lane
    # group j=4 with zero rows.
    w3 = params["w3"].astype(f32).reshape(32, 32, 4, 4)            # (o, c, i, j)
    w3g = jnp.transpose(w3, (2, 3, 1, 0)).reshape(4, 4 * 32, 32)   # (i, j*32+c, o)
    w3g = jnp.concatenate([w3g, jnp.zeros((4, 32, 32), f32)], axis=1)  # (4,160,32)

    # fc2: lane-dense output (padded to 128 lanes)
    w4p = jnp.zeros((32, 128), f32).at[:, :n_classes].set(params["w4"].astype(f32).T)
    b4p = jnp.zeros((1, 128), f32).at[0, :n_classes].set(params["b4"].astype(f32))

    return dict(
        B1=B1, U2=U2, w3g=w3g, w4p=w4p,
        b1t=jnp.tile(params["b1"].astype(f32), 14).reshape(1, 224),
        b2t=jnp.tile(params["b2"].astype(f32), 5).reshape(1, 160),
        b3r=params["b3"].astype(f32).reshape(1, 32),
        b4p=b4p,
    )


@functools.lru_cache(maxsize=None)
def _selection_constants(n):
    """Batch-dependent 0/1 selection / shift matrices (trace-time constants)."""
    s1 = np.zeros((8, n * 14, n * 34), np.float32)      # conv1: pick row 2*ho+kh
    for kh in range(8):
        for b in range(n):
            for ho in range(14):
                s1[kh, b * 14 + ho, b * 34 + 2 * ho + kh] = 1.0
    t2 = np.zeros((4, n * 5, n * 14 - 1), np.float32)   # conv2: pick row 2*ho+kh
    for kh in range(4):
        for b in range(n):
            for ho in range(5):
                t2[kh, b * 5 + ho, b * 14 + 2 * ho + kh] = 1.0
    shift1 = np.eye(14 * 16, k=-16, dtype=np.float32)   # shift one 16-lane wo group
    shift2 = np.eye(5 * 32, k=-32, dtype=np.float32)    # shift one 32-lane wo group
    return s1, t2, shift1, shift2


# ------------------------------- forward pass -------------------------------

def lenet_forward(x_nchw, prep, n_classes):
    N, C, H, W = x_nchw.shape
    assert H == 28 and W == 28, "classifier in_features=512 implies 28x28 input"
    s1, t2, shift1, shift2 = _selection_constants(N)

    # minimal input prep: NCHW -> NHWC, pad by 3, flatten to a lane-dense slab
    x = jnp.transpose(x_nchw, (0, 2, 3, 1)).astype(jnp.float32)
    x = jnp.pad(x, ((0, 0), (3, 3), (3, 3), (0, 0)))
    xp = x.reshape(N * 34, 34 * C)                      # rows=(n,h), lanes=(w,c)

    operands = (xp, s1, prep["B1"], prep["b1t"], shift1,
                t2, prep["U2"], prep["b2t"], shift2,
                prep["w3g"], prep["b3r"], prep["w4p"], prep["b4p"])

    def full_spec(a):
        zeros = (0,) * a.ndim
        return pl.BlockSpec(tuple(a.shape), lambda i: zeros)

    out = pl.pallas_call(
        _lenet_fused_kernel,
        out_shape=jax.ShapeDtypeStruct((N, 128), jnp.float32),
        grid=(1,),
        in_specs=[full_spec(a) for a in operands],
        out_specs=pl.BlockSpec((N, 128), lambda i: (0, 0)),
        compiler_params=pltpu.CompilerParams(
            dimension_semantics=("arbitrary",)),
    )(*operands)
    return out[:, :n_classes]


# -------------------------- deterministic parameters ------------------------

def init_params(key, n_classes=10, input_channel=1):
    ks = jax.random.split(key, 8)

    def u(k, shape, fan_in):
        bound = 1.0 / np.sqrt(fan_in)
        return jax.random.uniform(k, shape, jnp.float32, -bound, bound)

    return {
        "w1": u(ks[0], (16, input_channel, 8, 8), input_channel * 8 * 8),
        "b1": u(ks[1], (16,), input_channel * 8 * 8),
        "w2": u(ks[2], (32, 16, 4, 4), 16 * 4 * 4),
        "b2": u(ks[3], (32,), 16 * 4 * 4),
        "w3": u(ks[4], (32, 512), 512),
        "b3": u(ks[5], (32,), 512),
        "w4": u(ks[6], (n_classes, 32), 32),
        "b4": u(ks[7], (n_classes,), 32),
    }


# ------------------------------ pure-JAX reference ---------------------------

def ref_forward(x_nchw, params):
    x = jnp.transpose(x_nchw, (0, 2, 3, 1))
    dn = ("NHWC", "HWIO", "NHWC")
    w1 = jnp.transpose(params["w1"], (2, 3, 1, 0))
    y = jax.lax.conv_general_dilated(x, w1, (2, 2), ((3, 3), (3, 3)),
                                     dimension_numbers=dn)
    y = jax.nn.relu(y + params["b1"])
    y = jax.lax.reduce_window(y, -jnp.inf, jax.lax.max,
                              (1, 2, 2, 1), (1, 1, 1, 1), "VALID")
    w2 = jnp.transpose(params["w2"], (2, 3, 1, 0))
    y = jax.lax.conv_general_dilated(y, w2, (2, 2), "VALID",
                                     dimension_numbers=dn)
    y = jax.nn.relu(y + params["b2"])
    y = jax.lax.reduce_window(y, -jnp.inf, jax.lax.max,
                              (1, 2, 2, 1), (1, 1, 1, 1), "VALID")
    y = jnp.transpose(y, (0, 3, 1, 2)).reshape(y.shape[0], -1)
    y = jax.nn.relu(y @ params["w3"].T + params["b3"])
    return y @ params["w4"].T + params["b4"]


# ------------------------------------ main -----------------------------------

if __name__ == "__main__":
    key = jax.random.PRNGKey(0)
    pkey, xkey = jax.random.split(key)
    n_classes = 10
    params = init_params(pkey, n_classes=n_classes, input_channel=1)
    prep = prepare_params(params, n_classes=n_classes, input_channel=1)

    # (N=2, C=1, H=28, W=28): the 512-feature classifier implies 28x28 input.
    x = jax.random.normal(xkey, (2, 1, 28, 28), jnp.float32)

    fwd = jax.jit(lenet_forward, static_argnums=(2,))
    out = jax.block_until_ready(fwd(x, prep, n_classes))
    ref = jax.block_until_ready(ref_forward(x, params))
    np.testing.assert_allclose(np.asarray(out), np.asarray(ref),
                               rtol=2e-4, atol=2e-4)
    print("KERNEL_OK")
</pallas_src>

<mosaic_0001>
module attributes {stable_mosaic.version = 11 : i64} {
  func.func @_lenet_fused_kernel(%arg0: i32, %arg1: memref<68x34xf32, #tpu.memory_space<vmem>>, %arg2: memref<8x28x68xf32, #tpu.memory_space<vmem>>, %arg3: memref<8x34x224xf32, #tpu.memory_space<vmem>>, %arg4: memref<1x224xf32, #tpu.memory_space<vmem>>, %arg5: memref<224x224xf32, #tpu.memory_space<vmem>>, %arg6: memref<4x10x27xf32, #tpu.memory_space<vmem>>, %arg7: memref<4x224x160xf32, #tpu.memory_space<vmem>>, %arg8: memref<1x160xf32, #tpu.memory_space<vmem>>, %arg9: memref<160x160xf32, #tpu.memory_space<vmem>>, %arg10: memref<4x160x32xf32, #tpu.memory_space<vmem>>, %arg11: memref<1x32xf32, #tpu.memory_space<vmem>>, %arg12: memref<32x128xf32, #tpu.memory_space<vmem>>, %arg13: memref<1x128xf32, #tpu.memory_space<vmem>>, %arg14: memref<2x128xf32, #tpu.memory_space<vmem>>) attributes {dimension_semantics = [#tpu.dimension_semantics<arbitrary>], iteration_bounds = array<i64: 1>, scalar_prefetch = 0 : i64, scratch_operands = 0 : i64, tpu.core_type = #tpu.core_type<tc>, window_params = [{pipeline_mode = #tpu.pipeline_mode<synchronous>, transform_indices = @transform_0, window_bounds = array<i64: 68, 34>}, {pipeline_mode = #tpu.pipeline_mode<synchronous>, transform_indices = @transform_1, window_bounds = array<i64: 8, 28, 68>}, {pipeline_mode = #tpu.pipeline_mode<synchronous>, transform_indices = @transform_2, window_bounds = array<i64: 8, 34, 224>}, {pipeline_mode = #tpu.pipeline_mode<synchronous>, transform_indices = @transform_3, window_bounds = array<i64: 1, 224>}, {pipeline_mode = #tpu.pipeline_mode<synchronous>, transform_indices = @transform_4, window_bounds = array<i64: 224, 224>}, {pipeline_mode = #tpu.pipeline_mode<synchronous>, transform_indices = @transform_5, window_bounds = array<i64: 4, 10, 27>}, {pipeline_mode = #tpu.pipeline_mode<synchronous>, transform_indices = @transform_6, window_bounds = array<i64: 4, 224, 160>}, {pipeline_mode = #tpu.pipeline_mode<synchronous>, transform_indices = @transform_7, window_bounds = array<i64: 1, 160>}, {pipeline_mode = #tpu.pipeline_mode<synchronous>, transform_indices = @transform_8, window_bounds = array<i64: 160, 160>}, {pipeline_mode = #tpu.pipeline_mode<synchronous>, transform_indices = @transform_9, window_bounds = array<i64: 4, 160, 32>}, {pipeline_mode = #tpu.pipeline_mode<synchronous>, transform_indices = @transform_10, window_bounds = array<i64: 1, 32>}, {pipeline_mode = #tpu.pipeline_mode<synchronous>, transform_indices = @transform_11, window_bounds = array<i64: 32, 128>}, {pipeline_mode = #tpu.pipeline_mode<synchronous>, transform_indices = @transform_12, window_bounds = array<i64: 1, 128>}, {pipeline_mode = #tpu.pipeline_mode<synchronous>, transform_indices = @transform_13, window_bounds = array<i64: 2, 128>}]} {
    %c0 = arith.constant 0 : index
    %c0_0 = arith.constant 0 : index
    %0 = vector.load %arg1[%c0, %c0_0] : memref<68x34xf32, #tpu.memory_space<vmem>>, vector<68x34xf32>
    %c0_1 = arith.constant 0 : index
    %c0_2 = arith.constant 0 : index
    %1 = vector.load %arg4[%c0_1, %c0_2] : memref<1x224xf32, #tpu.memory_space<vmem>>, vector<1x224xf32>
    %c0_3 = arith.constant 0 : index
    %c0_4 = arith.constant 0 : index
    %c0_5 = arith.constant 0 : index
    %2 = vector.load %arg2[%c0_3, %c0_4, %c0_5] : memref<8x28x68xf32, #tpu.memory_space<vmem>>, vector<1x28x68xf32>
    %3 = vector.shape_cast %2 : vector<1x28x68xf32> to vector<28x68xf32>
    %cst = arith.constant dense<0.000000e+00> : vector<28x34xf32>
    %4 = tpu.matmul %3, %0, %cst {dimension_numbers = #tpu.dot_dimension_numbers<[1], [0], [0], [1], [0, 0, 1, 1], [], []>} : vector<28x68xf32>, vector<68x34xf32>, vector<28x34xf32> -> vector<28x34xf32>
    %c0_6 = arith.constant 0 : index
    %c0_7 = arith.constant 0 : index
    %c0_8 = arith.constant 0 : index
    %5 = vector.load %arg3[%c0_6, %c0_7, %c0_8] : memref<8x34x224xf32, #tpu.memory_space<vmem>>, vector<1x34x224xf32>
    %6 = vector.shape_cast %5 : vector<1x34x224xf32> to vector<34x224xf32>
    %cst_9 = arith.constant dense<0.000000e+00> : vector<28x224xf32>
    %7 = tpu.matmul %4, %6, %cst_9 {dimension_numbers = #tpu.dot_dimension_numbers<[1], [0], [0], [1], [0, 0, 1, 1], [], []>} : vector<28x34xf32>, vector<34x224xf32>, vector<28x224xf32> -> vector<28x224xf32>
    %8 = vector.broadcast %1 : vector<1x224xf32> to vector<28x224xf32>
    %9 = arith.addf %8, %7 : vector<28x224xf32>
    %c1 = arith.constant 1 : index
    %c0_10 = arith.constant 0 : index
    %c0_11 = arith.constant 0 : index
    %10 = vector.load %arg2[%c1, %c0_10, %c0_11] : memref<8x28x68xf32, #tpu.memory_space<vmem>>, vector<1x28x68xf32>
    %11 = vector.shape_cast %10 : vector<1x28x68xf32> to vector<28x68xf32>
    %cst_12 = arith.constant dense<0.000000e+00> : vector<28x34xf32>
    %12 = tpu.matmul %11, %0, %cst_12 {dimension_numbers = #tpu.dot_dimension_numbers<[1], [0], [0], [1], [0, 0, 1, 1], [], []>} : vector<28x68xf32>, vector<68x34xf32>, vector<28x34xf32> -> vector<28x34xf32>
    %c1_13 = arith.constant 1 : index
    %c0_14 = arith.constant 0 : index
    %c0_15 = arith.constant 0 : index
    %13 = vector.load %arg3[%c1_13, %c0_14, %c0_15] : memref<8x34x224xf32, #tpu.memory_space<vmem>>, vector<1x34x224xf32>
    %14 = vector.shape_cast %13 : vector<1x34x224xf32> to vector<34x224xf32>
    %cst_16 = arith.constant dense<0.000000e+00> : vector<28x224xf32>
    %15 = tpu.matmul %12, %14, %cst_16 {dimension_numbers = #tpu.dot_dimension_numbers<[1], [0], [0], [1], [0, 0, 1, 1], [], []>} : vector<28x34xf32>, vector<34x224xf32>, vector<28x224xf32> -> vector<28x224xf32>
    %16 = arith.addf %9, %15 : vector<28x224xf32>
    %c2 = arith.constant 2 : index
    %c0_17 = arith.constant 0 : index
    %c0_18 = arith.constant 0 : index
    %17 = vector.load %arg2[%c2, %c0_17, %c0_18] : memref<8x28x68xf32, #tpu.memory_space<vmem>>, vector<1x28x68xf32>
    %18 = vector.shape_cast %17 : vector<1x28x68xf32> to vector<28x68xf32>
    %cst_19 = arith.constant dense<0.000000e+00> : vector<28x34xf32>
    %19 = tpu.matmul %18, %0, %cst_19 {dimension_numbers = #tpu.dot_dimension_numbers<[1], [0], [0], [1], [0, 0, 1, 1], [], []>} : vector<28x68xf32>, vector<68x34xf32>, vector<28x34xf32> -> vector<28x34xf32>
    %c2_20 = arith.constant 2 : index
    %c0_21 = arith.constant 0 : index
    %c0_22 = arith.constant 0 : index
    %20 = vector.load %arg3[%c2_20, %c0_21, %c0_22] : memref<8x34x224xf32, #tpu.memory_space<vmem>>, vector<1x34x224xf32>
    %21 = vector.shape_cast %20 : vector<1x34x224xf32> to vector<34x224xf32>
    %cst_23 = arith.constant dense<0.000000e+00> : vector<28x224xf32>
    %22 = tpu.matmul %19, %21, %cst_23 {dimension_numbers = #tpu.dot_dimension_numbers<[1], [0], [0], [1], [0, 0, 1, 1], [], []>} : vector<28x34xf32>, vector<34x224xf32>, vector<28x224xf32> -> vector<28x224xf32>
    %23 = arith.addf %16, %22 : vector<28x224xf32>
    %c3 = arith.constant 3 : index
    %c0_24 = arith.constant 0 : index
    %c0_25 = arith.constant 0 : index
    %24 = vector.load %arg2[%c3, %c0_24, %c0_25] : memref<8x28x68xf32, #tpu.memory_space<vmem>>, vector<1x28x68xf32>
    %25 = vector.shape_cast %24 : vector<1x28x68xf32> to vector<28x68xf32>
    %cst_26 = arith.constant dense<0.000000e+00> : vector<28x34xf32>
    %26 = tpu.matmul %25, %0, %cst_26 {dimension_numbers = #tpu.dot_dimension_numbers<[1], [0], [0], [1], [0, 0, 1, 1], [], []>} : vector<28x68xf32>, vector<68x34xf32>, vector<28x34xf32> -> vector<28x34xf32>
    %c3_27 = arith.constant 3 : index
    %c0_28 = arith.constant 0 : index
    %c0_29 = arith.constant 0 : index
    %27 = vector.load %arg3[%c3_27, %c0_28, %c0_29] : memref<8x34x224xf32, #tpu.memory_space<vmem>>, vector<1x34x224xf32>
    %28 = vector.shape_cast %27 : vector<1x34x224xf32> to vector<34x224xf32>
    %cst_30 = arith.constant dense<0.000000e+00> : vector<28x224xf32>
    %29 = tpu.matmul %26, %28, %cst_30 {dimension_numbers = #tpu.dot_dimension_numbers<[1], [0], [0], [1], [0, 0, 1, 1], [], []>} : vector<28x34xf32>, vector<34x224xf32>, vector<28x224xf32> -> vector<28x224xf32>
    %30 = arith.addf %23, %29 : vector<28x224xf32>
    %c4 = arith.constant 4 : index
    %c0_31 = arith.constant 0 : index
    %c0_32 = arith.constant 0 : index
    %31 = vector.load %arg2[%c4, %c0_31, %c0_32] : memref<8x28x68xf32, #tpu.memory_space<vmem>>, vector<1x28x68xf32>
    %32 = vector.shape_cast %31 : vector<1x28x68xf32> to vector<28x68xf32>
    %cst_33 = arith.constant dense<0.000000e+00> : vector<28x34xf32>
    %33 = tpu.matmul %32, %0, %cst_33 {dimension_numbers = #tpu.dot_dimension_numbers<[1], [0], [0], [1], [0, 0, 1, 1], [], []>} : vector<28x68xf32>, vector<68x34xf32>, vector<28x34xf32> -> vector<28x34xf32>
    %c4_34 = arith.constant 4 : index
    %c0_35 = arith.constant 0 : index
    %c0_36 = arith.constant 0 : index
    %34 = vector.load %arg3[%c4_34, %c0_35, %c0_36] : memref<8x34x224xf32, #tpu.memory_space<vmem>>, vector<1x34x224xf32>
    %35 = vector.shape_cast %34 : vector<1x34x224xf32> to vector<34x224xf32>
    %cst_37 = arith.constant dense<0.000000e+00> : vector<28x224xf32>
    %36 = tpu.matmul %33, %35, %cst_37 {dimension_numbers = #tpu.dot_dimension_numbers<[1], [0], [0], [1], [0, 0, 1, 1], [], []>} : vector<28x34xf32>, vector<34x224xf32>, vector<28x224xf32> -> vector<28x224xf32>
    %37 = arith.addf %30, %36 : vector<28x224xf32>
    %c5 = arith.constant 5 : index
    %c0_38 = arith.constant 0 : index
    %c0_39 = arith.constant 0 : index
    %38 = vector.load %arg2[%c5, %c0_38, %c0_39] : memref<8x28x68xf32, #tpu.memory_space<vmem>>, vector<1x28x68xf32>
    %39 = vector.shape_cast %38 : vector<1x28x68xf32> to vector<28x68xf32>
    %cst_40 = arith.constant dense<0.000000e+00> : vector<28x34xf32>
    %40 = tpu.matmul %39, %0, %cst_40 {dimension_numbers = #tpu.dot_dimension_numbers<[1], [0], [0], [1], [0, 0, 1, 1], [], []>} : vector<28x68xf32>, vector<68x34xf32>, vector<28x34xf32> -> vector<28x34xf32>
    %c5_41 = arith.constant 5 : index
    %c0_42 = arith.constant 0 : index
    %c0_43 = arith.constant 0 : index
    %41 = vector.load %arg3[%c5_41, %c0_42, %c0_43] : memref<8x34x224xf32, #tpu.memory_space<vmem>>, vector<1x34x224xf32>
    %42 = vector.shape_cast %41 : vector<1x34x224xf32> to vector<34x224xf32>
    %cst_44 = arith.constant dense<0.000000e+00> : vector<28x224xf32>
    %43 = tpu.matmul %40, %42, %cst_44 {dimension_numbers = #tpu.dot_dimension_numbers<[1], [0], [0], [1], [0, 0, 1, 1], [], []>} : vector<28x34xf32>, vector<34x224xf32>, vector<28x224xf32> -> vector<28x224xf32>
    %44 = arith.addf %37, %43 : vector<28x224xf32>
    %c6 = arith.constant 6 : index
    %c0_45 = arith.constant 0 : index
    %c0_46 = arith.constant 0 : index
    %45 = vector.load %arg2[%c6, %c0_45, %c0_46] : memref<8x28x68xf32, #tpu.memory_space<vmem>>, vector<1x28x68xf32>
    %46 = vector.shape_cast %45 : vector<1x28x68xf32> to vector<28x68xf32>
    %cst_47 = arith.constant dense<0.000000e+00> : vector<28x34xf32>
    %47 = tpu.matmul %46, %0, %cst_47 {dimension_numbers = #tpu.dot_dimension_numbers<[1], [0], [0], [1], [0, 0, 1, 1], [], []>} : vector<28x68xf32>, vector<68x34xf32>, vector<28x34xf32> -> vector<28x34xf32>
    %c6_48 = arith.constant 6 : index
    %c0_49 = arith.constant 0 : index
    %c0_50 = arith.constant 0 : index
    %48 = vector.load %arg3[%c6_48, %c0_49, %c0_50] : memref<8x34x224xf32, #tpu.memory_space<vmem>>, vector<1x34x224xf32>
    %49 = vector.shape_cast %48 : vector<1x34x224xf32> to vector<34x224xf32>
    %cst_51 = arith.constant dense<0.000000e+00> : vector<28x224xf32>
    %50 = tpu.matmul %47, %49, %cst_51 {dimension_numbers = #tpu.dot_dimension_numbers<[1], [0], [0], [1], [0, 0, 1, 1], [], []>} : vector<28x34xf32>, vector<34x224xf32>, vector<28x224xf32> -> vector<28x224xf32>
    %51 = arith.addf %44, %50 : vector<28x224xf32>
    %c7 = arith.constant 7 : index
    %c0_52 = arith.constant 0 : index
    %c0_53 = arith.constant 0 : index
    %52 = vector.load %arg2[%c7, %c0_52, %c0_53] : memref<8x28x68xf32, #tpu.memory_space<vmem>>, vector<1x28x68xf32>
    %53 = vector.shape_cast %52 : vector<1x28x68xf32> to vector<28x68xf32>
    %cst_54 = arith.constant dense<0.000000e+00> : vector<28x34xf32>
    %54 = tpu.matmul %53, %0, %cst_54 {dimension_numbers = #tpu.dot_dimension_numbers<[1], [0], [0], [1], [0, 0, 1, 1], [], []>} : vector<28x68xf32>, vector<68x34xf32>, vector<28x34xf32> -> vector<28x34xf32>
    %c7_55 = arith.constant 7 : index
    %c0_56 = arith.constant 0 : index
    %c0_57 = arith.constant 0 : index
    %55 = vector.load %arg3[%c7_55, %c0_56, %c0_57] : memref<8x34x224xf32, #tpu.memory_space<vmem>>, vector<1x34x224xf32>
    %56 = vector.shape_cast %55 : vector<1x34x224xf32> to vector<34x224xf32>
    %cst_58 = arith.constant dense<0.000000e+00> : vector<28x224xf32>
    %57 = tpu.matmul %54, %56, %cst_58 {dimension_numbers = #tpu.dot_dimension_numbers<[1], [0], [0], [1], [0, 0, 1, 1], [], []>} : vector<28x34xf32>, vector<34x224xf32>, vector<28x224xf32> -> vector<28x224xf32>
    %58 = arith.addf %51, %57 : vector<28x224xf32>
    %cst_59 = arith.constant 0.000000e+00 : f32
    %59 = vector.broadcast %cst_59 : f32 to vector<28x224xf32>
    %60 = arith.maximumf %58, %59 : vector<28x224xf32>
    %c0_60 = arith.constant 0 : index
    %c0_61 = arith.constant 0 : index
    %61 = vector.load %arg5[%c0_60, %c0_61] : memref<224x224xf32, #tpu.memory_space<vmem>>, vector<224x224xf32>
    %cst_62 = arith.constant dense<0.000000e+00> : vector<28x224xf32>
    %62 = tpu.matmul %60, %61, %cst_62 {dimension_numbers = #tpu.dot_dimension_numbers<[1], [0], [0], [1], [0, 0, 1, 1], [], []>} : vector<28x224xf32>, vector<224x224xf32>, vector<28x224xf32> -> vector<28x224xf32>
    %63 = arith.maximumf %60, %62 : vector<28x224xf32>
    %64 = vector.extract_strided_slice %63 {offsets = [0, 0], sizes = [27, 224], strides = [1, 1]} : vector<28x224xf32> to vector<27x224xf32>
    %65 = vector.extract_strided_slice %63 {offsets = [1, 0], sizes = [27, 224], strides = [1, 1]} : vector<28x224xf32> to vector<27x224xf32>
    %66 = arith.maximumf %64, %65 : vector<27x224xf32>
    %c0_63 = arith.constant 0 : index
    %c0_64 = arith.constant 0 : index
    %67 = vector.load %arg8[%c0_63, %c0_64] : memref<1x160xf32, #tpu.memory_space<vmem>>, vector<1x160xf32>
    %c0_65 = arith.constant 0 : index
    %c0_66 = arith.constant 0 : index
    %c0_67 = arith.constant 0 : index
    %68 = vector.load %arg6[%c0_65, %c0_66, %c0_67] : memref<4x10x27xf32, #tpu.memory_space<vmem>>, vector<1x10x27xf32>
    %69 = vector.shape_cast %68 : vector<1x10x27xf32> to vector<10x27xf32>
    %cst_68 = arith.constant dense<0.000000e+00> : vector<10x224xf32>
    %70 = tpu.matmul %69, %66, %cst_68 {dimension_numbers = #tpu.dot_dimension_numbers<[1], [0], [0], [1], [0, 0, 1, 1], [], []>} : vector<10x27xf32>, vector<27x224xf32>, vector<10x224xf32> -> vector<10x224xf32>
    %c0_69 = arith.constant 0 : index
    %c0_70 = arith.constant 0 : index
    %c0_71 = arith.constant 0 : index
    %71 = vector.load %arg7[%c0_69, %c0_70, %c0_71] : memref<4x224x160xf32, #tpu.memory_space<vmem>>, vector<1x224x160xf32>
    %72 = vector.shape_cast %71 : vector<1x224x160xf32> to vector<224x160xf32>
    %cst_72 = arith.constant dense<0.000000e+00> : vector<10x160xf32>
    %73 = tpu.matmul %70, %72, %cst_72 {dimension_numbers = #tpu.dot_dimension_numbers<[1], [0], [0], [1], [0, 0, 1, 1], [], []>} : vector<10x224xf32>, vector<224x160xf32>, vector<10x160xf32> -> vector<10x160xf32>
    %74 = vector.broadcast %67 : vector<1x160xf32> to vector<10x160xf32>
    %75 = arith.addf %74, %73 : vector<10x160xf32>
    %c1_73 = arith.constant 1 : index
    %c0_74 = arith.constant 0 : index
    %c0_75 = arith.constant 0 : index
    %76 = vector.load %arg6[%c1_73, %c0_74, %c0_75] : memref<4x10x27xf32, #tpu.memory_space<vmem>>, vector<1x10x27xf32>
    %77 = vector.shape_cast %76 : vector<1x10x27xf32> to vector<10x27xf32>
    %cst_76 = arith.constant dense<0.000000e+00> : vector<10x224xf32>
    %78 = tpu.matmul %77, %66, %cst_76 {dimension_numbers = #tpu.dot_dimension_numbers<[1], [0], [0], [1], [0, 0, 1, 1], [], []>} : vector<10x27xf32>, vector<27x224xf32>, vector<10x224xf32> -> vector<10x224xf32>
    %c1_77 = arith.constant 1 : index
    %c0_78 = arith.constant 0 : index
    %c0_79 = arith.constant 0 : index
    %79 = vector.load %arg7[%c1_77, %c0_78, %c0_79] : memref<4x224x160xf32, #tpu.memory_space<vmem>>, vector<1x224x160xf32>
    %80 = vector.shape_cast %79 : vector<1x224x160xf32> to vector<224x160xf32>
    %cst_80 = arith.constant dense<0.000000e+00> : vector<10x160xf32>
    %81 = tpu.matmul %78, %80, %cst_80 {dimension_numbers = #tpu.dot_dimension_numbers<[1], [0], [0], [1], [0, 0, 1, 1], [], []>} : vector<10x224xf32>, vector<224x160xf32>, vector<10x160xf32> -> vector<10x160xf32>
    %82 = arith.addf %75, %81 : vector<10x160xf32>
    %c2_81 = arith.constant 2 : index
    %c0_82 = arith.constant 0 : index
    %c0_83 = arith.constant 0 : index
    %83 = vector.load %arg6[%c2_81, %c0_82, %c0_83] : memref<4x10x27xf32, #tpu.memory_space<vmem>>, vector<1x10x27xf32>
    %84 = vector.shape_cast %83 : vector<1x10x27xf32> to vector<10x27xf32>
    %cst_84 = arith.constant dense<0.000000e+00> : vector<10x224xf32>
    %85 = tpu.matmul %84, %66, %cst_84 {dimension_numbers = #tpu.dot_dimension_numbers<[1], [0], [0], [1], [0, 0, 1, 1], [], []>} : vector<10x27xf32>, vector<27x224xf32>, vector<10x224xf32> -> vector<10x224xf32>
    %c2_85 = arith.constant 2 : index
    %c0_86 = arith.constant 0 : index
    %c0_87 = arith.constant 0 : index
    %86 = vector.load %arg7[%c2_85, %c0_86, %c0_87] : memref<4x224x160xf32, #tpu.memory_space<vmem>>, vector<1x224x160xf32>
    %87 = vector.shape_cast %86 : vector<1x224x160xf32> to vector<224x160xf32>
    %cst_88 = arith.constant dense<0.000000e+00> : vector<10x160xf32>
    %88 = tpu.matmul %85, %87, %cst_88 {dimension_numbers = #tpu.dot_dimension_numbers<[1], [0], [0], [1], [0, 0, 1, 1], [], []>} : vector<10x224xf32>, vector<224x160xf32>, vector<10x160xf32> -> vector<10x160xf32>
    %89 = arith.addf %82, %88 : vector<10x160xf32>
    %c3_89 = arith.constant 3 : index
    %c0_90 = arith.constant 0 : index
    %c0_91 = arith.constant 0 : index
    %90 = vector.load %arg6[%c3_89, %c0_90, %c0_91] : memref<4x10x27xf32, #tpu.memory_space<vmem>>, vector<1x10x27xf32>
    %91 = vector.shape_cast %90 : vector<1x10x27xf32> to vector<10x27xf32>
    %cst_92 = arith.constant dense<0.000000e+00> : vector<10x224xf32>
    %92 = tpu.matmul %91, %66, %cst_92 {dimension_numbers = #tpu.dot_dimension_numbers<[1], [0], [0], [1], [0, 0, 1, 1], [], []>} : vector<10x27xf32>, vector<27x224xf32>, vector<10x224xf32> -> vector<10x224xf32>
    %c3_93 = arith.constant 3 : index
    %c0_94 = arith.constant 0 : index
    %c0_95 = arith.constant 0 : index
    %93 = vector.load %arg7[%c3_93, %c0_94, %c0_95] : memref<4x224x160xf32, #tpu.memory_space<vmem>>, vector<1x224x160xf32>
    %94 = vector.shape_cast %93 : vector<1x224x160xf32> to vector<224x160xf32>
    %cst_96 = arith.constant dense<0.000000e+00> : vector<10x160xf32>
    %95 = tpu.matmul %92, %94, %cst_96 {dimension_numbers = #tpu.dot_dimension_numbers<[1], [0], [0], [1], [0, 0, 1, 1], [], []>} : vector<10x224xf32>, vector<224x160xf32>, vector<10x160xf32> -> vector<10x160xf32>
    %96 = arith.addf %89, %95 : vector<10x160xf32>
    %cst_97 = arith.constant 0.000000e+00 : f32
    %97 = vector.broadcast %cst_97 : f32 to vector<10x160xf32>
    %98 = arith.maximumf %96, %97 : vector<10x160xf32>
    %c0_98 = arith.constant 0 : index
    %c0_99 = arith.constant 0 : index
    %99 = vector.load %arg9[%c0_98, %c0_99] : memref<160x160xf32, #tpu.memory_space<vmem>>, vector<160x160xf32>
    %cst_100 = arith.constant dense<0.000000e+00> : vector<10x160xf32>
    %100 = tpu.matmul %98, %99, %cst_100 {dimension_numbers = #tpu.dot_dimension_numbers<[1], [0], [0], [1], [0, 0, 1, 1], [], []>} : vector<10x160xf32>, vector<160x160xf32>, vector<10x160xf32> -> vector<10x160xf32>
    %101 = arith.maximumf %98, %100 : vector<10x160xf32>
    %102 = vector.extract_strided_slice %101 {offsets = [0, 0], sizes = [9, 160], strides = [1, 1]} : vector<10x160xf32> to vector<9x160xf32>
    %103 = vector.extract_strided_slice %101 {offsets = [1, 0], sizes = [9, 160], strides = [1, 1]} : vector<10x160xf32> to vector<9x160xf32>
    %104 = arith.maximumf %102, %103 : vector<9x160xf32>
    %c0_101 = arith.constant 0 : index
    %c0_102 = arith.constant 0 : index
    %105 = vector.load %arg11[%c0_101, %c0_102] : memref<1x32xf32, #tpu.memory_space<vmem>>, vector<1x32xf32>
    %106 = vector.extract_strided_slice %104 {offsets = [0, 0], sizes = [1, 160], strides = [1, 1]} : vector<9x160xf32> to vector<1x160xf32>
    %c0_103 = arith.constant 0 : index
    %c0_104 = arith.constant 0 : index
    %c0_105 = arith.constant 0 : index
    %107 = vector.load %arg10[%c0_103, %c0_104, %c0_105] : memref<4x160x32xf32, #tpu.memory_space<vmem>>, vector<1x160x32xf32>
    %108 = vector.shape_cast %107 : vector<1x160x32xf32> to vector<160x32xf32>
    %cst_106 = arith.constant dense<0.000000e+00> : vector<1x32xf32>
    %109 = tpu.matmul %106, %108, %cst_106 {dimension_numbers = #tpu.dot_dimension_numbers<[1], [0], [0], [1], [0, 0, 1, 1], [], []>} : vector<1x160xf32>, vector<160x32xf32>, vector<1x32xf32> -> vector<1x32xf32>
    %110 = arith.addf %105, %109 : vector<1x32xf32>
    %111 = vector.extract_strided_slice %104 {offsets = [1, 0], sizes = [1, 160], strides = [1, 1]} : vector<9x160xf32> to vector<1x160xf32>
    %c1_107 = arith.constant 1 : index
    %c0_108 = arith.constant 0 : index
    %c0_109 = arith.constant 0 : index
    %112 = vector.load %arg10[%c1_107, %c0_108, %c0_109] : memref<4x160x32xf32, #tpu.memory_space<vmem>>, vector<1x160x32xf32>
    %113 = vector.shape_cast %112 : vector<1x160x32xf32> to vector<160x32xf32>
    %cst_110 = arith.constant dense<0.000000e+00> : vector<1x32xf32>
    %114 = tpu.matmul %111, %113, %cst_110 {dimension_numbers = #tpu.dot_dimension_numbers<[1], [0], [0], [1], [0, 0, 1, 1], [], []>} : vector<1x160xf32>, vector<160x32xf32>, vector<1x32xf32> -> vector<1x32xf32>
    %115 = arith.addf %110, %114 : vector<1x32xf32>
    %116 = vector.extract_strided_slice %104 {offsets = [2, 0], sizes = [1, 160], strides = [1, 1]} : vector<9x160xf32> to vector<1x160xf32>
    %c2_111 = arith.constant 2 : index
    %c0_112 = arith.constant 0 : index
    %c0_113 = arith.constant 0 : index
    %117 = vector.load %arg10[%c2_111, %c0_112, %c0_113] : memref<4x160x32xf32, #tpu.memory_space<vmem>>, vector<1x160x32xf32>
    %118 = vector.shape_cast %117 : vector<1x160x32xf32> to vector<160x32xf32>
    %cst_114 = arith.constant dense<0.000000e+00> : vector<1x32xf32>
    %119 = tpu.matmul %116, %118, %cst_114 {dimension_numbers = #tpu.dot_dimension_numbers<[1], [0], [0], [1], [0, 0, 1, 1], [], []>} : vector<1x160xf32>, vector<160x32xf32>, vector<1x32xf32> -> vector<1x32xf32>
    %120 = arith.addf %115, %119 : vector<1x32xf32>
    %121 = vector.extract_strided_slice %104 {offsets = [3, 0], sizes = [1, 160], strides = [1, 1]} : vector<9x160xf32> to vector<1x160xf32>
    %c3_115 = arith.constant 3 : index
    %c0_116 = arith.constant 0 : index
    %c0_117 = arith.constant 0 : index
    %122 = vector.load %arg10[%c3_115, %c0_116, %c0_117] : memref<4x160x32xf32, #tpu.memory_space<vmem>>, vector<1x160x32xf32>
    %123 = vector.shape_cast %122 : vector<1x160x32xf32> to vector<160x32xf32>
    %cst_118 = arith.constant dense<0.000000e+00> : vector<1x32xf32>
    %124 = tpu.matmul %121, %123, %cst_118 {dimension_numbers = #tpu.dot_dimension_numbers<[1], [0], [0], [1], [0, 0, 1, 1], [], []>} : vector<1x160xf32>, vector<160x32xf32>, vector<1x32xf32> -> vector<1x32xf32>
    %125 = arith.addf %120, %124 : vector<1x32xf32>
    %cst_119 = arith.constant 0.000000e+00 : f32
    %126 = vector.broadcast %cst_119 : f32 to vector<1x32xf32>
    %127 = arith.maximumf %125, %126 : vector<1x32xf32>
    %c0_120 = arith.constant 0 : index
    %c0_121 = arith.constant 0 : index
    %128 = vector.load %arg12[%c0_120, %c0_121] : memref<32x128xf32, #tpu.memory_space<vmem>>, vector<32x128xf32>
    %cst_122 = arith.constant dense<0.000000e+00> : vector<1x128xf32>
    %129 = tpu.matmul %127, %128, %cst_122 {dimension_numbers = #tpu.dot_dimension_numbers<[1], [0], [0], [1], [0, 0, 1, 1], [], []>} : vector<1x32xf32>, vector<32x128xf32>, vector<1x128xf32> -> vector<1x128xf32>
    %c0_123 = arith.constant 0 : index
    %c0_124 = arith.constant 0 : index
    %130 = vector.load %arg13[%c0_123, %c0_124] : memref<1x128xf32, #tpu.memory_space<vmem>>, vector<1x128xf32>
    %131 = arith.addf %129, %130 : vector<1x128xf32>
    %c0_125 = arith.constant 0 : index
    %c0_126 = arith.constant 0 : index
    %132 = vector.load %arg14[%c0_125, %c0_126] : memref<2x128xf32, #tpu.memory_space<vmem>>, vector<1x128xf32>
    tpu.vector_store %arg14[%c0_125, %c0_126], %131 {strides = array<i32>} : memref<2x128xf32, #tpu.memory_space<vmem>>, vector<1x128xf32>,
    %c0_127 = arith.constant 0 : index
    %c0_128 = arith.constant 0 : index
    %133 = vector.load %arg11[%c0_127, %c0_128] : memref<1x32xf32, #tpu.memory_space<vmem>>, vector<1x32xf32>
    %134 = vector.extract_strided_slice %104 {offsets = [5, 0], sizes = [1, 160], strides = [1, 1]} : vector<9x160xf32> to vector<1x160xf32>
    %c0_129 = arith.constant 0 : index
    %c0_130 = arith.constant 0 : index
    %c0_131 = arith.constant 0 : index
    %135 = vector.load %arg10[%c0_129, %c0_130, %c0_131] : memref<4x160x32xf32, #tpu.memory_space<vmem>>, vector<1x160x32xf32>
    %136 = vector.shape_cast %135 : vector<1x160x32xf32> to vector<160x32xf32>
    %cst_132 = arith.constant dense<0.000000e+00> : vector<1x32xf32>
    %137 = tpu.matmul %134, %136, %cst_132 {dimension_numbers = #tpu.dot_dimension_numbers<[1], [0], [0], [1], [0, 0, 1, 1], [], []>} : vector<1x160xf32>, vector<160x32xf32>, vector<1x32xf32> -> vector<1x32xf32>
    %138 = arith.addf %133, %137 : vector<1x32xf32>
    %139 = vector.extract_strided_slice %104 {offsets = [6, 0], sizes = [1, 160], strides = [1, 1]} : vector<9x160xf32> to vector<1x160xf32>
    %c1_133 = arith.constant 1 : index
    %c0_134 = arith.constant 0 : index
    %c0_135 = arith.constant 0 : index
    %140 = vector.load %arg10[%c1_133, %c0_134, %c0_135] : memref<4x160x32xf32, #tpu.memory_space<vmem>>, vector<1x160x32xf32>
    %141 = vector.shape_cast %140 : vector<1x160x32xf32> to vector<160x32xf32>
    %cst_136 = arith.constant dense<0.000000e+00> : vector<1x32xf32>
    %142 = tpu.matmul %139, %141, %cst_136 {dimension_numbers = #tpu.dot_dimension_numbers<[1], [0], [0], [1], [0, 0, 1, 1], [], []>} : vector<1x160xf32>, vector<160x32xf32>, vector<1x32xf32> -> vector<1x32xf32>
    %143 = arith.addf %138, %142 : vector<1x32xf32>
    %144 = vector.extract_strided_slice %104 {offsets = [7, 0], sizes = [1, 160], strides = [1, 1]} : vector<9x160xf32> to vector<1x160xf32>
    %c2_137 = arith.constant 2 : index
    %c0_138 = arith.constant 0 : index
    %c0_139 = arith.constant 0 : index
    %145 = vector.load %arg10[%c2_137, %c0_138, %c0_139] : memref<4x160x32xf32, #tpu.memory_space<vmem>>, vector<1x160x32xf32>
    %146 = vector.shape_cast %145 : vector<1x160x32xf32> to vector<160x32xf32>
    %cst_140 = arith.constant dense<0.000000e+00> : vector<1x32xf32>
    %147 = tpu.matmul %144, %146, %cst_140 {dimension_numbers = #tpu.dot_dimension_numbers<[1], [0], [0], [1], [0, 0, 1, 1], [], []>} : vector<1x160xf32>, vector<160x32xf32>, vector<1x32xf32> -> vector<1x32xf32>
    %148 = arith.addf %143, %147 : vector<1x32xf32>
    %149 = vector.extract_strided_slice %104 {offsets = [8, 0], sizes = [1, 160], strides = [1, 1]} : vector<9x160xf32> to vector<1x160xf32>
    %c3_141 = arith.constant 3 : index
    %c0_142 = arith.constant 0 : index
    %c0_143 = arith.constant 0 : index
    %150 = vector.load %arg10[%c3_141, %c0_142, %c0_143] : memref<4x160x32xf32, #tpu.memory_space<vmem>>, vector<1x160x32xf32>
    %151 = vector.shape_cast %150 : vector<1x160x32xf32> to vector<160x32xf32>
    %cst_144 = arith.constant dense<0.000000e+00> : vector<1x32xf32>
    %152 = tpu.matmul %149, %151, %cst_144 {dimension_numbers = #tpu.dot_dimension_numbers<[1], [0], [0], [1], [0, 0, 1, 1], [], []>} : vector<1x160xf32>, vector<160x32xf32>, vector<1x32xf32> -> vector<1x32xf32>
    %153 = arith.addf %148, %152 : vector<1x32xf32>
    %cst_145 = arith.constant 0.000000e+00 : f32
    %154 = vector.broadcast %cst_145 : f32 to vector<1x32xf32>
    %155 = arith.maximumf %153, %154 : vector<1x32xf32>
    %c0_146 = arith.constant 0 : index
    %c0_147 = arith.constant 0 : index
    %156 = vector.load %arg12[%c0_146, %c0_147] : memref<32x128xf32, #tpu.memory_space<vmem>>, vector<32x128xf32>
    %cst_148 = arith.constant dense<0.000000e+00> : vector<1x128xf32>
    %157 = tpu.matmul %155, %156, %cst_148 {dimension_numbers = #tpu.dot_dimension_numbers<[1], [0], [0], [1], [0, 0, 1, 1], [], []>} : vector<1x32xf32>, vector<32x128xf32>, vector<1x128xf32> -> vector<1x128xf32>
    %c0_149 = arith.constant 0 : index
    %c0_150 = arith.constant 0 : index
    %158 = vector.load %arg13[%c0_149, %c0_150] : memref<1x128xf32, #tpu.memory_space<vmem>>, vector<1x128xf32>
    %159 = arith.addf %157, %158 : vector<1x128xf32>
    %c1_151 = arith.constant 1 : index
    %c0_152 = arith.constant 0 : index
    %160 = vector.load %arg14[%c1_151, %c0_152] : memref<2x128xf32, #tpu.memory_space<vmem>>, vector<1x128xf32>
    tpu.vector_store %arg14[%c1_151, %c0_152], %159 {strides = array<i32>} : memref<2x128xf32, #tpu.memory_space<vmem>>, vector<1x128xf32>,
    return
  }
  func.func @transform_0(%arg0: i32) -> (i32, i32) {
    %c0_i32 = arith.constant 0 : i32
    %c0_i32_0 = arith.constant 0 : i32
    %c0_i32_1 = arith.constant 0 : i32
    return %c0_i32, %c0_i32_0 : i32, i32
  }
  func.func @transform_1(%arg0: i32) -> (i32, i32, i32) {
    %c0_i32 = arith.constant 0 : i32
    %c0_i32_0 = arith.constant 0 : i32
    %c0_i32_1 = arith.constant 0 : i32
    %c0_i32_2 = arith.constant 0 : i32
    return %c0_i32, %c0_i32_0, %c0_i32_1 : i32, i32, i32
  }
  func.func @transform_2(%arg0: i32) -> (i32, i32, i32) {
    %c0_i32 = arith.constant 0 : i32
    %c0_i32_0 = arith.constant 0 : i32
    %c0_i32_1 = arith.constant 0 : i32
    %c0_i32_2 = arith.constant 0 : i32
    return %c0_i32, %c0_i32_0, %c0_i32_1 : i32, i32, i32
  }
  func.func @transform_3(%arg0: i32) -> (i32, i32) {
    %c0_i32 = arith.constant 0 : i32
    %c0_i32_0 = arith.constant 0 : i32
    %c0_i32_1 = arith.constant 0 : i32
    return %c0_i32, %c0_i32_0 : i32, i32
  }
  func.func @transform_4(%arg0: i32) -> (i32, i32) {
    %c0_i32 = arith.constant 0 : i32
    %c0_i32_0 = arith.constant 0 : i32
    %c0_i32_1 = arith.constant 0 : i32
    return %c0_i32, %c0_i32_0 : i32, i32
  }
  func.func @transform_5(%arg0: i32) -> (i32, i32, i32) {
    %c0_i32 = arith.constant 0 : i32
    %c0_i32_0 = arith.constant 0 : i32
    %c0_i32_1 = arith.constant 0 : i32
    %c0_i32_2 = arith.constant 0 : i32
    return %c0_i32, %c0_i32_0, %c0_i32_1 : i32, i32, i32
  }
  func.func @transform_6(%arg0: i32) -> (i32, i32, i32) {
    %c0_i32 = arith.constant 0 : i32
    %c0_i32_0 = arith.constant 0 : i32
    %c0_i32_1 = arith.constant 0 : i32
    %c0_i32_2 = arith.constant 0 : i32
    return %c0_i32, %c0_i32_0, %c0_i32_1 : i32, i32, i32
  }
  func.func @transform_7(%arg0: i32) -> (i32, i32) {
    %c0_i32 = arith.constant 0 : i32
    %c0_i32_0 = arith.constant 0 : i32
    %c0_i32_1 = arith.constant 0 : i32
    return %c0_i32, %c0_i32_0 : i32, i32
  }
  func.func @transform_8(%arg0: i32) -> (i32, i32) {
    %c0_i32 = arith.constant 0 : i32
    %c0_i32_0 = arith.constant 0 : i32
    %c0_i32_1 = arith.constant 0 : i32
    return %c0_i32, %c0_i32_0 : i32, i32
  }
  func.func @transform_9(%arg0: i32) -> (i32, i32, i32) {
    %c0_i32 = arith.constant 0 : i32
    %c0_i32_0 = arith.constant 0 : i32
    %c0_i32_1 = arith.constant 0 : i32
    %c0_i32_2 = arith.constant 0 : i32
    return %c0_i32, %c0_i32_0, %c0_i32_1 : i32, i32, i32
  }
  func.func @transform_10(%arg0: i32) -> (i32, i32) {
    %c0_i32 = arith.constant 0 : i32
    %c0_i32_0 = arith.constant 0 : i32
    %c0_i32_1 = arith.constant 0 : i32
    return %c0_i32, %c0_i32_0 : i32, i32
  }
  func.func @transform_11(%arg0: i32) -> (i32, i32) {
    %c0_i32 = arith.constant 0 : i32
    %c0_i32_0 = arith.constant 0 : i32
    %c0_i32_1 = arith.constant 0 : i32
    return %c0_i32, %c0_i32_0 : i32, i32
  }
  func.func @transform_12(%arg0: i32) -> (i32, i32) {
    %c0_i32 = arith.constant 0 : i32
    %c0_i32_0 = arith.constant 0 : i32
    %c0_i32_1 = arith.constant 0 : i32
    return %c0_i32, %c0_i32_0 : i32, i32
  }
  func.func @transform_13(%arg0: i32) -> (i32, i32) {
    %c0_i32 = arith.constant 0 : i32
    %c0_i32_0 = arith.constant 0 : i32
    %c0_i32_1 = arith.constant 0 : i32
    return %c0_i32, %c0_i32_0 : i32, i32
  }
}

</mosaic_0001>

<llo_original>
// kernel: lenet_forward.1
$region0: #{lenet_forward.1}
  #allocation0 [shape = 'u32[]', space=smem, size = 0x4, offset = 0x4, fixed_abs, tag = 'smem constant byte address 0x4 - core index']
  #allocation1 [shape = 'u32[144,128]{1,0:T(1,128)}', space=vmem, size = 0x12000, scoped, tag = 'internal scratch']
  %s0 = inlined_call_operand.vmem [shape: f32[68,34], index: 0, kind: input, shape index: {}]
  %s1 = inlined_call_operand.vmem [shape: f32[8,28,68], index: 1, kind: input, shape index: {}]
  %s2 = inlined_call_operand.vmem [shape: f32[8,34,224], index: 2, kind: input, shape index: {}]
  %s3 = inlined_call_operand.vmem [shape: f32[1,224], index: 3, kind: input, shape index: {}]
  %s4 = inlined_call_operand.vmem [shape: f32[224,224], index: 4, kind: input, shape index: {}]
  %s5 = inlined_call_operand.vmem [shape: f32[4,10,27], index: 5, kind: input, shape index: {}]
  %s6 = inlined_call_operand.vmem [shape: f32[4,224,160], index: 6, kind: input, shape index: {}]
  %s7 = inlined_call_operand.vmem [shape: f32[1,160], index: 7, kind: input, shape index: {}]
  %s8 = inlined_call_operand.vmem [shape: f32[160,160], index: 8, kind: input, shape index: {}]
  %s9 = inlined_call_operand.vmem [shape: f32[4,160,32], index: 9, kind: input, shape index: {}]
  %s10 = inlined_call_operand.vmem [shape: f32[1,32], index: 10, kind: input, shape index: {}]
  %s11 = inlined_call_operand.vmem [shape: f32[32,128], index: 11, kind: input, shape index: {}]
  %s12 = inlined_call_operand.vmem [shape: f32[1,128], index: 12, kind: input, shape index: {}]
  %s13 = inlined_call_operand.hbm [shape: f32[2,128], index: 13, kind: output, shape index: {}]
  %s14 = sld [smem:[#allocation0]]
  $region62: #{lenet_forward.1} parent=0
    _
  %s16 = ssub.s32 1, %s14
  %s17 = scalar_select 0, %s16, %s14
  $region1: #{lenet_forward.1} parent=0
    #allocation2 [shape = 'u8[1024]{0}', space=vmem, size = 0x400, scoped, tag = 'output window, operand 0, single buffered']
    #allocation3 [shape = 's32[1]{0}', space=sflag, size = 0x4, scoped, tag = 'scoped memory for lenet_forward.1']
    %18 = vsyncpa [#allocation3], 0
    // Predicated region
    $region2: #{lenet_forward.1} parent=1 // pred_check
      _
    $region3: #{lenet_forward.1} parent=1 // pred_check_branch
      %20 = sbr.rel (0) target = $region5
    $region4: #{lenet_forward.1} parent=1 // pred_region
      _
    $region5: #{lenet_forward.1} parent=1 // pred_fallthru
      _
    // Predicated region
    $region6: #{lenet_forward.1} parent=1 // pred_check
      _
    $region7: #{lenet_forward.1} parent=1 // pred_check_branch
      %22 = sbr.rel (0) target = $region9
    $region8: #{lenet_forward.1} parent=1 // pred_region
      _
    $region9: #{lenet_forward.1} parent=1 // pred_fallthru
      _
    // Predicated region
    $region10: #{lenet_forward.1} parent=1 // pred_check
      _
    $region11: #{lenet_forward.1} parent=1 // pred_check_branch
      %24 = sbr.rel (0) target = $region13
    $region12: #{lenet_forward.1} parent=1 // pred_region
      _
    $region13: #{lenet_forward.1} parent=1 // pred_fallthru
      _
    // Predicated region
    $region14: #{lenet_forward.1} parent=1 // pred_check
      _
    $region15: #{lenet_forward.1} parent=1 // pred_check_branch
      %26 = sbr.rel (0) target = $region17
    $region16: #{lenet_forward.1} parent=1 // pred_region
      _
    $region17: #{lenet_forward.1} parent=1 // pred_fallthru
      _
    // Predicated region
    $region18: #{lenet_forward.1} parent=1 // pred_check
      _
    $region19: #{lenet_forward.1} parent=1 // pred_check_branch
      %28 = sbr.rel (0) target = $region21
    $region20: #{lenet_forward.1} parent=1 // pred_region
      _
    $region21: #{lenet_forward.1} parent=1 // pred_fallthru
      _
    // Predicated region
    $region22: #{lenet_forward.1} parent=1 // pred_check
      _
    $region23: #{lenet_forward.1} parent=1 // pred_check_branch
      %30 = sbr.rel (0) target = $region25
    $region24: #{lenet_forward.1} parent=1 // pred_region
      _
    $region25: #{lenet_forward.1} parent=1 // pred_fallthru
      _
    // Predicated region
    $region26: #{lenet_forward.1} parent=1 // pred_check
      _
    $region27: #{lenet_forward.1} parent=1 // pred_check_branch
      %32 = sbr.rel (0) target = $region29
    $region28: #{lenet_forward.1} parent=1 // pred_region
      _
    $region29: #{lenet_forward.1} parent=1 // pred_fallthru
      _
    // Predicated region
    $region30: #{lenet_forward.1} parent=1 // pred_check
      _
    $region31: #{lenet_forward.1} parent=1 // pred_check_branch
      %34 = sbr.rel (0) target = $region33
    $region32: #{lenet_forward.1} parent=1 // pred_region
      _
    $region33: #{lenet_forward.1} parent=1 // pred_fallthru
      _
    // Predicated region
    $region34: #{lenet_forward.1} parent=1 // pred_check
      _
    $region35: #{lenet_forward.1} parent=1 // pred_check_branch
      %36 = sbr.rel (0) target = $region37
    $region36: #{lenet_forward.1} parent=1 // pred_region
      _
    $region37: #{lenet_forward.1} parent=1 // pred_fallthru
      _
    // Predicated region
    $region38: #{lenet_forward.1} parent=1 // pred_check
      _
    $region39: #{lenet_forward.1} parent=1 // pred_check_branch
      %38 = sbr.rel (0) target = $region41
    $region40: #{lenet_forward.1} parent=1 // pred_region
      _
    $region41: #{lenet_forward.1} parent=1 // pred_fallthru
      _
    // Predicated region
    $region42: #{lenet_forward.1} parent=1 // pred_check
      _
    $region43: #{lenet_forward.1} parent=1 // pred_check_branch
      %40 = sbr.rel (0) target = $region45
    $region44: #{lenet_forward.1} parent=1 // pred_region
      _
    $region45: #{lenet_forward.1} parent=1 // pred_fallthru
      _
    // Predicated region
    $region46: #{lenet_forward.1} parent=1 // pred_check
      _
    $region47: #{lenet_forward.1} parent=1 // pred_check_branch
      %42 = sbr.rel (0) target = $region49
    $region48: #{lenet_forward.1} parent=1 // pred_region
      _
    $region49: #{lenet_forward.1} parent=1 // pred_fallthru
      _
    // Predicated region
    $region50: #{lenet_forward.1} parent=1 // pred_check
      _
    $region51: #{lenet_forward.1} parent=1 // pred_check_branch
      %44 = sbr.rel (0) target = $region53
    $region52: #{lenet_forward.1} parent=1 // pred_region
      _
    $region53: #{lenet_forward.1} parent=1 // pred_fallthru
      _
    %v45 = vld [vmem:[%s0] sm:$0xff]
    %v46 = vld [vmem:[%s0 + $0x8] sm:$0xff]
    %v47 = vld [vmem:[%s0 + $0x10] sm:$0xff]
    %v48 = vld [vmem:[%s0 + $0x18] sm:$0xff]
    %v49 = vld [vmem:[%s0 + $0x20] sm:$0xff]
    %v50 = vld [vmem:[%s0 + $0x28] sm:$0xff]
    %v51 = vld [vmem:[%s0 + $0x30] sm:$0xff]
    %v52 = vld [vmem:[%s0 + $0x38] sm:$0xff]
    %v53 = vld [vmem:[%s0 + $0x40] sm:$0xf]
    %v54 = vld [vmem:[%s3] sm:$0x3]
    %v55 = vld [vmem:[%s1] sm:$0xff]
    %v56 = vld [vmem:[%s1 + $0x8] sm:$0xff]
    %v57 = vld [vmem:[%s1 + $0x10] sm:$0xff]
    %v58 = vld [vmem:[%s1 + $0x18] sm:$0xf]
    %vm59 = vcmask 556032
    %v61 = vsel %vm59, %v55, 0
    %v64 = vsel %vm59, %v56, 0
    %v67 = vsel %vm59, %v57, 0
    %v70 = vsel %vm59, %v58, 0
    %vm72 = vcmask 1043456
    %v74 = vsel %vm72, %v53, 0
    %76 = vmatprep.subr.mxu0 0.0
    %77 = vmatpush1.msra.mxu0 %v45
    %78 = vmatprep.subr.mxu0 0.0
    %79 = vmatpush1.msra.mxu0 %v46
    %80 = vmatprep.subr.mxu0 0.0
    %81 = vmatpush1.msra.mxu0 %v47
    %82 = vmatprep.subr.mxu0 0.0
    %83 = vmatpush1.msra.mxu0 %v48
    %84 = vmatprep.subr.mxu0 0.0
    %85 = vmatpush1.msra.mxu0 %v49
    %86 = vmatprep.subr.mxu0 0.0
    %87 = vmatpush1.msra.mxu0 %v50
    %88 = vmatprep.subr.mxu0 0.0
    %89 = vmatpush1.msra.mxu0 %v51
    %90 = vmatprep.subr.mxu0 0.0
    %91 = vmatpush1.msra.mxu0 %v52
    %92 = vmatprep.subr.mxu0 0.0
    %93 = vmatpush1.msra.mxu0 %v74
    %94 = vmatprep.subr.mxu0 0.0
    %95 = vmatpush1.msra.mxu0 0.0
    %96 = vmatprep.subr.mxu0 0.0
    %97 = vmatpush1.msra.mxu0 0.0
    %98 = vmatprep.subr.mxu0 0.0
    %99 = vmatpush1.msra.mxu0 0.0
    %100 = vmatprep.subr.mxu0 0.0
    %101 = vmatpush1.msra.mxu0 0.0
    %102 = vmatprep.subr.mxu0 0.0
    %103 = vmatpush1.msra.mxu0 0.0
    %104 = vmatprep.subr.mxu0 0.0
    %105 = vmatpush1.msra.mxu0 0.0
    %106 = vmatprep.subr.mxu0 0.0
    %107 = vmatpush1.msra.mxu0 0.0
    %108 = vmatprep.subr.mxu0 0.0
    %109 = vmatpush1.msra.mxu0 0.0
    %110 = vmatprep.subr.mxu0 0.0
    %111 = vmatpush1.msra.mxu0 0.0
    %112 = vmatprep.subr.mxu0 0.0
    %113 = vmatpush1.msra.mxu0 0.0
    %114 = vmatprep.subr.mxu0 0.0
    %115 = vmatpush1.msra.mxu0 0.0
    %116 = vmatprep.subr.mxu0 0.0
    %117 = vmatpush1.msra.mxu0 0.0
    %118 = vmatprep.subr.mxu0 0.0
    %119 = vmatpush1.msra.mxu0 0.0
    %120 = vmatprep.subr.mxu0 0.0
    %121 = vmatpush1.msra.mxu0 0.0
    %122 = vmatprep.subr.mxu0 0.0
    %123 = vmatpush1.msra.mxu0 0.0
    %124 = vmatprep.subr.mxu0 0.0
    %125 = vmatpush1.msra.mxu0 0.0
    %126 = vmatprep.subr.mxu0 0.0
    %127 = vmatpush1.msra.mxu0 0.0
    %128 = vmatprep.subr.mxu0 0.0
    %129 = vmatpush1.msra.mxu0 0.0
    %130 = vmatprep.subr.mxu0 0.0
    %131 = vmatpush1.msra.mxu0 0.0
    %132 = vmatprep.subr.mxu0 0.0
    %133 = vmatpush1.msra.mxu0 0.0
    %134 = vmatprep.subr.mxu0 0.0
    %135 = vmatpush1.msra.mxu0 0.0
    %136 = vmatprep.subr.mxu0 0.0
    %137 = vmatpush1.msra.mxu0 0.0
    %138 = vmatprep.subr.mxu0 0.0
    %139 = vmatpush1.msra.mxu0 0.0
    %140 = vmatprep.mubr.f32.mxu0 0.0
    %141 = vmatmul.mubr.f32.gmra.mrb[0].mxu0 %v61
    %v142 = vpop.f32.mrb[0].mxu0
    %v143 = vadd.f32 0.0, %v142
    %v144 = vpop.f32.mrb[0].mxu0
    %145 = vmatprep.mubr.f32.mxu0 0.0
    %146 = vmatmul.mubr.f32.gmra.mrb[0].mxu0 %v64
    %v147 = vpop.f32.mrb[0].mxu0
    %v148 = vadd.f32 0.0, %v147
    %v149 = vpop.f32.mrb[0].mxu0
    %150 = vmatprep.mubr.f32.mxu0 0.0
    %151 = vmatmul.mubr.f32.gmra.mrb[0].mxu0 %v67
    %v152 = vpop.f32.mrb[0].mxu0
    %v153 = vadd.f32 0.0, %v152
    %v154 = vpop.f32.mrb[0].mxu0
    %155 = vmatprep.mubr.f32.mxu0 0.0
    %156 = vmatmul.mubr.f32.gmra.mrb[0].mxu0 %v70
    %v157 = vpop.f32.mrb[0].mxu0
    %v158 = vadd.f32 0.0, %v157
    %v159 = vpop.f32.mrb[0].mxu0
    %160 = vdwg.mxu0
    %v161 = vld [vmem:[%s2] sm:$0xff]
    %v162 = vld [vmem:[%s2 + $0x8] sm:$0xff]
    %v163 = vld [vmem:[%s2 + $0x10] sm:$0xff]
    %v164 = vld [vmem:[%s2 + $0x18] sm:$0xff]
    %v165 = vld [vmem:[%s2 + $0x20] sm:$0xff]
    %v166 = vld [vmem:[%s2 + $0x28] sm:$0xff]
    %v167 = vld [vmem:[%s2 + $0x30] sm:$0xff]
    %v168 = vld [vmem:[%s2 + $0x38] sm:$0xff]
    %v169 = vld [vmem:[%s2 + $0x40] sm:$0x3]
    %v170 = vld [vmem:[%s2 + $0x48] sm:$0x3]
    %vm171 = vcmask 277504
    %v173 = vsel %vm171, %v143, 0
    %v176 = vsel %vm171, %v148, 0
    %v179 = vsel %vm171, %v153, 0
    %v182 = vsel %vm171, %v158, 0
    %vm184 = vcmask 1041408
    %v186 = vsel %vm184, %v169, 0
    %v189 = vsel %vm184, %v170, 0
    %191 = vmatprep.subr.mxu0 %v162
    %192 = vmatpush1.msra.mxu0 %v161
    %193 = vmatprep.subr.mxu0 %v164
    %194 = vmatpush1.msra.mxu0 %v163
    %195 = vmatprep.subr.mxu0 %v166
    %196 = vmatpush1.msra.mxu0 %v165
    %197 = vmatprep.subr.mxu0 %v168
    %198 = vmatpush1.msra.mxu0 %v167
    %199 = vmatprep.subr.mxu0 %v189
    %200 = vmatpush1.msra.mxu0 %v186
    %201 = vmatprep.subr.mxu0 0.0
    %202 = vmatpush1.msra.mxu0 0.0
    %203 = vmatprep.subr.mxu0 0.0
    %204 = vmatpush1.msra.mxu0 0.0
    %205 = vmatprep.subr.mxu0 0.0
    %206 = vmatpush1.msra.mxu0 0.0
    %207 = vmatprep.subr.mxu0 0.0
    %208 = vmatpush1.msra.mxu0 0.0
    %209 = vmatprep.subr.mxu0 0.0
    %210 = vmatpush1.msra.mxu0 0.0
    %211 = vmatprep.subr.mxu0 0.0
    %212 = vmatpush1.msra.mxu0 0.0
    %213 = vmatprep.subr.mxu0 0.0
    %214 = vmatpush1.msra.mxu0 0.0
    %215 = vmatprep.subr.mxu0 0.0
    %216 = vmatpush1.msra.mxu0 0.0
    %217 = vmatprep.subr.mxu0 0.0
    %218 = vmatpush1.msra.mxu0 0.0
    %219 = vmatprep.subr.mxu0 0.0
    %220 = vmatpush1.msra.mxu0 0.0
    %221 = vmatprep.subr.mxu0 0.0
    %222 = vmatpush1.msra.mxu0 0.0
    %223 = vmatprep.subr.mxu0 0.0
    %224 = vmatpush1.msra.mxu0 0.0
    %225 = vmatprep.subr.mxu0 0.0
    %226 = vmatpush1.msra.mxu0 0.0
    %227 = vmatprep.subr.mxu0 0.0
    %228 = vmatpush1.msra.mxu0 0.0
    %229 = vmatprep.subr.mxu0 0.0
    %230 = vmatpush1.msra.mxu0 0.0
    %231 = vmatprep.subr.mxu0 0.0
    %232 = vmatpush1.msra.mxu0 0.0
    %233 = vmatprep.subr.mxu0 0.0
    %234 = vmatpush1.msra.mxu0 0.0
    %235 = vmatprep.subr.mxu0 0.0
    %236 = vmatpush1.msra.mxu0 0.0
    %237 = vmatprep.subr.mxu0 0.0
    %238 = vmatpush1.msra.mxu0 0.0
    %239 = vmatprep.subr.mxu0 0.0
    %240 = vmatpush1.msra.mxu0 0.0
    %241 = vmatprep.subr.mxu0 0.0
    %242 = vmatpush1.msra.mxu0 0.0
    %243 = vmatprep.subr.mxu0 0.0
    %244 = vmatpush1.msra.mxu0 0.0
    %245 = vmatprep.subr.mxu0 0.0
    %246 = vmatpush1.msra.mxu0 0.0
    %247 = vmatprep.subr.mxu0 0.0
    %248 = vmatpush1.msra.mxu0 0.0
    %249 = vmatprep.subr.mxu0 0.0
    %250 = vmatpush1.msra.mxu0 0.0
    %251 = vmatprep.subr.mxu0 0.0
    %252 = vmatpush1.msra.mxu0 0.0
    %253 = vmatprep.subr.mxu0 0.0
    %254 = vmatpush1.msra.mxu0 0.0
    %255 = vmatprep.mubr.f32.mxu0 0.0
    %256 = vmatmul.mubr.f32.gmra.mrb[0].mxu0 %v173
    %v257 = vpop.f32.mrb[0].mxu0
    %v258 = vadd.f32 0.0, %v257
    %v259 = vpop.f32.mrb[0].mxu0
    %v260 = vadd.f32 0.0, %v259
    %261 = vmatprep.mubr.f32.mxu0 0.0
    %262 = vmatmul.mubr.f32.gmra.mrb[0].mxu0 %v176
    %v263 = vpop.f32.mrb[0].mxu0
    %v264 = vadd.f32 0.0, %v263
    %v265 = vpop.f32.mrb[0].mxu0
    %v266 = vadd.f32 0.0, %v265
    %267 = vmatprep.mubr.f32.mxu0 0.0
    %268 = vmatmul.mubr.f32.gmra.mrb[0].mxu0 %v179
    %v269 = vpop.f32.mrb[0].mxu0
    %v270 = vadd.f32 0.0, %v269
    %v271 = vpop.f32.mrb[0].mxu0
    %v272 = vadd.f32 0.0, %v271
    %273 = vmatprep.mubr.f32.mxu0 0.0
    %274 = vmatmul.mubr.f32.gmra.mrb[0].mxu0 %v182
    %v275 = vpop.f32.mrb[0].mxu0
    %v276 = vadd.f32 0.0, %v275
    %v277 = vpop.f32.mrb[0].mxu0
    %v278 = vadd.f32 0.0, %v277
    %279 = vdwg.mxu0
    %v281 = vlaneseq
    %v282 = vshrl.u32 %v281, 7
    %v283 = vsub.s32 0, %v282
    %v284 = vrot.slane %v54, %v283
    %v285 = vlaneseq
    %v286 = vshrl.u32 %v285, 7
    %v287 = vsub.s32 1, %v286
    %v288 = vrot.slane %v54, %v287
    %v291 = vadd.f32 %v284, %v258
    %v292 = vadd.f32 %v288, %v260
    %v293 = vadd.f32 %v284, %v264
    %v294 = vadd.f32 %v288, %v266
    %v295 = vadd.f32 %v284, %v270
    %v296 = vadd.f32 %v288, %v272
    %v297 = vadd.f32 %v284, %v276
    %v298 = vadd.f32 %v288, %v278
    %s299 = scalar_lea.vmem %s1, 32
    %v300 = vld [vmem:[%s299] sm:$0xff]
    %v301 = vld [vmem:[%s299 + $0x8] sm:$0xff]
    %v302 = vld [vmem:[%s299 + $0x10] sm:$0xff]
    %v303 = vld [vmem:[%s299 + $0x18] sm:$0xf]
    %v305 = vsel %vm59, %v300, 0
    %v308 = vsel %vm59, %v301, 0
    %v311 = vsel %vm59, %v302, 0
    %v314 = vsel %vm59, %v303, 0
    %316 = vmatprep.subr.mxu0 0.0
    %317 = vmatpush1.msra.mxu0 %v45
    %318 = vmatprep.subr.mxu0 0.0
    %319 = vmatpush1.msra.mxu0 %v46
    %320 = vmatprep.subr.mxu0 0.0
    %321 = vmatpush1.msra.mxu0 %v47
    %322 = vmatprep.subr.mxu0 0.0
    %323 = vmatpush1.msra.mxu0 %v48
    %324 = vmatprep.subr.mxu0 0.0
    %325 = vmatpush1.msra.mxu0 %v49
    %326 = vmatprep.subr.mxu0 0.0
    %327 = vmatpush1.msra.mxu0 %v50
    %328 = vmatprep.subr.mxu0 0.0
    %329 = vmatpush1.msra.mxu0 %v51
    %330 = vmatprep.subr.mxu0 0.0
    %331 = vmatpush1.msra.mxu0 %v52
    %332 = vmatprep.subr.mxu0 0.0
    %333 = vmatpush1.msra.mxu0 %v74
    %334 = vmatprep.subr.mxu0 0.0
    %335 = vmatpush1.msra.mxu0 0.0
    %336 = vmatprep.subr.mxu0 0.0
    %337 = vmatpush1.msra.mxu0 0.0
    %338 = vmatprep.subr.mxu0 0.0
    %339 = vmatpush1.msra.mxu0 0.0
    %340 = vmatprep.subr.mxu0 0.0
    %341 = vmatpush1.msra.mxu0 0.0
    %342 = vmatprep.subr.mxu0 0.0
    %343 = vmatpush1.msra.mxu0 0.0
    %344 = vmatprep.subr.mxu0 0.0
    %345 = vmatpush1.msra.mxu0 0.0
    %346 = vmatprep.subr.mxu0 0.0
    %347 = vmatpush1.msra.mxu0 0.0
    %348 = vmatprep.subr.mxu0 0.0
    %349 = vmatpush1.msra.mxu0 0.0
    %350 = vmatprep.subr.mxu0 0.0
    %351 = vmatpush1.msra.mxu0 0.0
    %352 = vmatprep.subr.mxu0 0.0
    %353 = vmatpush1.msra.mxu0 0.0
    %354 = vmatprep.subr.mxu0 0.0
    %355 = vmatpush1.msra.mxu0 0.0
    %356 = vmatprep.subr.mxu0 0.0
    %357 = vmatpush1.msra.mxu0 0.0
    %358 = vmatprep.subr.mxu0 0.0
    %359 = vmatpush1.msra.mxu0 0.0
    %360 = vmatprep.subr.mxu0 0.0
    %361 = vmatpush1.msra.mxu0 0.0
    %362 = vmatprep.subr.mxu0 0.0
    %363 = vmatpush1.msra.mxu0 0.0
    %364 = vmatprep.subr.mxu0 0.0
    %365 = vmatpush1.msra.mxu0 0.0
    %366 = vmatprep.subr.mxu0 0.0
    %367 = vmatpush1.msra.mxu0 0.0
    %368 = vmatprep.subr.mxu0 0.0
    %369 = vmatpush1.msra.mxu0 0.0
    %370 = vmatprep.subr.mxu0 0.0
    %371 = vmatpush1.msra.mxu0 0.0
    %372 = vmatprep.subr.mxu0 0.0
    %373 = vmatpush1.msra.mxu0 0.0
    %374 = vmatprep.subr.mxu0 0.0
    %375 = vmatpush1.msra.mxu0 0.0
    %376 = vmatprep.subr.mxu0 0.0
    %377 = vmatpush1.msra.mxu0 0.0
    %378 = vmatprep.subr.mxu0 0.0
    %379 = vmatpush1.msra.mxu0 0.0
    %380 = vmatprep.mubr.f32.mxu0 0.0
    %381 = vmatmul.mubr.f32.gmra.mrb[0].mxu0 %v305
    %v382 = vpop.f32.mrb[0].mxu0
    %v383 = vadd.f32 0.0, %v382
    %v384 = vpop.f32.mrb[0].mxu0
    %385 = vmatprep.mubr.f32.mxu0 0.0
    %386 = vmatmul.mubr.f32.gmra.mrb[0].mxu0 %v308
    %v387 = vpop.f32.mrb[0].mxu0
    %v388 = vadd.f32 0.0, %v387
    %v389 = vpop.f32.mrb[0].mxu0
    %390 = vmatprep.mubr.f32.mxu0 0.0
    %391 = vmatmul.mubr.f32.gmra.mrb[0].mxu0 %v311
    %v392 = vpop.f32.mrb[0].mxu0
    %v393 = vadd.f32 0.0, %v392
    %v394 = vpop.f32.mrb[0].mxu0
    %395 = vmatprep.mubr.f32.mxu0 0.0
    %396 = vmatmul.mubr.f32.gmra.mrb[0].mxu0 %v314
    %v397 = vpop.f32.mrb[0].mxu0
    %v398 = vadd.f32 0.0, %v397
    %v399 = vpop.f32.mrb[0].mxu0
    %400 = vdwg.mxu0
    %s401 = scalar_lea.vmem %s2, 80
    %v402 = vld [vmem:[%s401] sm:$0xff]
    %v403 = vld [vmem:[%s401 + $0x8] sm:$0xff]
    %v404 = vld [vmem:[%s401 + $0x10] sm:$0xff]
    %v405 = vld [vmem:[%s401 + $0x18] sm:$0xff]
    %v406 = vld [vmem:[%s401 + $0x20] sm:$0xff]
    %v407 = vld [vmem:[%s401 + $0x28] sm:$0xff]
    %v408 = vld [vmem:[%s401 + $0x30] sm:$0xff]
    %v409 = vld [vmem:[%s401 + $0x38] sm:$0xff]
    %v410 = vld [vmem:[%s401 + $0x40] sm:$0x3]
    %v411 = vld [vmem:[%s401 + $0x48] sm:$0x3]
    %v413 = vsel %vm171, %v383, 0
    %v416 = vsel %vm171, %v388, 0
    %v419 = vsel %vm171, %v393, 0
    %v422 = vsel %vm171, %v398, 0
    %v425 = vsel %vm184, %v410, 0
    %v428 = vsel %vm184, %v411, 0
    %430 = vmatprep.subr.mxu0 %v403
    %431 = vmatpush1.msra.mxu0 %v402
    %432 = vmatprep.subr.mxu0 %v405
    %433 = vmatpush1.msra.mxu0 %v404
    %434 = vmatprep.subr.mxu0 %v407
    %435 = vmatpush1.msra.mxu0 %v406
    %436 = vmatprep.subr.mxu0 %v409
    %437 = vmatpush1.msra.mxu0 %v408
    %438 = vmatprep.subr.mxu0 %v428
    %439 = vmatpush1.msra.mxu0 %v425
    %440 = vmatprep.subr.mxu0 0.0
    %441 = vmatpush1.msra.mxu0 0.0
    %442 = vmatprep.subr.mxu0 0.0
    %443 = vmatpush1.msra.mxu0 0.0
    %444 = vmatprep.subr.mxu0 0.0
    %445 = vmatpush1.msra.mxu0 0.0
    %446 = vmatprep.subr.mxu0 0.0
    %447 = vmatpush1.msra.mxu0 0.0
    %448 = vmatprep.subr.mxu0 0.0
    %449 = vmatpush1.msra.mxu0 0.0
    %450 = vmatprep.subr.mxu0 0.0
    %451 = vmatpush1.msra.mxu0 0.0
    %452 = vmatprep.subr.mxu0 0.0
    %453 = vmatpush1.msra.mxu0 0.0
    %454 = vmatprep.subr.mxu0 0.0
    %455 = vmatpush1.msra.mxu0 0.0
    %456 = vmatprep.subr.mxu0 0.0
    %457 = vmatpush1.msra.mxu0 0.0
    %458 = vmatprep.subr.mxu0 0.0
    %459 = vmatpush1.msra.mxu0 0.0
    %460 = vmatprep.subr.mxu0 0.0
    %461 = vmatpush1.msra.mxu0 0.0
    %462 = vmatprep.subr.mxu0 0.0
    %463 = vmatpush1.msra.mxu0 0.0
    %464 = vmatprep.subr.mxu0 0.0
    %465 = vmatpush1.msra.mxu0 0.0
    %466 = vmatprep.subr.mxu0 0.0
    %467 = vmatpush1.msra.mxu0 0.0
    %468 = vmatprep.subr.mxu0 0.0
    %469 = vmatpush1.msra.mxu0 0.0
    %470 = vmatprep.subr.mxu0 0.0
    %471 = vmatpush1.msra.mxu0 0.0
    %472 = vmatprep.subr.mxu0 0.0
    %473 = vmatpush1.msra.mxu0 0.0
    %474 = vmatprep.subr.mxu0 0.0
    %475 = vmatpush1.msra.mxu0 0.0
    %476 = vmatprep.subr.mxu0 0.0
    %477 = vmatpush1.msra.mxu0 0.0
    %478 = vmatprep.subr.mxu0 0.0
    %479 = vmatpush1.msra.mxu0 0.0
    %480 = vmatprep.subr.mxu0 0.0
    %481 = vmatpush1.msra.mxu0 0.0
    %482 = vmatprep.subr.mxu0 0.0
    %483 = vmatpush1.msra.mxu0 0.0
    %484 = vmatprep.subr.mxu0 0.0
    %485 = vmatpush1.msra.mxu0 0.0
    %486 = vmatprep.subr.mxu0 0.0
    %487 = vmatpush1.msra.mxu0 0.0
    %488 = vmatprep.subr.mxu0 0.0
    %489 = vmatpush1.msra.mxu0 0.0
    %490 = vmatprep.subr.mxu0 0.0
    %491 = vmatpush1.msra.mxu0 0.0
    %492 = vmatprep.subr.mxu0 0.0
    %493 = vmatpush1.msra.mxu0 0.0
    %494 = vmatprep.mubr.f32.mxu0 0.0
    %495 = vmatmul.mubr.f32.gmra.mrb[0].mxu0 %v413
    %v496 = vpop.f32.mrb[0].mxu0
    %v497 = vadd.f32 0.0, %v496
    %v498 = vpop.f32.mrb[0].mxu0
    %v499 = vadd.f32 0.0, %v498
    %500 = vmatprep.mubr.f32.mxu0 0.0
    %501 = vmatmul.mubr.f32.gmra.mrb[0].mxu0 %v416
    %v502 = vpop.f32.mrb[0].mxu0
    %v503 = vadd.f32 0.0, %v502
    %v504 = vpop.f32.mrb[0].mxu0
    %v505 = vadd.f32 0.0, %v504
    %506 = vmatprep.mubr.f32.mxu0 0.0
    %507 = vmatmul.mubr.f32.gmra.mrb[0].mxu0 %v419
    %v508 = vpop.f32.mrb[0].mxu0
    %v509 = vadd.f32 0.0, %v508
    %v510 = vpop.f32.mrb[0].mxu0
    %v511 = vadd.f32 0.0, %v510
    %512 = vmatprep.mubr.f32.mxu0 0.0
    %513 = vmatmul.mubr.f32.gmra.mrb[0].mxu0 %v422
    %v514 = vpop.f32.mrb[0].mxu0
    %v515 = vadd.f32 0.0, %v514
    %v516 = vpop.f32.mrb[0].mxu0
    %v517 = vadd.f32 0.0, %v516
    %518 = vdwg.mxu0
    %v519 = vadd.f32 %v291, %v497
    %v520 = vadd.f32 %v292, %v499
    %v521 = vadd.f32 %v293, %v503
    %v522 = vadd.f32 %v294, %v505
    %v523 = vadd.f32 %v295, %v509
    %v524 = vadd.f32 %v296, %v511
    %v525 = vadd.f32 %v297, %v515
    %v526 = vadd.f32 %v298, %v517
    %s527 = scalar_lea.vmem %s1, 64
    %v528 = vld [vmem:[%s527] sm:$0xff]
    %v529 = vld [vmem:[%s527 + $0x8] sm:$0xff]
    %v530 = vld [vmem:[%s527 + $0x10] sm:$0xff]
    %v531 = vld [vmem:[%s527 + $0x18] sm:$0xf]
    %v533 = vsel %vm59, %v528, 0
    %v536 = vsel %vm59, %v529, 0
    %v539 = vsel %vm59, %v530, 0
    %v542 = vsel %vm59, %v531, 0
    %544 = vmatprep.subr.mxu0 0.0
    %545 = vmatpush1.msra.mxu0 %v45
    %546 = vmatprep.subr.mxu0 0.0
    %547 = vmatpush1.msra.mxu0 %v46
    %548 = vmatprep.subr.mxu0 0.0
    %549 = vmatpush1.msra.mxu0 %v47
    %550 = vmatprep.subr.mxu0 0.0
    %551 = vmatpush1.msra.mxu0 %v48
    %552 = vmatprep.subr.mxu0 0.0
    %553 = vmatpush1.msra.mxu0 %v49
    %554 = vmatprep.subr.mxu0 0.0
    %555 = vmatpush1.msra.mxu0 %v50
    %556 = vmatprep.subr.mxu0 0.0
    %557 = vmatpush1.msra.mxu0 %v51
    %558 = vmatprep.subr.mxu0 0.0
    %559 = vmatpush1.msra.mxu0 %v52
    %560 = vmatprep.subr.mxu0 0.0
    %561 = vmatpush1.msra.mxu0 %v74
    %562 = vmatprep.subr.mxu0 0.0
    %563 = vmatpush1.msra.mxu0 0.0
    %564 = vmatprep.subr.mxu0 0.0
    %565 = vmatpush1.msra.mxu0 0.0
    %566 = vmatprep.subr.mxu0 0.0
    %567 = vmatpush1.msra.mxu0 0.0
    %568 = vmatprep.subr.mxu0 0.0
    %569 = vmatpush1.msra.mxu0 0.0
    %570 = vmatprep.subr.mxu0 0.0
    %571 = vmatpush1.msra.mxu0 0.0
    %572 = vmatprep.subr.mxu0 0.0
    %573 = vmatpush1.msra.mxu0 0.0
    %574 = vmatprep.subr.mxu0 0.0
    %575 = vmatpush1.msra.mxu0 0.0
    %576 = vmatprep.subr.mxu0 0.0
    %577 = vmatpush1.msra.mxu0 0.0
    %578 = vmatprep.subr.mxu0 0.0
    %579 = vmatpush1.msra.mxu0 0.0
    %580 = vmatprep.subr.mxu0 0.0
    %581 = vmatpush1.msra.mxu0 0.0
    %582 = vmatprep.subr.mxu0 0.0
    %583 = vmatpush1.msra.mxu0 0.0
    %584 = vmatprep.subr.mxu0 0.0
    %585 = vmatpush1.msra.mxu0 0.0
    %586 = vmatprep.subr.mxu0 0.0
    %587 = vmatpush1.msra.mxu0 0.0
    %588 = vmatprep.subr.mxu0 0.0
    %589 = vmatpush1.msra.mxu0 0.0
    %590 = vmatprep.subr.mxu0 0.0
    %591 = vmatpush1.msra.mxu0 0.0
    %592 = vmatprep.subr.mxu0 0.0
    %593 = vmatpush1.msra.mxu0 0.0
    %594 = vmatprep.subr.mxu0 0.0
    %595 = vmatpush1.msra.mxu0 0.0
    %596 = vmatprep.subr.mxu0 0.0
    %597 = vmatpush1.msra.mxu0 0.0
    %598 = vmatprep.subr.mxu0 0.0
    %599 = vmatpush1.msra.mxu0 0.0
    %600 = vmatprep.subr.mxu0 0.0
    %601 = vmatpush1.msra.mxu0 0.0
    %602 = vmatprep.subr.mxu0 0.0
    %603 = vmatpush1.msra.mxu0 0.0
    %604 = vmatprep.subr.mxu0 0.0
    %605 = vmatpush1.msra.mxu0 0.0
    %606 = vmatprep.subr.mxu0 0.0
    %607 = vmatpush1.msra.mxu0 0.0
    %608 = vmatprep.mubr.f32.mxu0 0.0
    %609 = vmatmul.mubr.f32.gmra.mrb[0].mxu0 %v533
    %v610 = vpop.f32.mrb[0].mxu0
    %v611 = vadd.f32 0.0, %v610
    %v612 = vpop.f32.mrb[0].mxu0
    %613 = vmatprep.mubr.f32.mxu0 0.0
    %614 = vmatmul.mubr.f32.gmra.mrb[0].mxu0 %v536
    %v615 = vpop.f32.mrb[0].mxu0
    %v616 = vadd.f32 0.0, %v615
    %v617 = vpop.f32.mrb[0].mxu0
    %618 = vmatprep.mubr.f32.mxu0 0.0
    %619 = vmatmul.mubr.f32.gmra.mrb[0].mxu0 %v539
    %v620 = vpop.f32.mrb[0].mxu0
    %v621 = vadd.f32 0.0, %v620
    %v622 = vpop.f32.mrb[0].mxu0
    %623 = vmatprep.mubr.f32.mxu0 0.0
    %624 = vmatmul.mubr.f32.gmra.mrb[0].mxu0 %v542
    %v625 = vpop.f32.mrb[0].mxu0
    %v626 = vadd.f32 0.0, %v625
    %v627 = vpop.f32.mrb[0].mxu0
    %628 = vdwg.mxu0
    %s629 = scalar_lea.vmem %s2, 160
    %v630 = vld [vmem:[%s629] sm:$0xff]
    %v631 = vld [vmem:[%s629 + $0x8] sm:$0xff]
    %v632 = vld [vmem:[%s629 + $0x10] sm:$0xff]
    %v633 = vld [vmem:[%s629 + $0x18] sm:$0xff]
    %v634 = vld [vmem:[%s629 + $0x20] sm:$0xff]
    %v635 = vld [vmem:[%s629 + $0x28] sm:$0xff]
    %v636 = vld [vmem:[%s629 + $0x30] sm:$0xff]
    %v637 = vld [vmem:[%s629 + $0x38] sm:$0xff]
    %v638 = vld [vmem:[%s629 + $0x40] sm:$0x3]
    %v639 = vld [vmem:[%s629 + $0x48] sm:$0x3]
    %v641 = vsel %vm171, %v611, 0
    %v644 = vsel %vm171, %v616, 0
    %v647 = vsel %vm171, %v621, 0
    %v650 = vsel %vm171, %v626, 0
    %v653 = vsel %vm184, %v638, 0
    %v656 = vsel %vm184, %v639, 0
    %658 = vmatprep.subr.mxu0 %v631
    %659 = vmatpush1.msra.mxu0 %v630
    %660 = vmatprep.subr.mxu0 %v633
    %661 = vmatpush1.msra.mxu0 %v632
    %662 = vmatprep.subr.mxu0 %v635
    %663 = vmatpush1.msra.mxu0 %v634
    %664 = vmatprep.subr.mxu0 %v637
    %665 = vmatpush1.msra.mxu0 %v636
    %666 = vmatprep.subr.mxu0 %v656
    %667 = vmatpush1.msra.mxu0 %v653
    %668 = vmatprep.subr.mxu0 0.0
    %669 = vmatpush1.msra.mxu0 0.0
    %670 = vmatprep.subr.mxu0 0.0
    %671 = vmatpush1.msra.mxu0 0.0
    %672 = vmatprep.subr.mxu0 0.0
    %673 = vmatpush1.msra.mxu0 0.0
    %674 = vmatprep.subr.mxu0 0.0
    %675 = vmatpush1.msra.mxu0 0.0
    %676 = vmatprep.subr.mxu0 0.0
    %677 = vmatpush1.msra.mxu0 0.0
    %678 = vmatprep.subr.mxu0 0.0
    %679 = vmatpush1.msra.mxu0 0.0
    %680 = vmatprep.subr.mxu0 0.0
    %681 = vmatpush1.msra.mxu0 0.0
    %682 = vmatprep.subr.mxu0 0.0
    %683 = vmatpush1.msra.mxu0 0.0
    %684 = vmatprep.subr.mxu0 0.0
    %685 = vmatpush1.msra.mxu0 0.0
    %686 = vmatprep.subr.mxu0 0.0
    %687 = vmatpush1.msra.mxu0 0.0
    %688 = vmatprep.subr.mxu0 0.0
    %689 = vmatpush1.msra.mxu0 0.0
    %690 = vmatprep.subr.mxu0 0.0
    %691 = vmatpush1.msra.mxu0 0.0
    %692 = vmatprep.subr.mxu0 0.0
    %693 = vmatpush1.msra.mxu0 0.0
    %694 = vmatprep.subr.mxu0 0.0
    %695 = vmatpush1.msra.mxu0 0.0
    %696 = vmatprep.subr.mxu0 0.0
    %697 = vmatpush1.msra.mxu0 0.0
    %698 = vmatprep.subr.mxu0 0.0
    %699 = vmatpush1.msra.mxu0 0.0
    %700 = vmatprep.subr.mxu0 0.0
    %701 = vmatpush1.msra.mxu0 0.0
    %702 = vmatprep.subr.mxu0 0.0
    %703 = vmatpush1.msra.mxu0 0.0
    %704 = vmatprep.subr.mxu0 0.0
    %705 = vmatpush1.msra.mxu0 0.0
    %706 = vmatprep.subr.mxu0 0.0
    %707 = vmatpush1.msra.mxu0 0.0
    %708 = vmatprep.subr.mxu0 0.0
    %709 = vmatpush1.msra.mxu0 0.0
    %710 = vmatprep.subr.mxu0 0.0
    %711 = vmatpush1.msra.mxu0 0.0
    %712 = vmatprep.subr.mxu0 0.0
    %713 = vmatpush1.msra.mxu0 0.0
    %714 = vmatprep.subr.mxu0 0.0
    %715 = vmatpush1.msra.mxu0 0.0
    %716 = vmatprep.subr.mxu0 0.0
    %717 = vmatpush1.msra.mxu0 0.0
    %718 = vmatprep.subr.mxu0 0.0
    %719 = vmatpush1.msra.mxu0 0.0
    %720 = vmatprep.subr.mxu0 0.0
    %721 = vmatpush1.msra.mxu0 0.0
    %722 = vmatprep.mubr.f32.mxu0 0.0
    %723 = vmatmul.mubr.f32.gmra.mrb[0].mxu0 %v641
    %v724 = vpop.f32.mrb[0].mxu0
    %v725 = vadd.f32 0.0, %v724
    %v726 = vpop.f32.mrb[0].mxu0
    %v727 = vadd.f32 0.0, %v726
    %728 = vmatprep.mubr.f32.mxu0 0.0
    %729 = vmatmul.mubr.f32.gmra.mrb[0].mxu0 %v644
    %v730 = vpop.f32.mrb[0].mxu0
    %v731 = vadd.f32 0.0, %v730
    %v732 = vpop.f32.mrb[0].mxu0
    %v733 = vadd.f32 0.0, %v732
    %734 = vmatprep.mubr.f32.mxu0 0.0
    %735 = vmatmul.mubr.f32.gmra.mrb[0].mxu0 %v647
    %v736 = vpop.f32.mrb[0].mxu0
    %v737 = vadd.f32 0.0, %v736
    %v738 = vpop.f32.mrb[0].mxu0
    %v739 = vadd.f32 0.0, %v738
    %740 = vmatprep.mubr.f32.mxu0 0.0
    %741 = vmatmul.mubr.f32.gmra.mrb[0].mxu0 %v650
    %v742 = vpop.f32.mrb[0].mxu0
    %v743 = vadd.f32 0.0, %v742
    %v744 = vpop.f32.mrb[0].mxu0
    %v745 = vadd.f32 0.0, %v744
    %746 = vdwg.mxu0
    %v747 = vadd.f32 %v519, %v725
    %v748 = vadd.f32 %v520, %v727
    %v749 = vadd.f32 %v521, %v731
    %v750 = vadd.f32 %v522, %v733
    %v751 = vadd.f32 %v523, %v737
    %v752 = vadd.f32 %v524, %v739
    %v753 = vadd.f32 %v525, %v743
    %v754 = vadd.f32 %v526, %v745
    %s755 = scalar_lea.vmem %s1, 96
    %v756 = vld [vmem:[%s755] sm:$0xff]
    %v757 = vld [vmem:[%s755 + $0x8] sm:$0xff]
    %v758 = vld [vmem:[%s755 + $0x10] sm:$0xff]
    %v759 = vld [vmem:[%s755 + $0x18] sm:$0xf]
    %v761 = vsel %vm59, %v756, 0
    %v764 = vsel %vm59, %v757, 0
    %v767 = vsel %vm59, %v758, 0
    %v770 = vsel %vm59, %v759, 0
    %772 = vmatprep.subr.mxu0 0.0
    %773 = vmatpush1.msra.mxu0 %v45
    %774 = vmatprep.subr.mxu0 0.0
    %775 = vmatpush1.msra.mxu0 %v46
    %776 = vmatprep.subr.mxu0 0.0
    %777 = vmatpush1.msra.mxu0 %v47
    %778 = vmatprep.subr.mxu0 0.0
    %779 = vmatpush1.msra.mxu0 %v48
    %780 = vmatprep.subr.mxu0 0.0
    %781 = vmatpush1.msra.mxu0 %v49
    %782 = vmatprep.subr.mxu0 0.0
    %783 = vmatpush1.msra.mxu0 %v50
    %784 = vmatprep.subr.mxu0 0.0
    %785 = vmatpush1.msra.mxu0 %v51
    %786 = vmatprep.subr.mxu0 0.0
    %787 = vmatpush1.msra.mxu0 %v52
    %788 = vmatprep.subr.mxu0 0.0
    %789 = vmatpush1.msra.mxu0 %v74
    %790 = vmatprep.subr.mxu0 0.0
    %791 = vmatpush1.msra.mxu0 0.0
    %792 = vmatprep.subr.mxu0 0.0
    %793 = vmatpush1.msra.mxu0 0.0
    %794 = vmatprep.subr.mxu0 0.0
    %795 = vmatpush1.msra.mxu0 0.0
    %796 = vmatprep.subr.mxu0 0.0
    %797 = vmatpush1.msra.mxu0 0.0
    %798 = vmatprep.subr.mxu0 0.0
    %799 = vmatpush1.msra.mxu0 0.0
    %800 = vmatprep.subr.mxu0 0.0
    %801 = vmatpush1.msra.mxu0 0.0
    %802 = vmatprep.subr.mxu0 0.0
    %803 = vmatpush1.msra.mxu0 0.0
    %804 = vmatprep.subr.mxu0 0.0
    %805 = vmatpush1.msra.mxu0 0.0
    %806 = vmatprep.subr.mxu0 0.0
    %807 = vmatpush1.msra.mxu0 0.0
    %808 = vmatprep.subr.mxu0 0.0
    %809 = vmatpush1.msra.mxu0 0.0
    %810 = vmatprep.subr.mxu0 0.0
    %811 = vmatpush1.msra.mxu0 0.0
    %812 = vmatprep.subr.mxu0 0.0
    %813 = vmatpush1.msra.mxu0 0.0
    %814 = vmatprep.subr.mxu0 0.0
    %815 = vmatpush1.msra.mxu0 0.0
    %816 = vmatprep.subr.mxu0 0.0
    %817 = vmatpush1.msra.mxu0 0.0
    %818 = vmatprep.subr.mxu0 0.0
    %819 = vmatpush1.msra.mxu0 0.0
    %820 = vmatprep.subr.mxu0 0.0
    %821 = vmatpush1.msra.mxu0 0.0
    %822 = vmatprep.subr.mxu0 0.0
    %823 = vmatpush1.msra.mxu0 0.0
    %824 = vmatprep.subr.mxu0 0.0
    %825 = vmatpush1.msra.mxu0 0.0
    %826 = vmatprep.subr.mxu0 0.0
    %827 = vmatpush1.msra.mxu0 0.0
    %828 = vmatprep.subr.mxu0 0.0
    %829 = vmatpush1.msra.mxu0 0.0
    %830 = vmatprep.subr.mxu0 0.0
    %831 = vmatpush1.msra.mxu0 0.0
    %832 = vmatprep.subr.mxu0 0.0
    %833 = vmatpush1.msra.mxu0 0.0
    %834 = vmatprep.subr.mxu0 0.0
    %835 = vmatpush1.msra.mxu0 0.0
    %836 = vmatprep.mubr.f32.mxu0 0.0
    %837 = vmatmul.mubr.f32.gmra.mrb[0].mxu0 %v761
    %v838 = vpop.f32.mrb[0].mxu0
    %v839 = vadd.f32 0.0, %v838
    %v840 = vpop.f32.mrb[0].mxu0
    %841 = vmatprep.mubr.f32.mxu0 0.0
    %842 = vmatmul.mubr.f32.gmra.mrb[0].mxu0 %v764
    %v843 = vpop.f32.mrb[0].mxu0
    %v844 = vadd.f32 0.0, %v843
    %v845 = vpop.f32.mrb[0].mxu0
    %846 = vmatprep.mubr.f32.mxu0 0.0
    %847 = vmatmul.mubr.f32.gmra.mrb[0].mxu0 %v767
    %v848 = vpop.f32.mrb[0].mxu0
    %v849 = vadd.f32 0.0, %v848
    %v850 = vpop.f32.mrb[0].mxu0
    %851 = vmatprep.mubr.f32.mxu0 0.0
    %852 = vmatmul.mubr.f32.gmra.mrb[0].mxu0 %v770
    %v853 = vpop.f32.mrb[0].mxu0
    %v854 = vadd.f32 0.0, %v853
    %v855 = vpop.f32.mrb[0].mxu0
    %856 = vdwg.mxu0
    %s857 = scalar_lea.vmem %s2, 240
    %v858 = vld [vmem:[%s857] sm:$0xff]
    %v859 = vld [vmem:[%s857 + $0x8] sm:$0xff]
    %v860 = vld [vmem:[%s857 + $0x10] sm:$0xff]
    %v861 = vld [vmem:[%s857 + $0x18] sm:$0xff]
    %v862 = vld [vmem:[%s857 + $0x20] sm:$0xff]
    %v863 = vld [vmem:[%s857 + $0x28] sm:$0xff]
    %v864 = vld [vmem:[%s857 + $0x30] sm:$0xff]
    %v865 = vld [vmem:[%s857 + $0x38] sm:$0xff]
    %v866 = vld [vmem:[%s857 + $0x40] sm:$0x3]
    %v867 = vld [vmem:[%s857 + $0x48] sm:$0x3]
    %v869 = vsel %vm171, %v839, 0
    %v872 = vsel %vm171, %v844, 0
    %v875 = vsel %vm171, %v849, 0
    %v878 = vsel %vm171, %v854, 0
    %v881 = vsel %vm184, %v866, 0
    %v884 = vsel %vm184, %v867, 0
    %886 = vmatprep.subr.mxu0 %v859
    %887 = vmatpush1.msra.mxu0 %v858
    %888 = vmatprep.subr.mxu0 %v861
    %889 = vmatpush1.msra.mxu0 %v860
    %890 = vmatprep.subr.mxu0 %v863
    %891 = vmatpush1.msra.mxu0 %v862
    %892 = vmatprep.subr.mxu0 %v865
    %893 = vmatpush1.msra.mxu0 %v864
    %894 = vmatprep.subr.mxu0 %v884
    %895 = vmatpush1.msra.mxu0 %v881
    %896 = vmatprep.subr.mxu0 0.0
    %897 = vmatpush1.msra.mxu0 0.0
    %898 = vmatprep.subr.mxu0 0.0
    %899 = vmatpush1.msra.mxu0 0.0
    %900 = vmatprep.subr.mxu0 0.0
    %901 = vmatpush1.msra.mxu0 0.0
    %902 = vmatprep.subr.mxu0 0.0
    %903 = vmatpush1.msra.mxu0 0.0
    %904 = vmatprep.subr.mxu0 0.0
    %905 = vmatpush1.msra.mxu0 0.0
    %906 = vmatprep.subr.mxu0 0.0
    %907 = vmatpush1.msra.mxu0 0.0
    %908 = vmatprep.subr.mxu0 0.0
    %909 = vmatpush1.msra.mxu0 0.0
    %910 = vmatprep.subr.mxu0 0.0
    %911 = vmatpush1.msra.mxu0 0.0
    %912 = vmatprep.subr.mxu0 0.0
    %913 = vmatpush1.msra.mxu0 0.0
    %914 = vmatprep.subr.mxu0 0.0
    %915 = vmatpush1.msra.mxu0 0.0
    %916 = vmatprep.subr.mxu0 0.0
    %917 = vmatpush1.msra.mxu0 0.0
    %918 = vmatprep.subr.mxu0 0.0
    %919 = vmatpush1.msra.mxu0 0.0
    %920 = vmatprep.subr.mxu0 0.0
    %921 = vmatpush1.msra.mxu0 0.0
    %922 = vmatprep.subr.mxu0 0.0
    %923 = vmatpush1.msra.mxu0 0.0
    %924 = vmatprep.subr.mxu0 0.0
    %925 = vmatpush1.msra.mxu0 0.0
    %926 = vmatprep.subr.mxu0 0.0
    %927 = vmatpush1.msra.mxu0 0.0
    %928 = vmatprep.subr.mxu0 0.0
    %929 = vmatpush1.msra.mxu0 0.0
    %930 = vmatprep.subr.mxu0 0.0
    %931 = vmatpush1.msra.mxu0 0.0
    %932 = vmatprep.subr.mxu0 0.0
    %933 = vmatpush1.msra.mxu0 0.0
    %934 = vmatprep.subr.mxu0 0.0
    %935 = vmatpush1.msra.mxu0 0.0
    %936 = vmatprep.subr.mxu0 0.0
    %937 = vmatpush1.msra.mxu0 0.0
    %938 = vmatprep.subr.mxu0 0.0
    %939 = vmatpush1.msra.mxu0 0.0
    %940 = vmatprep.subr.mxu0 0.0
    %941 = vmatpush1.msra.mxu0 0.0
    %942 = vmatprep.subr.mxu0 0.0
    %943 = vmatpush1.msra.mxu0 0.0
    %944 = vmatprep.subr.mxu0 0.0
    %945 = vmatpush1.msra.mxu0 0.0
    %946 = vmatprep.subr.mxu0 0.0
    %947 = vmatpush1.msra.mxu0 0.0
    %948 = vmatprep.subr.mxu0 0.0
    %949 = vmatpush1.msra.mxu0 0.0
    %950 = vmatprep.mubr.f32.mxu0 0.0
    %951 = vmatmul.mubr.f32.gmra.mrb[0].mxu0 %v869
    %v952 = vpop.f32.mrb[0].mxu0
    %v953 = vadd.f32 0.0, %v952
    %v954 = vpop.f32.mrb[0].mxu0
    %v955 = vadd.f32 0.0, %v954
    %956 = vmatprep.mubr.f32.mxu0 0.0
    %957 = vmatmul.mubr.f32.gmra.mrb[0].mxu0 %v872
    %v958 = vpop.f32.mrb[0].mxu0
    %v959 = vadd.f32 0.0, %v958
    %v960 = vpop.f32.mrb[0].mxu0
    %v961 = vadd.f32 0.0, %v960
    %962 = vmatprep.mubr.f32.mxu0 0.0
    %963 = vmatmul.mubr.f32.gmra.mrb[0].mxu0 %v875
    %v964 = vpop.f32.mrb[0].mxu0
    %v965 = vadd.f32 0.0, %v964
    %v966 = vpop.f32.mrb[0].mxu0
    %v967 = vadd.f32 0.0, %v966
    %968 = vmatprep.mubr.f32.mxu0 0.0
    %969 = vmatmul.mubr.f32.gmra.mrb[0].mxu0 %v878
    %v970 = vpop.f32.mrb[0].mxu0
    %v971 = vadd.f32 0.0, %v970
    %v972 = vpop.f32.mrb[0].mxu0
    %v973 = vadd.f32 0.0, %v972
    %974 = vdwg.mxu0
    %v975 = vadd.f32 %v747, %v953
    %v976 = vadd.f32 %v748, %v955
    %v977 = vadd.f32 %v749, %v959
    %v978 = vadd.f32 %v750, %v961
    %v979 = vadd.f32 %v751, %v965
    %v980 = vadd.f32 %v752, %v967
    %v981 = vadd.f32 %v753, %v971
    %v982 = vadd.f32 %v754, %v973
    %s983 = scalar_lea.vmem %s1, 128
    %v984 = vld [vmem:[%s983] sm:$0xff]
    %v985 = vld [vmem:[%s983 + $0x8] sm:$0xff]
    %v986 = vld [vmem:[%s983 + $0x10] sm:$0xff]
    %v987 = vld [vmem:[%s983 + $0x18] sm:$0xf]
    %v989 = vsel %vm59, %v984, 0
    %v992 = vsel %vm59, %v985, 0
    %v995 = vsel %vm59, %v986, 0
    %v998 = vsel %vm59, %v987, 0
    %1000 = vmatprep.subr.mxu0 0.0
    %1001 = vmatpush1.msra.mxu0 %v45
    %1002 = vmatprep.subr.mxu0 0.0
    %1003 = vmatpush1.msra.mxu0 %v46
    %1004 = vmatprep.subr.mxu0 0.0
    %1005 = vmatpush1.msra.mxu0 %v47
    %1006 = vmatprep.subr.mxu0 0.0
    %1007 = vmatpush1.msra.mxu0 %v48
    %1008 = vmatprep.subr.mxu0 0.0
    %1009 = vmatpush1.msra.mxu0 %v49
    %1010 = vmatprep.subr.mxu0 0.0
    %1011 = vmatpush1.msra.mxu0 %v50
    %1012 = vmatprep.subr.mxu0 0.0
    %1013 = vmatpush1.msra.mxu0 %v51
    %1014 = vmatprep.subr.mxu0 0.0
    %1015 = vmatpush1.msra.mxu0 %v52
    %1016 = vmatprep.subr.mxu0 0.0
    %1017 = vmatpush1.msra.mxu0 %v74
    %1018 = vmatprep.subr.mxu0 0.0
    %1019 = vmatpush1.msra.mxu0 0.0
    %1020 = vmatprep.subr.mxu0 0.0
    %1021 = vmatpush1.msra.mxu0 0.0
    %1022 = vmatprep.subr.mxu0 0.0
    %1023 = vmatpush1.msra.mxu0 0.0
    %1024 = vmatprep.subr.mxu0 0.0
    %1025 = vmatpush1.msra.mxu0 0.0
    %1026 = vmatprep.subr.mxu0 0.0
    %1027 = vmatpush1.msra.mxu0 0.0
    %1028 = vmatprep.subr.mxu0 0.0
    %1029 = vmatpush1.msra.mxu0 0.0
    %1030 = vmatprep.subr.mxu0 0.0
    %1031 = vmatpush1.msra.mxu0 0.0
    %1032 = vmatprep.subr.mxu0 0.0
    %1033 = vmatpush1.msra.mxu0 0.0
    %1034 = vmatprep.subr.mxu0 0.0
    %1035 = vmatpush1.msra.mxu0 0.0
    %1036 = vmatprep.subr.mxu0 0.0
    %1037 = vmatpush1.msra.mxu0 0.0
    %1038 = vmatprep.subr.mxu0 0.0
    %1039 = vmatpush1.msra.mxu0 0.0
    %1040 = vmatprep.subr.mxu0 0.0
    %1041 = vmatpush1.msra.mxu0 0.0
    %1042 = vmatprep.subr.mxu0 0.0
    %1043 = vmatpush1.msra.mxu0 0.0
    %1044 = vmatprep.subr.mxu0 0.0
    %1045 = vmatpush1.msra.mxu0 0.0
    %1046 = vmatprep.subr.mxu0 0.0
    %1047 = vmatpush1.msra.mxu0 0.0
    %1048 = vmatprep.subr.mxu0 0.0
    %1049 = vmatpush1.msra.mxu0 0.0
    %1050 = vmatprep.subr.mxu0 0.0
    %1051 = vmatpush1.msra.mxu0 0.0
    %1052 = vmatprep.subr.mxu0 0.0
    %1053 = vmatpush1.msra.mxu0 0.0
    %1054 = vmatprep.subr.mxu0 0.0
    %1055 = vmatpush1.msra.mxu0 0.0
    %1056 = vmatprep.subr.mxu0 0.0
    %1057 = vmatpush1.msra.mxu0 0.0
    %1058 = vmatprep.subr.mxu0 0.0
    %1059 = vmatpush1.msra.mxu0 0.0
    %1060 = vmatprep.subr.mxu0 0.0
    %1061 = vmatpush1.msra.mxu0 0.0
    %1062 = vmatprep.subr.mxu0 0.0
    %1063 = vmatpush1.msra.mxu0 0.0
    %1064 = vmatprep.mubr.f32.mxu0 0.0
    %1065 = vmatmul.mubr.f32.gmra.mrb[0].mxu0 %v989
    %v1066 = vpop.f32.mrb[0].mxu0
    %v1067 = vadd.f32 0.0, %v1066
    %v1068 = vpop.f32.mrb[0].mxu0
    %1069 = vmatprep.mubr.f32.mxu0 0.0
    %1070 = vmatmul.mubr.f32.gmra.mrb[0].mxu0 %v992
    %v1071 = vpop.f32.mrb[0].mxu0
    %v1072 = vadd.f32 0.0, %v1071
    %v1073 = vpop.f32.mrb[0].mxu0
    %1074 = vmatprep.mubr.f32.mxu0 0.0
    %1075 = vmatmul.mubr.f32.gmra.mrb[0].mxu0 %v995
    %v1076 = vpop.f32.mrb[0].mxu0
    %v1077 = vadd.f32 0.0, %v1076
    %v1078 = vpop.f32.mrb[0].mxu0
    %1079 = vmatprep.mubr.f32.mxu0 0.0
    %1080 = vmatmul.mubr.f32.gmra.mrb[0].mxu0 %v998
    %v1081 = vpop.f32.mrb[0].mxu0
    %v1082 = vadd.f32 0.0, %v1081
    %v1083 = vpop.f32.mrb[0].mxu0
    %1084 = vdwg.mxu0
    %s1085 = scalar_lea.vmem %s2, 320
    %v1086 = vld [vmem:[%s1085] sm:$0xff]
    %v1087 = vld [vmem:[%s1085 + $0x8] sm:$0xff]
    %v1088 = vld [vmem:[%s1085 + $0x10] sm:$0xff]
    %v1089 = vld [vmem:[%s1085 + $0x18] sm:$0xff]
    %v1090 = vld [vmem:[%s1085 + $0x20] sm:$0xff]
    %v1091 = vld [vmem:[%s1085 + $0x28] sm:$0xff]
    %v1092 = vld [vmem:[%s1085 + $0x30] sm:$0xff]
    %v1093 = vld [vmem:[%s1085 + $0x38] sm:$0xff]
    %v1094 = vld [vmem:[%s1085 + $0x40] sm:$0x3]
    %v1095 = vld [vmem:[%s1085 + $0x48] sm:$0x3]
    %v1097 = vsel %vm171, %v1067, 0
    %v1100 = vsel %vm171, %v1072, 0
    %v1103 = vsel %vm171, %v1077, 0
    %v1106 = vsel %vm171, %v1082, 0
    %v1109 = vsel %vm184, %v1094, 0
    %v1112 = vsel %vm184, %v1095, 0
    %1114 = vmatprep.subr.mxu0 %v1087
    %1115 = vmatpush1.msra.mxu0 %v1086
    %1116 = vmatprep.subr.mxu0 %v1089
    %1117 = vmatpush1.msra.mxu0 %v1088
    %1118 = vmatprep.subr.mxu0 %v1091
    %1119 = vmatpush1.msra.mxu0 %v1090
    %1120 = vmatprep.subr.mxu0 %v1093
    %1121 = vmatpush1.msra.mxu0 %v1092
    %1122 = vmatprep.subr.mxu0 %v1112
    %1123 = vmatpush1.msra.mxu0 %v1109
    %1124 = vmatprep.subr.mxu0 0.0
    %1125 = vmatpush1.msra.mxu0 0.0
    %1126 = vmatprep.subr.mxu0 0.0
    %1127 = vmatpush1.msra.mxu0 0.0
    %1128 = vmatprep.subr.mxu0 0.0
    %1129 = vmatpush1.msra.mxu0 0.0
    %1130 = vmatprep.subr.mxu0 0.0
    %1131 = vmatpush1.msra.mxu0 0.0
    %1132 = vmatprep.subr.mxu0 0.0
    %1133 = vmatpush1.msra.mxu0 0.0
    %1134 = vmatprep.subr.mxu0 0.0
    %1135 = vmatpush1.msra.mxu0 0.0
    %1136 = vmatprep.subr.mxu0 0.0
    %1137 = vmatpush1.msra.mxu0 0.0
    %1138 = vmatprep.subr.mxu0 0.0
    %1139 = vmatpush1.msra.mxu0 0.0
    %1140 = vmatprep.subr.mxu0 0.0
    %1141 = vmatpush1.msra.mxu0 0.0
    %1142 = vmatprep.subr.mxu0 0.0
    %1143 = vmatpush1.msra.mxu0 0.0
    %1144 = vmatprep.subr.mxu0 0.0
    %1145 = vmatpush1.msra.mxu0 0.0
    %1146 = vmatprep.subr.mxu0 0.0
    %1147 = vmatpush1.msra.mxu0 0.0
    %1148 = vmatprep.subr.mxu0 0.0
    %1149 = vmatpush1.msra.mxu0 0.0
    %1150 = vmatprep.subr.mxu0 0.0
    %1151 = vmatpush1.msra.mxu0 0.0
    %1152 = vmatprep.subr.mxu0 0.0
    %1153 = vmatpush1.msra.mxu0 0.0
    %1154 = vmatprep.subr.mxu0 0.0
    %1155 = vmatpush1.msra.mxu0 0.0
    %1156 = vmatprep.subr.mxu0 0.0
    %1157 = vmatpush1.msra.mxu0 0.0
    %1158 = vmatprep.subr.mxu0 0.0
    %1159 = vmatpush1.msra.mxu0 0.0
    %1160 = vmatprep.subr.mxu0 0.0
    %1161 = vmatpush1.msra.mxu0 0.0
    %1162 = vmatprep.subr.mxu0 0.0
    %1163 = vmatpush1.msra.mxu0 0.0
    %1164 = vmatprep.subr.mxu0 0.0
    %1165 = vmatpush1.msra.mxu0 0.0
    %1166 = vmatprep.subr.mxu0 0.0
    %1167 = vmatpush1.msra.mxu0 0.0
    %1168 = vmatprep.subr.mxu0 0.0
    %1169 = vmatpush1.msra.mxu0 0.0
    %1170 = vmatprep.subr.mxu0 0.0
    %1171 = vmatpush1.msra.mxu0 0.0
    %1172 = vmatprep.subr.mxu0 0.0
    %1173 = vmatpush1.msra.mxu0 0.0
    %1174 = vmatprep.subr.mxu0 0.0
    %1175 = vmatpush1.msra.mxu0 0.0
    %1176 = vmatprep.subr.mxu0 0.0
    %1177 = vmatpush1.msra.mxu0 0.0
    %1178 = vmatprep.mubr.f32.mxu0 0.0
    %1179 = vmatmul.mubr.f32.gmra.mrb[0].mxu0 %v1097
    %v1180 = vpop.f32.mrb[0].mxu0
    %v1181 = vadd.f32 0.0, %v1180
    %v1182 = vpop.f32.mrb[0].mxu0
    %v1183 = vadd.f32 0.0, %v1182
    %1184 = vmatprep.mubr.f32.mxu0 0.0
    %1185 = vmatmul.mubr.f32.gmra.mrb[0].mxu0 %v1100
    %v1186 = vpop.f32.mrb[0].mxu0
    %v1187 = vadd.f32 0.0, %v1186
    %v1188 = vpop.f32.mrb[0].mxu0
    %v1189 = vadd.f32 0.0, %v1188
    %1190 = vmatprep.mubr.f32.mxu0 0.0
    %1191 = vmatmul.mubr.f32.gmra.mrb[0].mxu0 %v1103
    %v1192 = vpop.f32.mrb[0].mxu0
    %v1193 = vadd.f32 0.0, %v1192
    %v1194 = vpop.f32.mrb[0].mxu0
    %v1195 = vadd.f32 0.0, %v1194
    %1196 = vmatprep.mubr.f32.mxu0 0.0
    %1197 = vmatmul.mubr.f32.gmra.mrb[0].mxu0 %v1106
    %v1198 = vpop.f32.mrb[0].mxu0
    %v1199 = vadd.f32 0.0, %v1198
    %v1200 = vpop.f32.mrb[0].mxu0
    %v1201 = vadd.f32 0.0, %v1200
    %1202 = vdwg.mxu0
    %v1203 = vadd.f32 %v975, %v1181
    %v1204 = vadd.f32 %v976, %v1183
    %v1205 = vadd.f32 %v977, %v1187
    %v1206 = vadd.f32 %v978, %v1189
    %v1207 = vadd.f32 %v979, %v1193
    %v1208 = vadd.f32 %v980, %v1195
    %v1209 = vadd.f32 %v981, %v1199
    %v1210 = vadd.f32 %v982, %v1201
    %s1211 = scalar_lea.vmem %s1, 160
    %v1212 = vld [vmem:[%s1211] sm:$0xff]
    %v1213 = vld [vmem:[%s1211 + $0x8] sm:$0xff]
    %v1214 = vld [vmem:[%s1211 + $0x10] sm:$0xff]
    %v1215 = vld [vmem:[%s1211 + $0x18] sm:$0xf]
    %v1217 = vsel %vm59, %v1212, 0
    %v1220 = vsel %vm59, %v1213, 0
    %v1223 = vsel %vm59, %v1214, 0
    %v1226 = vsel %vm59, %v1215, 0
    %1228 = vmatprep.subr.mxu0 0.0
    %1229 = vmatpush1.msra.mxu0 %v45
    %1230 = vmatprep.subr.mxu0 0.0
    %1231 = vmatpush1.msra.mxu0 %v46
    %1232 = vmatprep.subr.mxu0 0.0
    %1233 = vmatpush1.msra.mxu0 %v47
    %1234 = vmatprep.subr.mxu0 0.0
    %1235 = vmatpush1.msra.mxu0 %v48
    %1236 = vmatprep.subr.mxu0 0.0
    %1237 = vmatpush1.msra.mxu0 %v49
    %1238 = vmatprep.subr.mxu0 0.0
    %1239 = vmatpush1.msra.mxu0 %v50
    %1240 = vmatprep.subr.mxu0 0.0
    %1241 = vmatpush1.msra.mxu0 %v51
    %1242 = vmatprep.subr.mxu0 0.0
    %1243 = vmatpush1.msra.mxu0 %v52
    %1244 = vmatprep.subr.mxu0 0.0
    %1245 = vmatpush1.msra.mxu0 %v74
    %1246 = vmatprep.subr.mxu0 0.0
    %1247 = vmatpush1.msra.mxu0 0.0
    %1248 = vmatprep.subr.mxu0 0.0
    %1249 = vmatpush1.msra.mxu0 0.0
    %1250 = vmatprep.subr.mxu0 0.0
    %1251 = vmatpush1.msra.mxu0 0.0
    %1252 = vmatprep.subr.mxu0 0.0
    %1253 = vmatpush1.msra.mxu0 0.0
    %1254 = vmatprep.subr.mxu0 0.0
    %1255 = vmatpush1.msra.mxu0 0.0
    %1256 = vmatprep.subr.mxu0 0.0
    %1257 = vmatpush1.msra.mxu0 0.0
    %1258 = vmatprep.subr.mxu0 0.0
    %1259 = vmatpush1.msra.mxu0 0.0
    %1260 = vmatprep.subr.mxu0 0.0
    %1261 = vmatpush1.msra.mxu0 0.0
    %1262 = vmatprep.subr.mxu0 0.0
    %1263 = vmatpush1.msra.mxu0 0.0
    %1264 = vmatprep.subr.mxu0 0.0
    %1265 = vmatpush1.msra.mxu0 0.0
    %1266 = vmatprep.subr.mxu0 0.0
    %1267 = vmatpush1.msra.mxu0 0.0
    %1268 = vmatprep.subr.mxu0 0.0
    %1269 = vmatpush1.msra.mxu0 0.0
    %1270 = vmatprep.subr.mxu0 0.0
    %1271 = vmatpush1.msra.mxu0 0.0
    %1272 = vmatprep.subr.mxu0 0.0
    %1273 = vmatpush1.msra.mxu0 0.0
    %1274 = vmatprep.subr.mxu0 0.0
    %1275 = vmatpush1.msra.mxu0 0.0
    %1276 = vmatprep.subr.mxu0 0.0
    %1277 = vmatpush1.msra.mxu0 0.0
    %1278 = vmatprep.subr.mxu0 0.0
    %1279 = vmatpush1.msra.mxu0 0.0
    %1280 = vmatprep.subr.mxu0 0.0
    %1281 = vmatpush1.msra.mxu0 0.0
    %1282 = vmatprep.subr.mxu0 0.0
    %1283 = vmatpush1.msra.mxu0 0.0
    %1284 = vmatprep.subr.mxu0 0.0
    %1285 = vmatpush1.msra.mxu0 0.0
    %1286 = vmatprep.subr.mxu0 0.0
    %1287 = vmatpush1.msra.mxu0 0.0
    %1288 = vmatprep.subr.mxu0 0.0
    %1289 = vmatpush1.msra.mxu0 0.0
    %1290 = vmatprep.subr.mxu0 0.0
    %1291 = vmatpush1.msra.mxu0 0.0
    %1292 = vmatprep.mubr.f32.mxu0 0.0
    %1293 = vmatmul.mubr.f32.gmra.mrb[0].mxu0 %v1217
    %v1294 = vpop.f32.mrb[0].mxu0
    %v1295 = vadd.f32 0.0, %v1294
    %v1296 = vpop.f32.mrb[0].mxu0
    %1297 = vmatprep.mubr.f32.mxu0 0.0
    %1298 = vmatmul.mubr.f32.gmra.mrb[0].mxu0 %v1220
    %v1299 = vpop.f32.mrb[0].mxu0
    %v1300 = vadd.f32 0.0, %v1299
    %v1301 = vpop.f32.mrb[0].mxu0
    %1302 = vmatprep.mubr.f32.mxu0 0.0
    %1303 = vmatmul.mubr.f32.gmra.mrb[0].mxu0 %v1223
    %v1304 = vpop.f32.mrb[0].mxu0
    %v1305 = vadd.f32 0.0, %v1304
    %v1306 = vpop.f32.mrb[0].mxu0
    %1307 = vmatprep.mubr.f32.mxu0 0.0
    %1308 = vmatmul.mubr.f32.gmra.mrb[0].mxu0 %v1226
    %v1309 = vpop.f32.mrb[0].mxu0
    %v1310 = vadd.f32 0.0, %v1309
    %v1311 = vpop.f32.mrb[0].mxu0
    %1312 = vdwg.mxu0
    %s1313 = scalar_lea.vmem %s2, 400
    %v1314 = vld [vmem:[%s1313] sm:$0xff]
    %v1315 = vld [vmem:[%s1313 + $0x8] sm:$0xff]
    %v1316 = vld [vmem:[%s1313 + $0x10] sm:$0xff]
    %v1317 = vld [vmem:[%s1313 + $0x18] sm:$0xff]
    %v1318 = vld [vmem:[%s1313 + $0x20] sm:$0xff]
    %v1319 = vld [vmem:[%s1313 + $0x28] sm:$0xff]
    %v1320 = vld [vmem:[%s1313 + $0x30] sm:$0xff]
    %v1321 = vld [vmem:[%s1313 + $0x38] sm:$0xff]
    %v1322 = vld [vmem:[%s1313 + $0x40] sm:$0x3]
    %v1323 = vld [vmem:[%s1313 + $0x48] sm:$0x3]
    %v1325 = vsel %vm171, %v1295, 0
    %v1328 = vsel %vm171, %v1300, 0
    %v1331 = vsel %vm171, %v1305, 0
    %v1334 = vsel %vm171, %v1310, 0
    %v1337 = vsel %vm184, %v1322, 0
    %v1340 = vsel %vm184, %v1323, 0
    %1342 = vmatprep.subr.mxu0 %v1315
    %1343 = vmatpush1.msra.mxu0 %v1314
    %1344 = vmatprep.subr.mxu0 %v1317
    %1345 = vmatpush1.msra.mxu0 %v1316
    %1346 = vmatprep.subr.mxu0 %v1319
    %1347 = vmatpush1.msra.mxu0 %v1318
    %1348 = vmatprep.subr.mxu0 %v1321
    %1349 = vmatpush1.msra.mxu0 %v1320
    %1350 = vmatprep.subr.mxu0 %v1340
    %1351 = vmatpush1.msra.mxu0 %v1337
    %1352 = vmatprep.subr.mxu0 0.0
    %1353 = vmatpush1.msra.mxu0 0.0
    %1354 = vmatprep.subr.mxu0 0.0
    %1355 = vmatpush1.msra.mxu0 0.0
    %1356 = vmatprep.subr.mxu0 0.0
    %1357 = vmatpush1.msra.mxu0 0.0
    %1358 = vmatprep.subr.mxu0 0.0
    %1359 = vmatpush1.msra.mxu0 0.0
    %1360 = vmatprep.subr.mxu0 0.0
    %1361 = vmatpush1.msra.mxu0 0.0
    %1362 = vmatprep.subr.mxu0 0.0
    %1363 = vmatpush1.msra.mxu0 0.0
    %1364 = vmatprep.subr.mxu0 0.0
    %1365 = vmatpush1.msra.mxu0 0.0
    %1366 = vmatprep.subr.mxu0 0.0
    %1367 = vmatpush1.msra.mxu0 0.0
    %1368 = vmatprep.subr.mxu0 0.0
    %1369 = vmatpush1.msra.mxu0 0.0
    %1370 = vmatprep.subr.mxu0 0.0
    %1371 = vmatpush1.msra.mxu0 0.0
    %1372 = vmatprep.subr.mxu0 0.0
    %1373 = vmatpush1.msra.mxu0 0.0
    %1374 = vmatprep.subr.mxu0 0.0
    %1375 = vmatpush1.msra.mxu0 0.0
    %1376 = vmatprep.subr.mxu0 0.0
    %1377 = vmatpush1.msra.mxu0 0.0
    %1378 = vmatprep.subr.mxu0 0.0
    %1379 = vmatpush1.msra.mxu0 0.0
    %1380 = vmatprep.subr.mxu0 0.0
    %1381 = vmatpush1.msra.mxu0 0.0
    %1382 = vmatprep.subr.mxu0 0.0
    %1383 = vmatpush1.msra.mxu0 0.0
    %1384 = vmatprep.subr.mxu0 0.0
    %1385 = vmatpush1.msra.mxu0 0.0
    %1386 = vmatprep.subr.mxu0 0.0
    %1387 = vmatpush1.msra.mxu0 0.0
    %1388 = vmatprep.subr.mxu0 0.0
    %1389 = vmatpush1.msra.mxu0 0.0
    %1390 = vmatprep.subr.mxu0 0.0
    %1391 = vmatpush1.msra.mxu0 0.0
    %1392 = vmatprep.subr.mxu0 0.0
    %1393 = vmatpush1.msra.mxu0 0.0
    %1394 = vmatprep.subr.mxu0 0.0
    %1395 = vmatpush1.msra.mxu0 0.0
    %1396 = vmatprep.subr.mxu0 0.0
    %1397 = vmatpush1.msra.mxu0 0.0
    %1398 = vmatprep.subr.mxu0 0.0
    %1399 = vmatpush1.msra.mxu0 0.0
    %1400 = vmatprep.subr.mxu0 0.0
    %1401 = vmatpush1.msra.mxu0 0.0
    %1402 = vmatprep.subr.mxu0 0.0
    %1403 = vmatpush1.msra.mxu0 0.0
    %1404 = vmatprep.subr.mxu0 0.0
    %1405 = vmatpush1.msra.mxu0 0.0
    %1406 = vmatprep.mubr.f32.mxu0 0.0
    %1407 = vmatmul.mubr.f32.gmra.mrb[0].mxu0 %v1325
    %v1408 = vpop.f32.mrb[0].mxu0
    %v1409 = vadd.f32 0.0, %v1408
    %v1410 = vpop.f32.mrb[0].mxu0
    %v1411 = vadd.f32 0.0, %v1410
    %1412 = vmatprep.mubr.f32.mxu0 0.0
    %1413 = vmatmul.mubr.f32.gmra.mrb[0].mxu0 %v1328
    %v1414 = vpop.f32.mrb[0].mxu0
    %v1415 = vadd.f32 0.0, %v1414
    %v1416 = vpop.f32.mrb[0].mxu0
    %v1417 = vadd.f32 0.0, %v1416
    %1418 = vmatprep.mubr.f32.mxu0 0.0
    %1419 = vmatmul.mubr.f32.gmra.mrb[0].mxu0 %v1331
    %v1420 = vpop.f32.mrb[0].mxu0
    %v1421 = vadd.f32 0.0, %v1420
    %v1422 = vpop.f32.mrb[0].mxu0
    %v1423 = vadd.f32 0.0, %v1422
    %1424 = vmatprep.mubr.f32.mxu0 0.0
    %1425 = vmatmul.mubr.f32.gmra.mrb[0].mxu0 %v1334
    %v1426 = vpop.f32.mrb[0].mxu0
    %v1427 = vadd.f32 0.0, %v1426
    %v1428 = vpop.f32.mrb[0].mxu0
    %v1429 = vadd.f32 0.0, %v1428
    %1430 = vdwg.mxu0
    %v1431 = vadd.f32 %v1203, %v1409
    %v1432 = vadd.f32 %v1204, %v1411
    %v1433 = vadd.f32 %v1205, %v1415
    %v1434 = vadd.f32 %v1206, %v1417
    %v1435 = vadd.f32 %v1207, %v1421
    %v1436 = vadd.f32 %v1208, %v1423
    %v1437 = vadd.f32 %v1209, %v1427
    %v1438 = vadd.f32 %v1210, %v1429
    %s1439 = scalar_lea.vmem %s1, 192
    %v1440 = vld [vmem:[%s1439] sm:$0xff]
    %v1441 = vld [vmem:[%s1439 + $0x8] sm:$0xff]
    %v1442 = vld [vmem:[%s1439 + $0x10] sm:$0xff]
    %v1443 = vld [vmem:[%s1439 + $0x18] sm:$0xf]
    %v1445 = vsel %vm59, %v1440, 0
    %v1448 = vsel %vm59, %v1441, 0
    %v1451 = vsel %vm59, %v1442, 0
    %v1454 = vsel %vm59, %v1443, 0
    %1456 = vmatprep.subr.mxu0 0.0
    %1457 = vmatpush1.msra.mxu0 %v45
    %1458 = vmatprep.subr.mxu0 0.0
    %1459 = vmatpush1.msra.mxu0 %v46
    %1460 = vmatprep.subr.mxu0 0.0
    %1461 = vmatpush1.msra.mxu0 %v47
    %1462 = vmatprep.subr.mxu0 0.0
    %1463 = vmatpush1.msra.mxu0 %v48
    %1464 = vmatprep.subr.mxu0 0.0
    %1465 = vmatpush1.msra.mxu0 %v49
    %1466 = vmatprep.subr.mxu0 0.0
    %1467 = vmatpush1.msra.mxu0 %v50
    %1468 = vmatprep.subr.mxu0 0.0
    %1469 = vmatpush1.msra.mxu0 %v51
    %1470 = vmatprep.subr.mxu0 0.0
    %1471 = vmatpush1.msra.mxu0 %v52
    %1472 = vmatprep.subr.mxu0 0.0
    %1473 = vmatpush1.msra.mxu0 %v74
    %1474 = vmatprep.subr.mxu0 0.0
    %1475 = vmatpush1.msra.mxu0 0.0
    %1476 = vmatprep.subr.mxu0 0.0
    %1477 = vmatpush1.msra.mxu0 0.0
    %1478 = vmatprep.subr.mxu0 0.0
    %1479 = vmatpush1.msra.mxu0 0.0
    %1480 = vmatprep.subr.mxu0 0.0
    %1481 = vmatpush1.msra.mxu0 0.0
    %1482 = vmatprep.subr.mxu0 0.0
    %1483 = vmatpush1.msra.mxu0 0.0
    %1484 = vmatprep.subr.mxu0 0.0
    %1485 = vmatpush1.msra.mxu0 0.0
    %1486 = vmatprep.subr.mxu0 0.0
    %1487 = vmatpush1.msra.mxu0 0.0
    %1488 = vmatprep.subr.mxu0 0.0
    %1489 = vmatpush1.msra.mxu0 0.0
    %1490 = vmatprep.subr.mxu0 0.0
    %1491 = vmatpush1.msra.mxu0 0.0
    %1492 = vmatprep.subr.mxu0 0.0
    %1493 = vmatpush1.msra.mxu0 0.0
    %1494 = vmatprep.subr.mxu0 0.0
    %1495 = vmatpush1.msra.mxu0 0.0
    %1496 = vmatprep.subr.mxu0 0.0
    %1497 = vmatpush1.msra.mxu0 0.0
    %1498 = vmatprep.subr.mxu0 0.0
    %1499 = vmatpush1.msra.mxu0 0.0
    %1500 = vmatprep.subr.mxu0 0.0
    %1501 = vmatpush1.msra.mxu0 0.0
    %1502 = vmatprep.subr.mxu0 0.0
    %1503 = vmatpush1.msra.mxu0 0.0
    %1504 = vmatprep.subr.mxu0 0.0
    %1505 = vmatpush1.msra.mxu0 0.0
    %1506 = vmatprep.subr.mxu0 0.0
    %1507 = vmatpush1.msra.mxu0 0.0
    %1508 = vmatprep.subr.mxu0 0.0
    %1509 = vmatpush1.msra.mxu0 0.0
    %1510 = vmatprep.subr.mxu0 0.0
    %1511 = vmatpush1.msra.mxu0 0.0
    %1512 = vmatprep.subr.mxu0 0.0
    %1513 = vmatpush1.msra.mxu0 0.0
    %1514 = vmatprep.subr.mxu0 0.0
    %1515 = vmatpush1.msra.mxu0 0.0
    %1516 = vmatprep.subr.mxu0 0.0
    %1517 = vmatpush1.msra.mxu0 0.0
    %1518 = vmatprep.subr.mxu0 0.0
    %1519 = vmatpush1.msra.mxu0 0.0
    %1520 = vmatprep.mubr.f32.mxu0 0.0
    %1521 = vmatmul.mubr.f32.gmra.mrb[0].mxu0 %v1445
    %v1522 = vpop.f32.mrb[0].mxu0
    %v1523 = vadd.f32 0.0, %v1522
    %v1524 = vpop.f32.mrb[0].mxu0
    %1525 = vmatprep.mubr.f32.mxu0 0.0
    %1526 = vmatmul.mubr.f32.gmra.mrb[0].mxu0 %v1448
    %v1527 = vpop.f32.mrb[0].mxu0
    %v1528 = vadd.f32 0.0, %v1527
    %v1529 = vpop.f32.mrb[0].mxu0
    %1530 = vmatprep.mubr.f32.mxu0 0.0
    %1531 = vmatmul.mubr.f32.gmra.mrb[0].mxu0 %v1451
    %v1532 = vpop.f32.mrb[0].mxu0
    %v1533 = vadd.f32 0.0, %v1532
    %v1534 = vpop.f32.mrb[0].mxu0
    %1535 = vmatprep.mubr.f32.mxu0 0.0
    %1536 = vmatmul.mubr.f32.gmra.mrb[0].mxu0 %v1454
    %v1537 = vpop.f32.mrb[0].mxu0
    %v1538 = vadd.f32 0.0, %v1537
    %v1539 = vpop.f32.mrb[0].mxu0
    %1540 = vdwg.mxu0
    %s1541 = scalar_lea.vmem %s2, 480
    %v1542 = vld [vmem:[%s1541] sm:$0xff]
    %v1543 = vld [vmem:[%s1541 + $0x8] sm:$0xff]
    %v1544 = vld [vmem:[%s1541 + $0x10] sm:$0xff]
    %v1545 = vld [vmem:[%s1541 + $0x18] sm:$0xff]
    %v1546 = vld [vmem:[%s1541 + $0x20] sm:$0xff]
    %v1547 = vld [vmem:[%s1541 + $0x28] sm:$0xff]
    %v1548 = vld [vmem:[%s1541 + $0x30] sm:$0xff]
    %v1549 = vld [vmem:[%s1541 + $0x38] sm:$0xff]
    %v1550 = vld [vmem:[%s1541 + $0x40] sm:$0x3]
    %v1551 = vld [vmem:[%s1541 + $0x48] sm:$0x3]
    %v1553 = vsel %vm171, %v1523, 0
    %v1556 = vsel %vm171, %v1528, 0
    %v1559 = vsel %vm171, %v1533, 0
    %v1562 = vsel %vm171, %v1538, 0
    %v1565 = vsel %vm184, %v1550, 0
    %v1568 = vsel %vm184, %v1551, 0
    %1570 = vmatprep.subr.mxu0 %v1543
    %1571 = vmatpush1.msra.mxu0 %v1542
    %1572 = vmatprep.subr.mxu0 %v1545
    %1573 = vmatpush1.msra.mxu0 %v1544
    %1574 = vmatprep.subr.mxu0 %v1547
    %1575 = vmatpush1.msra.mxu0 %v1546
    %1576 = vmatprep.subr.mxu0 %v1549
    %1577 = vmatpush1.msra.mxu0 %v1548
    %1578 = vmatprep.subr.mxu0 %v1568
    %1579 = vmatpush1.msra.mxu0 %v1565
    %1580 = vmatprep.subr.mxu0 0.0
    %1581 = vmatpush1.msra.mxu0 0.0
    %1582 = vmatprep.subr.mxu0 0.0
    %1583 = vmatpush1.msra.mxu0 0.0
    %1584 = vmatprep.subr.mxu0 0.0
    %1585 = vmatpush1.msra.mxu0 0.0
    %1586 = vmatprep.subr.mxu0 0.0
    %1587 = vmatpush1.msra.mxu0 0.0
    %1588 = vmatprep.subr.mxu0 0.0
    %1589 = vmatpush1.msra.mxu0 0.0
    %1590 = vmatprep.subr.mxu0 0.0
    %1591 = vmatpush1.msra.mxu0 0.0
    %1592 = vmatprep.subr.mxu0 0.0
    %1593 = vmatpush1.msra.mxu0 0.0
    %1594 = vmatprep.subr.mxu0 0.0
    %1595 = vmatpush1.msra.mxu0 0.0
    %1596 = vmatprep.subr.mxu0 0.0
    %1597 = vmatpush1.msra.mxu0 0.0
    %1598 = vmatprep.subr.mxu0 0.0
    %1599 = vmatpush1.msra.mxu0 0.0
    %1600 = vmatprep.subr.mxu0 0.0
    %1601 = vmatpush1.msra.mxu0 0.0
    %1602 = vmatprep.subr.mxu0 0.0
    %1603 = vmatpush1.msra.mxu0 0.0
    %1604 = vmatprep.subr.mxu0 0.0
    %1605 = vmatpush1.msra.mxu0 0.0
    %1606 = vmatprep.subr.mxu0 0.0
    %1607 = vmatpush1.msra.mxu0 0.0
    %1608 = vmatprep.subr.mxu0 0.0
    %1609 = vmatpush1.msra.mxu0 0.0
    %1610 = vmatprep.subr.mxu0 0.0
    %1611 = vmatpush1.msra.mxu0 0.0
    %1612 = vmatprep.subr.mxu0 0.0
    %1613 = vmatpush1.msra.mxu0 0.0
    %1614 = vmatprep.subr.mxu0 0.0
    %1615 = vmatpush1.msra.mxu0 0.0
    %1616 = vmatprep.subr.mxu0 0.0
    %1617 = vmatpush1.msra.mxu0 0.0
    %1618 = vmatprep.subr.mxu0 0.0
    %1619 = vmatpush1.msra.mxu0 0.0
    %1620 = vmatprep.subr.mxu0 0.0
    %1621 = vmatpush1.msra.mxu0 0.0
    %1622 = vmatprep.subr.mxu0 0.0
    %1623 = vmatpush1.msra.mxu0 0.0
    %1624 = vmatprep.subr.mxu0 0.0
    %1625 = vmatpush1.msra.mxu0 0.0
    %1626 = vmatprep.subr.mxu0 0.0
    %1627 = vmatpush1.msra.mxu0 0.0
    %1628 = vmatprep.subr.mxu0 0.0
    %1629 = vmatpush1.msra.mxu0 0.0
    %1630 = vmatprep.subr.mxu0 0.0
    %1631 = vmatpush1.msra.mxu0 0.0
    %1632 = vmatprep.subr.mxu0 0.0
    %1633 = vmatpush1.msra.mxu0 0.0
    %1634 = vmatprep.mubr.f32.mxu0 0.0
    %1635 = vmatmul.mubr.f32.gmra.mrb[0].mxu0 %v1553
    %v1636 = vpop.f32.mrb[0].mxu0
    %v1637 = vadd.f32 0.0, %v1636
    %v1638 = vpop.f32.mrb[0].mxu0
    %v1639 = vadd.f32 0.0, %v1638
    %1640 = vmatprep.mubr.f32.mxu0 0.0
    %1641 = vmatmul.mubr.f32.gmra.mrb[0].mxu0 %v1556
    %v1642 = vpop.f32.mrb[0].mxu0
    %v1643 = vadd.f32 0.0, %v1642
    %v1644 = vpop.f32.mrb[0].mxu0
    %v1645 = vadd.f32 0.0, %v1644
    %1646 = vmatprep.mubr.f32.mxu0 0.0
    %1647 = vmatmul.mubr.f32.gmra.mrb[0].mxu0 %v1559
    %v1648 = vpop.f32.mrb[0].mxu0
    %v1649 = vadd.f32 0.0, %v1648
    %v1650 = vpop.f32.mrb[0].mxu0
    %v1651 = vadd.f32 0.0, %v1650
    %1652 = vmatprep.mubr.f32.mxu0 0.0
    %1653 = vmatmul.mubr.f32.gmra.mrb[0].mxu0 %v1562
    %v1654 = vpop.f32.mrb[0].mxu0
    %v1655 = vadd.f32 0.0, %v1654
    %v1656 = vpop.f32.mrb[0].mxu0
    %v1657 = vadd.f32 0.0, %v1656
    %1658 = vdwg.mxu0
    %v1659 = vadd.f32 %v1431, %v1637
    %v1660 = vadd.f32 %v1432, %v1639
    %v1661 = vadd.f32 %v1433, %v1643
    %v1662 = vadd.f32 %v1434, %v1645
    %v1663 = vadd.f32 %v1435, %v1649
    %v1664 = vadd.f32 %v1436, %v1651
    %v1665 = vadd.f32 %v1437, %v1655
    %v1666 = vadd.f32 %v1438, %v1657
    %s1667 = scalar_lea.vmem %s1, 224
    %v1668 = vld [vmem:[%s1667] sm:$0xff]
    %v1669 = vld [vmem:[%s1667 + $0x8] sm:$0xff]
    %v1670 = vld [vmem:[%s1667 + $0x10] sm:$0xff]
    %v1671 = vld [vmem:[%s1667 + $0x18] sm:$0xf]
    %v1673 = vsel %vm59, %v1668, 0
    %v1676 = vsel %vm59, %v1669, 0
    %v1679 = vsel %vm59, %v1670, 0
    %v1682 = vsel %vm59, %v1671, 0
    %1684 = vmatprep.subr.mxu0 0.0
    %1685 = vmatpush1.msra.mxu0 %v45
    %1686 = vmatprep.subr.mxu0 0.0
    %1687 = vmatpush1.msra.mxu0 %v46
    %1688 = vmatprep.subr.mxu0 0.0
    %1689 = vmatpush1.msra.mxu0 %v47
    %1690 = vmatprep.subr.mxu0 0.0
    %1691 = vmatpush1.msra.mxu0 %v48
    %1692 = vmatprep.subr.mxu0 0.0
    %1693 = vmatpush1.msra.mxu0 %v49
    %1694 = vmatprep.subr.mxu0 0.0
    %1695 = vmatpush1.msra.mxu0 %v50
    %1696 = vmatprep.subr.mxu0 0.0
    %1697 = vmatpush1.msra.mxu0 %v51
    %1698 = vmatprep.subr.mxu0 0.0
    %1699 = vmatpush1.msra.mxu0 %v52
    %1700 = vmatprep.subr.mxu0 0.0
    %1701 = vmatpush1.msra.mxu0 %v74
    %1702 = vmatprep.subr.mxu0 0.0
    %1703 = vmatpush1.msra.mxu0 0.0
    %1704 = vmatprep.subr.mxu0 0.0
    %1705 = vmatpush1.msra.mxu0 0.0
    %1706 = vmatprep.subr.mxu0 0.0
    %1707 = vmatpush1.msra.mxu0 0.0
    %1708 = vmatprep.subr.mxu0 0.0
    %1709 = vmatpush1.msra.mxu0 0.0
    %1710 = vmatprep.subr.mxu0 0.0
    %1711 = vmatpush1.msra.mxu0 0.0
    %1712 = vmatprep.subr.mxu0 0.0
    %1713 = vmatpush1.msra.mxu0 0.0
    %1714 = vmatprep.subr.mxu0 0.0
    %1715 = vmatpush1.msra.mxu0 0.0
    %1716 = vmatprep.subr.mxu0 0.0
    %1717 = vmatpush1.msra.mxu0 0.0
    %1718 = vmatprep.subr.mxu0 0.0
    %1719 = vmatpush1.msra.mxu0 0.0
    %1720 = vmatprep.subr.mxu0 0.0
    %1721 = vmatpush1.msra.mxu0 0.0
    %1722 = vmatprep.subr.mxu0 0.0
    %1723 = vmatpush1.msra.mxu0 0.0
    %1724 = vmatprep.subr.mxu0 0.0
    %1725 = vmatpush1.msra.mxu0 0.0
    %1726 = vmatprep.subr.mxu0 0.0
    %1727 = vmatpush1.msra.mxu0 0.0
    %1728 = vmatprep.subr.mxu0 0.0
    %1729 = vmatpush1.msra.mxu0 0.0
    %1730 = vmatprep.subr.mxu0 0.0
    %1731 = vmatpush1.msra.mxu0 0.0
    %1732 = vmatprep.subr.mxu0 0.0
    %1733 = vmatpush1.msra.mxu0 0.0
    %1734 = vmatprep.subr.mxu0 0.0
    %1735 = vmatpush1.msra.mxu0 0.0
    %1736 = vmatprep.subr.mxu0 0.0
    %1737 = vmatpush1.msra.mxu0 0.0
    %1738 = vmatprep.subr.mxu0 0.0
    %1739 = vmatpush1.msra.mxu0 0.0
    %1740 = vmatprep.subr.mxu0 0.0
    %1741 = vmatpush1.msra.mxu0 0.0
    %1742 = vmatprep.subr.mxu0 0.0
    %1743 = vmatpush1.msra.mxu0 0.0
    %1744 = vmatprep.subr.mxu0 0.0
    %1745 = vmatpush1.msra.mxu0 0.0
    %1746 = vmatprep.subr.mxu0 0.0
    %1747 = vmatpush1.msra.mxu0 0.0
    %1748 = vmatprep.mubr.f32.mxu0 0.0
    %1749 = vmatmul.mubr.f32.gmra.mrb[0].mxu0 %v1673
    %v1750 = vpop.f32.mrb[0].mxu0
    %v1751 = vadd.f32 0.0, %v1750
    %v1752 = vpop.f32.mrb[0].mxu0
    %1753 = vmatprep.mubr.f32.mxu0 0.0
    %1754 = vmatmul.mubr.f32.gmra.mrb[0].mxu0 %v1676
    %v1755 = vpop.f32.mrb[0].mxu0
    %v1756 = vadd.f32 0.0, %v1755
    %v1757 = vpop.f32.mrb[0].mxu0
    %1758 = vmatprep.mubr.f32.mxu0 0.0
    %1759 = vmatmul.mubr.f32.gmra.mrb[0].mxu0 %v1679
    %v1760 = vpop.f32.mrb[0].mxu0
    %v1761 = vadd.f32 0.0, %v1760
    %v1762 = vpop.f32.mrb[0].mxu0
    %1763 = vmatprep.mubr.f32.mxu0 0.0
    %1764 = vmatmul.mubr.f32.gmra.mrb[0].mxu0 %v1682
    %v1765 = vpop.f32.mrb[0].mxu0
    %v1766 = vadd.f32 0.0, %v1765
    %v1767 = vpop.f32.mrb[0].mxu0
    %1768 = vdwg.mxu0
    %s1769 = scalar_lea.vmem %s2, 560
    %v1770 = vld [vmem:[%s1769] sm:$0xff]
    %v1771 = vld [vmem:[%s1769 + $0x8] sm:$0xff]
    %v1772 = vld [vmem:[%s1769 + $0x10] sm:$0xff]
    %v1773 = vld [vmem:[%s1769 + $0x18] sm:$0xff]
    %v1774 = vld [vmem:[%s1769 + $0x20] sm:$0xff]
    %v1775 = vld [vmem:[%s1769 + $0x28] sm:$0xff]
    %v1776 = vld [vmem:[%s1769 + $0x30] sm:$0xff]
    %v1777 = vld [vmem:[%s1769 + $0x38] sm:$0xff]
    %v1778 = vld [vmem:[%s1769 + $0x40] sm:$0x3]
    %v1779 = vld [vmem:[%s1769 + $0x48] sm:$0x3]
    %v1781 = vsel %vm171, %v1751, 0
    %v1784 = vsel %vm171, %v1756, 0
    %v1787 = vsel %vm171, %v1761, 0
    %v1790 = vsel %vm171, %v1766, 0
    %v1793 = vsel %vm184, %v1778, 0
    %v1796 = vsel %vm184, %v1779, 0
    %1798 = vmatprep.subr.mxu0 %v1771
    %1799 = vmatpush1.msra.mxu0 %v1770
    %1800 = vmatprep.subr.mxu0 %v1773
    %1801 = vmatpush1.msra.mxu0 %v1772
    %1802 = vmatprep.subr.mxu0 %v1775
    %1803 = vmatpush1.msra.mxu0 %v1774
    %1804 = vmatprep.subr.mxu0 %v1777
    %1805 = vmatpush1.msra.mxu0 %v1776
    %1806 = vmatprep.subr.mxu0 %v1796
    %1807 = vmatpush1.msra.mxu0 %v1793
    %1808 = vmatprep.subr.mxu0 0.0
    %1809 = vmatpush1.msra.mxu0 0.0
    %1810 = vmatprep.subr.mxu0 0.0
    %1811 = vmatpush1.msra.mxu0 0.0
    %1812 = vmatprep.subr.mxu0 0.0
    %1813 = vmatpush1.msra.mxu0 0.0
    %1814 = vmatprep.subr.mxu0 0.0
    %1815 = vmatpush1.msra.mxu0 0.0
    %1816 = vmatprep.subr.mxu0 0.0
    %1817 = vmatpush1.msra.mxu0 0.0
    %1818 = vmatprep.subr.mxu0 0.0
    %1819 = vmatpush1.msra.mxu0 0.0
    %1820 = vmatprep.subr.mxu0 0.0
    %1821 = vmatpush1.msra.mxu0 0.0
    %1822 = vmatprep.subr.mxu0 0.0
    %1823 = vmatpush1.msra.mxu0 0.0
    %1824 = vmatprep.subr.mxu0 0.0
    %1825 = vmatpush1.msra.mxu0 0.0
    %1826 = vmatprep.subr.mxu0 0.0
    %1827 = vmatpush1.msra.mxu0 0.0
    %1828 = vmatprep.subr.mxu0 0.0
    %1829 = vmatpush1.msra.mxu0 0.0
    %1830 = vmatprep.subr.mxu0 0.0
    %1831 = vmatpush1.msra.mxu0 0.0
    %1832 = vmatprep.subr.mxu0 0.0
    %1833 = vmatpush1.msra.mxu0 0.0
    %1834 = vmatprep.subr.mxu0 0.0
    %1835 = vmatpush1.msra.mxu0 0.0
    %1836 = vmatprep.subr.mxu0 0.0
    %1837 = vmatpush1.msra.mxu0 0.0
    %1838 = vmatprep.subr.mxu0 0.0
    %1839 = vmatpush1.msra.mxu0 0.0
    %1840 = vmatprep.subr.mxu0 0.0
    %1841 = vmatpush1.msra.mxu0 0.0
    %1842 = vmatprep.subr.mxu0 0.0
    %1843 = vmatpush1.msra.mxu0 0.0
    %1844 = vmatprep.subr.mxu0 0.0
    %1845 = vmatpush1.msra.mxu0 0.0
    %1846 = vmatprep.subr.mxu0 0.0
    %1847 = vmatpush1.msra.mxu0 0.0
    %1848 = vmatprep.subr.mxu0 0.0
    %1849 = vmatpush1.msra.mxu0 0.0
    %1850 = vmatprep.subr.mxu0 0.0
    %1851 = vmatpush1.msra.mxu0 0.0
    %1852 = vmatprep.subr.mxu0 0.0
    %1853 = vmatpush1.msra.mxu0 0.0
    %1854 = vmatprep.subr.mxu0 0.0
    %1855 = vmatpush1.msra.mxu0 0.0
    %1856 = vmatprep.subr.mxu0 0.0
    %1857 = vmatpush1.msra.mxu0 0.0
    %1858 = vmatprep.subr.mxu0 0.0
    %1859 = vmatpush1.msra.mxu0 0.0
    %1860 = vmatprep.subr.mxu0 0.0
    %1861 = vmatpush1.msra.mxu0 0.0
    %1862 = vmatprep.mubr.f32.mxu0 0.0
    %1863 = vmatmul.mubr.f32.gmra.mrb[0].mxu0 %v1781
    %v1864 = vpop.f32.mrb[0].mxu0
    %v1865 = vadd.f32 0.0, %v1864
    %v1866 = vpop.f32.mrb[0].mxu0
    %v1867 = vadd.f32 0.0, %v1866
    %1868 = vmatprep.mubr.f32.mxu0 0.0
    %1869 = vmatmul.mubr.f32.gmra.mrb[0].mxu0 %v1784
    %v1870 = vpop.f32.mrb[0].mxu0
    %v1871 = vadd.f32 0.0, %v1870
    %v1872 = vpop.f32.mrb[0].mxu0
    %v1873 = vadd.f32 0.0, %v1872
    %1874 = vmatprep.mubr.f32.mxu0 0.0
    %1875 = vmatmul.mubr.f32.gmra.mrb[0].mxu0 %v1787
    %v1876 = vpop.f32.mrb[0].mxu0
    %v1877 = vadd.f32 0.0, %v1876
    %v1878 = vpop.f32.mrb[0].mxu0
    %v1879 = vadd.f32 0.0, %v1878
    %1880 = vmatprep.mubr.f32.mxu0 0.0
    %1881 = vmatmul.mubr.f32.gmra.mrb[0].mxu0 %v1790
    %v1882 = vpop.f32.mrb[0].mxu0
    %v1883 = vadd.f32 0.0, %v1882
    %v1884 = vpop.f32.mrb[0].mxu0
    %v1885 = vadd.f32 0.0, %v1884
    %1886 = vdwg.mxu0
    %v1887 = vadd.f32 %v1659, %v1865
    %v1888 = vadd.f32 %v1660, %v1867
    %v1889 = vadd.f32 %v1661, %v1871
    %v1890 = vadd.f32 %v1662, %v1873
    %v1891 = vadd.f32 %v1663, %v1877
    %v1892 = vadd.f32 %v1664, %v1879
    %v1893 = vadd.f32 %v1665, %v1883
    %v1894 = vadd.f32 %v1666, %v1885
    %v1895 = vmax.f32 %v1887, 0.0
    %v1896 = vmax.f32 %v1888, 0.0
    %v1897 = vmax.f32 %v1889, 0.0
    %v1898 = vmax.f32 %v1890, 0.0
    %v1899 = vmax.f32 %v1891, 0.0
    %v1900 = vmax.f32 %v1892, 0.0
    %v1901 = vmax.f32 %v1893, 0.0
    %v1902 = vmax.f32 %v1894, 0.0
    %v1903 = vld [vmem:[%s4] sm:$0xff]
    %v1904 = vld [vmem:[%s4 + $0x8] sm:$0xff]
    %v1905 = vld [vmem:[%s4 + $0x10] sm:$0xff]
    %v1906 = vld [vmem:[%s4 + $0x18] sm:$0xff]
    %v1907 = vld [vmem:[%s4 + $0x20] sm:$0xff]
    %v1908 = vld [vmem:[%s4 + $0x28] sm:$0xff]
    %v1909 = vld [vmem:[%s4 + $0x30] sm:$0xff]
    %v1910 = vld [vmem:[%s4 + $0x38] sm:$0xff]
    %v1911 = vld [vmem:[%s4 + $0x40] sm:$0xff]
    %v1912 = vld [vmem:[%s4 + $0x48] sm:$0xff]
    %v1913 = vld [vmem:[%s4 + $0x50] sm:$0xff]
    %v1914 = vld [vmem:[%s4 + $0x58] sm:$0xff]
    %v1915 = vld [vmem:[%s4 + $0x60] sm:$0xff]
    %v1916 = vld [vmem:[%s4 + $0x68] sm:$0xff]
    %v1917 = vld [vmem:[%s4 + $0x70] sm:$0xff]
    %v1918 = vld [vmem:[%s4 + $0x78] sm:$0xff]
    %v1919 = vld [vmem:[%s4 + $0x80] sm:$0xff]
    %v1920 = vld [vmem:[%s4 + $0x88] sm:$0xff]
    %v1921 = vld [vmem:[%s4 + $0x90] sm:$0xff]
    %v1922 = vld [vmem:[%s4 + $0x98] sm:$0xff]
    %v1923 = vld [vmem:[%s4 + $0xa0] sm:$0xff]
    %v1924 = vld [vmem:[%s4 + $0xa8] sm:$0xff]
    %v1925 = vld [vmem:[%s4 + $0xb0] sm:$0xff]
    %v1926 = vld [vmem:[%s4 + $0xb8] sm:$0xff]
    %v1927 = vld [vmem:[%s4 + $0xc0] sm:$0xff]
    %v1928 = vld [vmem:[%s4 + $0xc8] sm:$0xff]
    %v1929 = vld [vmem:[%s4 + $0xd0] sm:$0xff]
    %v1930 = vld [vmem:[%s4 + $0xd8] sm:$0xff]
    %v1931 = vld [vmem:[%s4 + $0xe0] sm:$0xff]
    %v1932 = vld [vmem:[%s4 + $0xe8] sm:$0xff]
    %v1933 = vld [vmem:[%s4 + $0xf0] sm:$0xff]
    %v1934 = vld [vmem:[%s4 + $0xf8] sm:$0xff]
    %v1935 = vld [vmem:[%s4 + $0x100] sm:$0xff]
    %v1936 = vld [vmem:[%s4 + $0x108] sm:$0xff]
    %v1937 = vld [vmem:[%s4 + $0x110] sm:$0xff]
    %v1938 = vld [vmem:[%s4 + $0x118] sm:$0xff]
    %v1939 = vld [vmem:[%s4 + $0x120] sm:$0xff]
    %v1940 = vld [vmem:[%s4 + $0x128] sm:$0xff]
    %v1941 = vld [vmem:[%s4 + $0x130] sm:$0xff]
    %v1942 = vld [vmem:[%s4 + $0x138] sm:$0xff]
    %v1943 = vld [vmem:[%s4 + $0x140] sm:$0xff]
    %v1944 = vld [vmem:[%s4 + $0x148] sm:$0xff]
    %v1945 = vld [vmem:[%s4 + $0x150] sm:$0xff]
    %v1946 = vld [vmem:[%s4 + $0x158] sm:$0xff]
    %v1947 = vld [vmem:[%s4 + $0x160] sm:$0xff]
    %v1948 = vld [vmem:[%s4 + $0x168] sm:$0xff]
    %v1949 = vld [vmem:[%s4 + $0x170] sm:$0xff]
    %v1950 = vld [vmem:[%s4 + $0x178] sm:$0xff]
    %v1951 = vld [vmem:[%s4 + $0x180] sm:$0xff]
    %v1952 = vld [vmem:[%s4 + $0x188] sm:$0xff]
    %v1953 = vld [vmem:[%s4 + $0x190] sm:$0xff]
    %v1954 = vld [vmem:[%s4 + $0x198] sm:$0xff]
    %v1955 = vld [vmem:[%s4 + $0x1a0] sm:$0xff]
    %v1956 = vld [vmem:[%s4 + $0x1a8] sm:$0xff]
    %v1957 = vld [vmem:[%s4 + $0x1b0] sm:$0xff]
    %v1958 = vld [vmem:[%s4 + $0x1b8] sm:$0xff]
    %vm1959 = vcmask 785408
    %v1961 = vsel %vm1959, %v1896, 0
    %v1964 = vsel %vm1959, %v1898, 0
    %v1967 = vsel %vm1959, %v1900, 0
    %v1970 = vsel %vm1959, %v1902, 0
    %1972 = vmatprep.subr.mxu0 %v1904
    %1973 = vmatpush1.msra.mxu0 %v1903
    %1974 = vmatprep.subr.mxu0 %v1906
    %1975 = vmatpush1.msra.mxu0 %v1905
    %1976 = vmatprep.subr.mxu0 %v1908
    %1977 = vmatpush1.msra.mxu0 %v1907
    %1978 = vmatprep.subr.mxu0 %v1910
    %1979 = vmatpush1.msra.mxu0 %v1909
    %1980 = vmatprep.subr.mxu0 %v1912
    %1981 = vmatpush1.msra.mxu0 %v1911
    %1982 = vmatprep.subr.mxu0 %v1914
    %1983 = vmatpush1.msra.mxu0 %v1913
    %1984 = vmatprep.subr.mxu0 %v1916
    %1985 = vmatpush1.msra.mxu0 %v1915
    %1986 = vmatprep.subr.mxu0 %v1918
    %1987 = vmatpush1.msra.mxu0 %v1917
    %1988 = vmatprep.subr.mxu0 %v1920
    %1989 = vmatpush1.msra.mxu0 %v1919
    %1990 = vmatprep.subr.mxu0 %v1922
    %1991 = vmatpush1.msra.mxu0 %v1921
    %1992 = vmatprep.subr.mxu0 %v1924
    %1993 = vmatpush1.msra.mxu0 %v1923
    %1994 = vmatprep.subr.mxu0 %v1926
    %1995 = vmatpush1.msra.mxu0 %v1925
    %1996 = vmatprep.subr.mxu0 %v1928
    %1997 = vmatpush1.msra.mxu0 %v1927
    %1998 = vmatprep.subr.mxu0 %v1930
    %1999 = vmatpush1.msra.mxu0 %v1929
    %2000 = vmatprep.subr.mxu0 %v1932
    %2001 = vmatpush1.msra.mxu0 %v1931
    %2002 = vmatprep.subr.mxu0 %v1934
    %2003 = vmatpush1.msra.mxu0 %v1933
    %2004 = vmatprep.subr.mxu0 %v1936
    %2005 = vmatpush1.msra.mxu0 %v1935
    %2006 = vmatprep.subr.mxu0 %v1938
    %2007 = vmatpush1.msra.mxu0 %v1937
    %2008 = vmatprep.subr.mxu0 %v1940
    %2009 = vmatpush1.msra.mxu0 %v1939
    %2010 = vmatprep.subr.mxu0 %v1942
    %2011 = vmatpush1.msra.mxu0 %v1941
    %2012 = vmatprep.subr.mxu0 %v1944
    %2013 = vmatpush1.msra.mxu0 %v1943
    %2014 = vmatprep.subr.mxu0 %v1946
    %2015 = vmatpush1.msra.mxu0 %v1945
    %2016 = vmatprep.subr.mxu0 %v1948
    %2017 = vmatpush1.msra.mxu0 %v1947
    %2018 = vmatprep.subr.mxu0 %v1950
    %2019 = vmatpush1.msra.mxu0 %v1949
    %2020 = vmatprep.subr.mxu0 %v1952
    %2021 = vmatpush1.msra.mxu0 %v1951
    %2022 = vmatprep.subr.mxu0 %v1954
    %2023 = vmatpush1.msra.mxu0 %v1953
    %2024 = vmatprep.subr.mxu0 %v1956
    %2025 = vmatpush1.msra.mxu0 %v1955
    %2026 = vmatprep.subr.mxu0 %v1958
    %2027 = vmatpush1.msra.mxu0 %v1957
    %2028 = vmatprep.subr.mxu0 0.0
    %2029 = vmatpush1.msra.mxu0 0.0
    %2030 = vmatprep.subr.mxu0 0.0
    %2031 = vmatpush1.msra.mxu0 0.0
    %2032 = vmatprep.subr.mxu0 0.0
    %2033 = vmatpush1.msra.mxu0 0.0
    %2034 = vmatprep.subr.mxu0 0.0
    %2035 = vmatpush1.msra.mxu0 0.0
    %2036 = vmatprep.mubr.f32.mxu0 %v1961
    %2037 = vmatmul.mubr.f32.gmra.mrb[0].mxu0 %v1895
    %v2038 = vpop.f32.mrb[0].mxu0
    %v2039 = vadd.f32 0.0, %v2038
    %v2040 = vpop.f32.mrb[0].mxu0
    %v2041 = vadd.f32 0.0, %v2040
    %2042 = vmatprep.mubr.f32.mxu0 %v1964
    %2043 = vmatmul.mubr.f32.gmra.mrb[0].mxu0 %v1897
    %v2044 = vpop.f32.mrb[0].mxu0
    %v2045 = vadd.f32 0.0, %v2044
    %v2046 = vpop.f32.mrb[0].mxu0
    %v2047 = vadd.f32 0.0, %v2046
    %2048 = vmatprep.mubr.f32.mxu0 %v1967
    %2049 = vmatmul.mubr.f32.gmra.mrb[0].mxu0 %v1899
    %v2050 = vpop.f32.mrb[0].mxu0
    %v2051 = vadd.f32 0.0, %v2050
    %v2052 = vpop.f32.mrb[0].mxu0
    %v2053 = vadd.f32 0.0, %v2052
    %2054 = vmatprep.mubr.f32.mxu0 %v1970
    %2055 = vmatmul.mubr.f32.gmra.mrb[0].mxu0 %v1901
    %v2056 = vpop.f32.mrb[0].mxu0
    %v2057 = vadd.f32 0.0, %v2056
    %v2058 = vpop.f32.mrb[0].mxu0
    %v2059 = vadd.f32 0.0, %v2058
    %2060 = vdwg.mxu0
    %v2061 = vmax.f32 %v1895, %v2039
    %v2062 = vmax.f32 %v1896, %v2041
    %v2063 = vmax.f32 %v1897, %v2045
    %v2064 = vmax.f32 %v1898, %v2047
    %v2065 = vmax.f32 %v1899, %v2051
    %v2066 = vmax.f32 %v1900, %v2053
    %v2067 = vmax.f32 %v1901, %v2057
    %v2068 = vmax.f32 %v1902, %v2059
    %vm2077 = vcmask 1046528
    %v2078 = vrot.slane %v2061, 1
    %v2079 = vrot.slane %v2063, 1
    %v2080 = vsel %vm2077, %v2078, %v2079
    %v2081 = vrot.slane %v2062, 1
    %v2082 = vrot.slane %v2064, 1
    %v2083 = vsel %vm2077, %v2081, %v2082
    %v2084 = vrot.slane %v2065, 1
    %v2085 = vsel %vm2077, %v2079, %v2084
    %v2086 = vrot.slane %v2066, 1
    %v2087 = vsel %vm2077, %v2082, %v2086
    %v2088 = vrot.slane %v2067, 1
    %v2089 = vsel %vm2077, %v2084, %v2088
    %v2090 = vrot.slane %v2068, 1
    %v2091 = vsel %vm2077, %v2086, %v2090
    %v2100 = vmax.f32 %v2061, %v2080
    %v2101 = vmax.f32 %v2062, %v2083
    %v2102 = vmax.f32 %v2063, %v2085
    %v2103 = vmax.f32 %v2064, %v2087
    %v2104 = vmax.f32 %v2065, %v2089
    %v2105 = vmax.f32 %v2066, %v2091
    %v2106 = vmax.f32 %v2067, %v2088
    %v2107 = vmax.f32 %v2068, %v2090
    %v2108 = vld [vmem:[%s7] sm:$0x3]
    %v2109 = vld [vmem:[%s5] sm:$0xff]
    %v2110 = vld [vmem:[%s5 + $0x8] sm:$0x3]
    %vm2111 = vcmask 220160
    %v2113 = vsel %vm2111, %v2109, 0
    %v2116 = vsel %vm2111, %v2110, 0
    %vm2118 = vcmask 1042432
    %v2120 = vsel %vm2118, %v2106, 0
    %v2123 = vsel %vm2118, %v2107, 0
    %2125 = vmatprep.subr.mxu0 %v2101
    %2126 = vmatpush1.msra.mxu0 %v2100
    %2127 = vmatprep.subr.mxu0 %v2103
    %2128 = vmatpush1.msra.mxu0 %v2102
    %2129 = vmatprep.subr.mxu0 %v2105
    %2130 = vmatpush1.msra.mxu0 %v2104
    %2131 = vmatprep.subr.mxu0 %v2123
    %2132 = vmatpush1.msra.mxu0 %v2120
    %2133 = vmatprep.subr.mxu0 0.0
    %2134 = vmatpush1.msra.mxu0 0.0
    %2135 = vmatprep.subr.mxu0 0.0
    %2136 = vmatpush1.msra.mxu0 0.0
    %2137 = vmatprep.subr.mxu0 0.0
    %2138 = vmatpush1.msra.mxu0 0.0
    %2139 = vmatprep.subr.mxu0 0.0
    %2140 = vmatpush1.msra.mxu0 0.0
    %2141 = vmatprep.subr.mxu0 0.0
    %2142 = vmatpush1.msra.mxu0 0.0
    %2143 = vmatprep.subr.mxu0 0.0
    %2144 = vmatpush1.msra.mxu0 0.0
    %2145 = vmatprep.subr.mxu0 0.0
    %2146 = vmatpush1.msra.mxu0 0.0
    %2147 = vmatprep.subr.mxu0 0.0
    %2148 = vmatpush1.msra.mxu0 0.0
    %2149 = vmatprep.subr.mxu0 0.0
    %2150 = vmatpush1.msra.mxu0 0.0
    %2151 = vmatprep.subr.mxu0 0.0
    %2152 = vmatpush1.msra.mxu0 0.0
    %2153 = vmatprep.subr.mxu0 0.0
    %2154 = vmatpush1.msra.mxu0 0.0
    %2155 = vmatprep.subr.mxu0 0.0
    %2156 = vmatpush1.msra.mxu0 0.0
    %2157 = vmatprep.subr.mxu0 0.0
    %2158 = vmatpush1.msra.mxu0 0.0
    %2159 = vmatprep.subr.mxu0 0.0
    %2160 = vmatpush1.msra.mxu0 0.0
    %2161 = vmatprep.subr.mxu0 0.0
    %2162 = vmatpush1.msra.mxu0 0.0
    %2163 = vmatprep.subr.mxu0 0.0
    %2164 = vmatpush1.msra.mxu0 0.0
    %2165 = vmatprep.subr.mxu0 0.0
    %2166 = vmatpush1.msra.mxu0 0.0
    %2167 = vmatprep.subr.mxu0 0.0
    %2168 = vmatpush1.msra.mxu0 0.0
    %2169 = vmatprep.subr.mxu0 0.0
    %2170 = vmatpush1.msra.mxu0 0.0
    %2171 = vmatprep.subr.mxu0 0.0
    %2172 = vmatpush1.msra.mxu0 0.0
    %2173 = vmatprep.subr.mxu0 0.0
    %2174 = vmatpush1.msra.mxu0 0.0
    %2175 = vmatprep.subr.mxu0 0.0
    %2176 = vmatpush1.msra.mxu0 0.0
    %2177 = vmatprep.subr.mxu0 0.0
    %2178 = vmatpush1.msra.mxu0 0.0
    %2179 = vmatprep.subr.mxu0 0.0
    %2180 = vmatpush1.msra.mxu0 0.0
    %2181 = vmatprep.subr.mxu0 0.0
    %2182 = vmatpush1.msra.mxu0 0.0
    %2183 = vmatprep.subr.mxu0 0.0
    %2184 = vmatpush1.msra.mxu0 0.0
    %2185 = vmatprep.subr.mxu0 0.0
    %2186 = vmatpush1.msra.mxu0 0.0
    %2187 = vmatprep.subr.mxu0 0.0
    %2188 = vmatpush1.msra.mxu0 0.0
    %2189 = vmatprep.mubr.f32.mxu0 0.0
    %2190 = vmatmul.mubr.f32.gmra.mrb[0].mxu0 %v2113
    %v2191 = vpop.f32.mrb[0].mxu0
    %v2192 = vadd.f32 0.0, %v2191
    %v2193 = vpop.f32.mrb[0].mxu0
    %v2194 = vadd.f32 0.0, %v2193
    %2195 = vmatprep.mubr.f32.mxu0 0.0
    %2196 = vmatmul.mubr.f32.gmra.mrb[0].mxu0 %v2116
    %v2197 = vpop.f32.mrb[0].mxu0
    %v2198 = vadd.f32 0.0, %v2197
    %v2199 = vpop.f32.mrb[0].mxu0
    %v2200 = vadd.f32 0.0, %v2199
    %2201 = vdwg.mxu0
    %v2202 = vld [vmem:[%s6] sm:$0xff]
    %v2203 = vld [vmem:[%s6 + $0x8] sm:$0xff]
    %v2204 = vld [vmem:[%s6 + $0x10] sm:$0xff]
    %v2205 = vld [vmem:[%s6 + $0x18] sm:$0xff]
    %v2206 = vld [vmem:[%s6 + $0x20] sm:$0xff]
    %v2207 = vld [vmem:[%s6 + $0x28] sm:$0xff]
    %v2208 = vld [vmem:[%s6 + $0x30] sm:$0xff]
    %v2209 = vld [vmem:[%s6 + $0x38] sm:$0xff]
    %v2210 = vld [vmem:[%s6 + $0x40] sm:$0xff]
    %v2211 = vld [vmem:[%s6 + $0x48] sm:$0xff]
    %v2212 = vld [vmem:[%s6 + $0x50] sm:$0xff]
    %v2213 = vld [vmem:[%s6 + $0x58] sm:$0xff]
    %v2214 = vld [vmem:[%s6 + $0x60] sm:$0xff]
    %v2215 = vld [vmem:[%s6 + $0x68] sm:$0xff]
    %v2216 = vld [vmem:[%s6 + $0x70] sm:$0xff]
    %v2217 = vld [vmem:[%s6 + $0x78] sm:$0xff]
    %v2218 = vld [vmem:[%s6 + $0x80] sm:$0xff]
    %v2219 = vld [vmem:[%s6 + $0x88] sm:$0xff]
    %v2220 = vld [vmem:[%s6 + $0x90] sm:$0xff]
    %v2221 = vld [vmem:[%s6 + $0x98] sm:$0xff]
    %v2222 = vld [vmem:[%s6 + $0xa0] sm:$0xff]
    %v2223 = vld [vmem:[%s6 + $0xa8] sm:$0xff]
    %v2224 = vld [vmem:[%s6 + $0xb0] sm:$0xff]
    %v2225 = vld [vmem:[%s6 + $0xb8] sm:$0xff]
    %v2226 = vld [vmem:[%s6 + $0xc0] sm:$0xff]
    %v2227 = vld [vmem:[%s6 + $0xc8] sm:$0xff]
    %v2228 = vld [vmem:[%s6 + $0xd0] sm:$0xff]
    %v2229 = vld [vmem:[%s6 + $0xd8] sm:$0xff]
    %v2230 = vld [vmem:[%s6 + $0xe0] sm:$0xff]
    %v2231 = vld [vmem:[%s6 + $0xe8] sm:$0xff]
    %v2232 = vld [vmem:[%s6 + $0xf0] sm:$0xff]
    %v2233 = vld [vmem:[%s6 + $0xf8] sm:$0xff]
    %v2234 = vld [vmem:[%s6 + $0x100] sm:$0xff]
    %v2235 = vld [vmem:[%s6 + $0x108] sm:$0xff]
    %v2236 = vld [vmem:[%s6 + $0x110] sm:$0xff]
    %v2237 = vld [vmem:[%s6 + $0x118] sm:$0xff]
    %v2238 = vld [vmem:[%s6 + $0x120] sm:$0xff]
    %v2239 = vld [vmem:[%s6 + $0x128] sm:$0xff]
    %v2240 = vld [vmem:[%s6 + $0x130] sm:$0xff]
    %v2241 = vld [vmem:[%s6 + $0x138] sm:$0xff]
    %v2242 = vld [vmem:[%s6 + $0x140] sm:$0xff]
    %v2243 = vld [vmem:[%s6 + $0x148] sm:$0xff]
    %v2244 = vld [vmem:[%s6 + $0x150] sm:$0xff]
    %v2245 = vld [vmem:[%s6 + $0x158] sm:$0xff]
    %v2246 = vld [vmem:[%s6 + $0x160] sm:$0xff]
    %v2247 = vld [vmem:[%s6 + $0x168] sm:$0xff]
    %v2248 = vld [vmem:[%s6 + $0x170] sm:$0xff]
    %v2249 = vld [vmem:[%s6 + $0x178] sm:$0xff]
    %v2250 = vld [vmem:[%s6 + $0x180] sm:$0xff]
    %v2251 = vld [vmem:[%s6 + $0x188] sm:$0xff]
    %v2252 = vld [vmem:[%s6 + $0x190] sm:$0xff]
    %v2253 = vld [vmem:[%s6 + $0x198] sm:$0xff]
    %v2254 = vld [vmem:[%s6 + $0x1a0] sm:$0xff]
    %v2255 = vld [vmem:[%s6 + $0x1a8] sm:$0xff]
    %v2256 = vld [vmem:[%s6 + $0x1b0] sm:$0xff]
    %v2257 = vld [vmem:[%s6 + $0x1b8] sm:$0xff]
    %v2259 = vsel %vm1959, %v2194, 0
    %v2262 = vsel %vm1959, %v2200, 0
    %2264 = vmatprep.subr.mxu0 %v2203
    %2265 = vmatpush1.msra.mxu0 %v2202
    %2266 = vmatprep.subr.mxu0 %v2205
    %2267 = vmatpush1.msra.mxu0 %v2204
    %2268 = vmatprep.subr.mxu0 %v2207
    %2269 = vmatpush1.msra.mxu0 %v2206
    %2270 = vmatprep.subr.mxu0 %v2209
    %2271 = vmatpush1.msra.mxu0 %v2208
    %2272 = vmatprep.subr.mxu0 %v2211
    %2273 = vmatpush1.msra.mxu0 %v2210
    %2274 = vmatprep.subr.mxu0 %v2213
    %2275 = vmatpush1.msra.mxu0 %v2212
    %2276 = vmatprep.subr.mxu0 %v2215
    %2277 = vmatpush1.msra.mxu0 %v2214
    %2278 = vmatprep.subr.mxu0 %v2217
    %2279 = vmatpush1.msra.mxu0 %v2216
    %2280 = vmatprep.subr.mxu0 %v2219
    %2281 = vmatpush1.msra.mxu0 %v2218
    %2282 = vmatprep.subr.mxu0 %v2221
    %2283 = vmatpush1.msra.mxu0 %v2220
    %2284 = vmatprep.subr.mxu0 %v2223
    %2285 = vmatpush1.msra.mxu0 %v2222
    %2286 = vmatprep.subr.mxu0 %v2225
    %2287 = vmatpush1.msra.mxu0 %v2224
    %2288 = vmatprep.subr.mxu0 %v2227
    %2289 = vmatpush1.msra.mxu0 %v2226
    %2290 = vmatprep.subr.mxu0 %v2229
    %2291 = vmatpush1.msra.mxu0 %v2228
    %2292 = vmatprep.subr.mxu0 %v2231
    %2293 = vmatpush1.msra.mxu0 %v2230
    %2294 = vmatprep.subr.mxu0 %v2233
    %2295 = vmatpush1.msra.mxu0 %v2232
    %2296 = vmatprep.subr.mxu0 %v2235
    %2297 = vmatpush1.msra.mxu0 %v2234
    %2298 = vmatprep.subr.mxu0 %v2237
    %2299 = vmatpush1.msra.mxu0 %v2236
    %2300 = vmatprep.subr.mxu0 %v2239
    %2301 = vmatpush1.msra.mxu0 %v2238
    %2302 = vmatprep.subr.mxu0 %v2241
    %2303 = vmatpush1.msra.mxu0 %v2240
    %2304 = vmatprep.subr.mxu0 %v2243
    %2305 = vmatpush1.msra.mxu0 %v2242
    %2306 = vmatprep.subr.mxu0 %v2245
    %2307 = vmatpush1.msra.mxu0 %v2244
    %2308 = vmatprep.subr.mxu0 %v2247
    %2309 = vmatpush1.msra.mxu0 %v2246
    %2310 = vmatprep.subr.mxu0 %v2249
    %2311 = vmatpush1.msra.mxu0 %v2248
    %2312 = vmatprep.subr.mxu0 %v2251
    %2313 = vmatpush1.msra.mxu0 %v2250
    %2314 = vmatprep.subr.mxu0 %v2253
    %2315 = vmatpush1.msra.mxu0 %v2252
    %2316 = vmatprep.subr.mxu0 %v2255
    %2317 = vmatpush1.msra.mxu0 %v2254
    %2318 = vmatprep.subr.mxu0 %v2257
    %2319 = vmatpush1.msra.mxu0 %v2256
    %2320 = vmatprep.subr.mxu0 0.0
    %2321 = vmatpush1.msra.mxu0 0.0
    %2322 = vmatprep.subr.mxu0 0.0
    %2323 = vmatpush1.msra.mxu0 0.0
    %2324 = vmatprep.subr.mxu0 0.0
    %2325 = vmatpush1.msra.mxu0 0.0
    %2326 = vmatprep.subr.mxu0 0.0
    %2327 = vmatpush1.msra.mxu0 0.0
    %2328 = vmatprep.mubr.f32.mxu0 %v2259
    %2329 = vmatmul.mubr.f32.gmra.mrb[0].mxu0 %v2192
    %v2330 = vpop.f32.mrb[0].mxu0
    %v2331 = vadd.f32 0.0, %v2330
    %v2332 = vpop.f32.mrb[0].mxu0
    %v2333 = vadd.f32 0.0, %v2332
    %2334 = vmatprep.mubr.f32.mxu0 %v2262
    %2335 = vmatmul.mubr.f32.gmra.mrb[0].mxu0 %v2198
    %v2336 = vpop.f32.mrb[0].mxu0
    %v2337 = vadd.f32 0.0, %v2336
    %v2338 = vpop.f32.mrb[0].mxu0
    %v2339 = vadd.f32 0.0, %v2338
    %2340 = vdwg.mxu0
    %v2342 = vlaneseq
    %v2343 = vshrl.u32 %v2342, 7
    %v2344 = vsub.s32 0, %v2343
    %v2345 = vrot.slane %v2108, %v2344
    %v2346 = vlaneseq
    %v2347 = vshrl.u32 %v2346, 7
    %v2348 = vsub.s32 1, %v2347
    %v2349 = vrot.slane %v2108, %v2348
    %v2352 = vadd.f32 %v2345, %v2331
    %v2353 = vadd.f32 %v2349, %v2333
    %v2354 = vadd.f32 %v2345, %v2337
    %v2355 = vadd.f32 %v2349, %v2339
    %s2356 = scalar_lea.vmem %s5, 16
    %v2357 = vld [vmem:[%s2356] sm:$0xff]
    %v2358 = vld [vmem:[%s2356 + $0x8] sm:$0x3]
    %v2360 = vsel %vm2111, %v2357, 0
    %v2363 = vsel %vm2111, %v2358, 0
    %2365 = vmatprep.subr.mxu0 %v2101
    %2366 = vmatpush1.msra.mxu0 %v2100
    %2367 = vmatprep.subr.mxu0 %v2103
    %2368 = vmatpush1.msra.mxu0 %v2102
    %2369 = vmatprep.subr.mxu0 %v2105
    %2370 = vmatpush1.msra.mxu0 %v2104
    %2371 = vmatprep.subr.mxu0 %v2123
    %2372 = vmatpush1.msra.mxu0 %v2120
    %2373 = vmatprep.subr.mxu0 0.0
    %2374 = vmatpush1.msra.mxu0 0.0
    %2375 = vmatprep.subr.mxu0 0.0
    %2376 = vmatpush1.msra.mxu0 0.0
    %2377 = vmatprep.subr.mxu0 0.0
    %2378 = vmatpush1.msra.mxu0 0.0
    %2379 = vmatprep.subr.mxu0 0.0
    %2380 = vmatpush1.msra.mxu0 0.0
    %2381 = vmatprep.subr.mxu0 0.0
    %2382 = vmatpush1.msra.mxu0 0.0
    %2383 = vmatprep.subr.mxu0 0.0
    %2384 = vmatpush1.msra.mxu0 0.0
    %2385 = vmatprep.subr.mxu0 0.0
    %2386 = vmatpush1.msra.mxu0 0.0
    %2387 = vmatprep.subr.mxu0 0.0
    %2388 = vmatpush1.msra.mxu0 0.0
    %2389 = vmatprep.subr.mxu0 0.0
    %2390 = vmatpush1.msra.mxu0 0.0
    %2391 = vmatprep.subr.mxu0 0.0
    %2392 = vmatpush1.msra.mxu0 0.0
    %2393 = vmatprep.subr.mxu0 0.0
    %2394 = vmatpush1.msra.mxu0 0.0
    %2395 = vmatprep.subr.mxu0 0.0
    %2396 = vmatpush1.msra.mxu0 0.0
    %2397 = vmatprep.subr.mxu0 0.0
    %2398 = vmatpush1.msra.mxu0 0.0
    %2399 = vmatprep.subr.mxu0 0.0
    %2400 = vmatpush1.msra.mxu0 0.0
    %2401 = vmatprep.subr.mxu0 0.0
    %2402 = vmatpush1.msra.mxu0 0.0
    %2403 = vmatprep.subr.mxu0 0.0
    %2404 = vmatpush1.msra.mxu0 0.0
    %2405 = vmatprep.subr.mxu0 0.0
    %2406 = vmatpush1.msra.mxu0 0.0
    %2407 = vmatprep.subr.mxu0 0.0
    %2408 = vmatpush1.msra.mxu0 0.0
    %2409 = vmatprep.subr.mxu0 0.0
    %2410 = vmatpush1.msra.mxu0 0.0
    %2411 = vmatprep.subr.mxu0 0.0
    %2412 = vmatpush1.msra.mxu0 0.0
    %2413 = vmatprep.subr.mxu0 0.0
    %2414 = vmatpush1.msra.mxu0 0.0
    %2415 = vmatprep.subr.mxu0 0.0
    %2416 = vmatpush1.msra.mxu0 0.0
    %2417 = vmatprep.subr.mxu0 0.0
    %2418 = vmatpush1.msra.mxu0 0.0
    %2419 = vmatprep.subr.mxu0 0.0
    %2420 = vmatpush1.msra.mxu0 0.0
    %2421 = vmatprep.subr.mxu0 0.0
    %2422 = vmatpush1.msra.mxu0 0.0
    %2423 = vmatprep.subr.mxu0 0.0
    %2424 = vmatpush1.msra.mxu0 0.0
    %2425 = vmatprep.subr.mxu0 0.0
    %2426 = vmatpush1.msra.mxu0 0.0
    %2427 = vmatprep.subr.mxu0 0.0
    %2428 = vmatpush1.msra.mxu0 0.0
    %2429 = vmatprep.mubr.f32.mxu0 0.0
    %2430 = vmatmul.mubr.f32.gmra.mrb[0].mxu0 %v2360
    %v2431 = vpop.f32.mrb[0].mxu0
    %v2432 = vadd.f32 0.0, %v2431
    %v2433 = vpop.f32.mrb[0].mxu0
    %v2434 = vadd.f32 0.0, %v2433
    %2435 = vmatprep.mubr.f32.mxu0 0.0
    %2436 = vmatmul.mubr.f32.gmra.mrb[0].mxu0 %v2363
    %v2437 = vpop.f32.mrb[0].mxu0
    %v2438 = vadd.f32 0.0, %v2437
    %v2439 = vpop.f32.mrb[0].mxu0
    %v2440 = vadd.f32 0.0, %v2439
    %2441 = vdwg.mxu0
    %s2442 = scalar_lea.vmem %s6, 448
    %v2443 = vld [vmem:[%s2442] sm:$0xff]
    %v2444 = vld [vmem:[%s2442 + $0x8] sm:$0xff]
    %v2445 = vld [vmem:[%s2442 + $0x10] sm:$0xff]
    %v2446 = vld [vmem:[%s2442 + $0x18] sm:$0xff]
    %v2447 = vld [vmem:[%s2442 + $0x20] sm:$0xff]
    %v2448 = vld [vmem:[%s2442 + $0x28] sm:$0xff]
    %v2449 = vld [vmem:[%s2442 + $0x30] sm:$0xff]
    %v2450 = vld [vmem:[%s2442 + $0x38] sm:$0xff]
    %v2451 = vld [vmem:[%s2442 + $0x40] sm:$0xff]
    %v2452 = vld [vmem:[%s2442 + $0x48] sm:$0xff]
    %v2453 = vld [vmem:[%s2442 + $0x50] sm:$0xff]
    %v2454 = vld [vmem:[%s2442 + $0x58] sm:$0xff]
    %v2455 = vld [vmem:[%s2442 + $0x60] sm:$0xff]
    %v2456 = vld [vmem:[%s2442 + $0x68] sm:$0xff]
    %v2457 = vld [vmem:[%s2442 + $0x70] sm:$0xff]
    %v2458 = vld [vmem:[%s2442 + $0x78] sm:$0xff]
    %v2459 = vld [vmem:[%s2442 + $0x80] sm:$0xff]
    %v2460 = vld [vmem:[%s2442 + $0x88] sm:$0xff]
    %v2461 = vld [vmem:[%s2442 + $0x90] sm:$0xff]
    %v2462 = vld [vmem:[%s2442 + $0x98] sm:$0xff]
    %v2463 = vld [vmem:[%s2442 + $0xa0] sm:$0xff]
    %v2464 = vld [vmem:[%s2442 + $0xa8] sm:$0xff]
    %v2465 = vld [vmem:[%s2442 + $0xb0] sm:$0xff]
    %v2466 = vld [vmem:[%s2442 + $0xb8] sm:$0xff]
    %v2467 = vld [vmem:[%s2442 + $0xc0] sm:$0xff]
    %v2468 = vld [vmem:[%s2442 + $0xc8] sm:$0xff]
    %v2469 = vld [vmem:[%s2442 + $0xd0] sm:$0xff]
    %v2470 = vld [vmem:[%s2442 + $0xd8] sm:$0xff]
    %v2471 = vld [vmem:[%s2442 + $0xe0] sm:$0xff]
    %v2472 = vld [vmem:[%s2442 + $0xe8] sm:$0xff]
    %v2473 = vld [vmem:[%s2442 + $0xf0] sm:$0xff]
    %v2474 = vld [vmem:[%s2442 + $0xf8] sm:$0xff]
    %v2475 = vld [vmem:[%s2442 + $0x100] sm:$0xff]
    %v2476 = vld [vmem:[%s2442 + $0x108] sm:$0xff]
    %v2477 = vld [vmem:[%s2442 + $0x110] sm:$0xff]
    %v2478 = vld [vmem:[%s2442 + $0x118] sm:$0xff]
    %v2479 = vld [vmem:[%s2442 + $0x120] sm:$0xff]
    %v2480 = vld [vmem:[%s2442 + $0x128] sm:$0xff]
    %v2481 = vld [vmem:[%s2442 + $0x130] sm:$0xff]
    %v2482 = vld [vmem:[%s2442 + $0x138] sm:$0xff]
    %v2483 = vld [vmem:[%s2442 + $0x140] sm:$0xff]
    %v2484 = vld [vmem:[%s2442 + $0x148] sm:$0xff]
    %v2485 = vld [vmem:[%s2442 + $0x150] sm:$0xff]
    %v2486 = vld [vmem:[%s2442 + $0x158] sm:$0xff]
    %v2487 = vld [vmem:[%s2442 + $0x160] sm:$0xff]
    %v2488 = vld [vmem:[%s2442 + $0x168] sm:$0xff]
    %v2489 = vld [vmem:[%s2442 + $0x170] sm:$0xff]
    %v2490 = vld [vmem:[%s2442 + $0x178] sm:$0xff]
    %v2491 = vld [vmem:[%s2442 + $0x180] sm:$0xff]
    %v2492 = vld [vmem:[%s2442 + $0x188] sm:$0xff]
    %v2493 = vld [vmem:[%s2442 + $0x190] sm:$0xff]
    %v2494 = vld [vmem:[%s2442 + $0x198] sm:$0xff]
    %v2495 = vld [vmem:[%s2442 + $0x1a0] sm:$0xff]
    %v2496 = vld [vmem:[%s2442 + $0x1a8] sm:$0xff]
    %v2497 = vld [vmem:[%s2442 + $0x1b0] sm:$0xff]
    %v2498 = vld [vmem:[%s2442 + $0x1b8] sm:$0xff]
    %v2500 = vsel %vm1959, %v2434, 0
    %v2503 = vsel %vm1959, %v2440, 0
    %2505 = vmatprep.subr.mxu0 %v2444
    %2506 = vmatpush1.msra.mxu0 %v2443
    %2507 = vmatprep.subr.mxu0 %v2446
    %2508 = vmatpush1.msra.mxu0 %v2445
    %2509 = vmatprep.subr.mxu0 %v2448
    %2510 = vmatpush1.msra.mxu0 %v2447
    %2511 = vmatprep.subr.mxu0 %v2450
    %2512 = vmatpush1.msra.mxu0 %v2449
    %2513 = vmatprep.subr.mxu0 %v2452
    %2514 = vmatpush1.msra.mxu0 %v2451
    %2515 = vmatprep.subr.mxu0 %v2454
    %2516 = vmatpush1.msra.mxu0 %v2453
    %2517 = vmatprep.subr.mxu0 %v2456
    %2518 = vmatpush1.msra.mxu0 %v2455
    %2519 = vmatprep.subr.mxu0 %v2458
    %2520 = vmatpush1.msra.mxu0 %v2457
    %2521 = vmatprep.subr.mxu0 %v2460
    %2522 = vmatpush1.msra.mxu0 %v2459
    %2523 = vmatprep.subr.mxu0 %v2462
    %2524 = vmatpush1.msra.mxu0 %v2461
    %2525 = vmatprep.subr.mxu0 %v2464
    %2526 = vmatpush1.msra.mxu0 %v2463
    %2527 = vmatprep.subr.mxu0 %v2466
    %2528 = vmatpush1.msra.mxu0 %v2465
    %2529 = vmatprep.subr.mxu0 %v2468
    %2530 = vmatpush1.msra.mxu0 %v2467
    %2531 = vmatprep.subr.mxu0 %v2470
    %2532 = vmatpush1.msra.mxu0 %v2469
    %2533 = vmatprep.subr.mxu0 %v2472
    %2534 = vmatpush1.msra.mxu0 %v2471
    %2535 = vmatprep.subr.mxu0 %v2474
    %2536 = vmatpush1.msra.mxu0 %v2473
    %2537 = vmatprep.subr.mxu0 %v2476
    %2538 = vmatpush1.msra.mxu0 %v2475
    %2539 = vmatprep.subr.mxu0 %v2478
    %2540 = vmatpush1.msra.mxu0 %v2477
    %2541 = vmatprep.subr.mxu0 %v2480
    %2542 = vmatpush1.msra.mxu0 %v2479
    %2543 = vmatprep.subr.mxu0 %v2482
    %2544 = vmatpush1.msra.mxu0 %v2481
    %2545 = vmatprep.subr.mxu0 %v2484
    %2546 = vmatpush1.msra.mxu0 %v2483
    %2547 = vmatprep.subr.mxu0 %v2486
    %2548 = vmatpush1.msra.mxu0 %v2485
    %2549 = vmatprep.subr.mxu0 %v2488
    %2550 = vmatpush1.msra.mxu0 %v2487
    %2551 = vmatprep.subr.mxu0 %v2490
    %2552 = vmatpush1.msra.mxu0 %v2489
    %2553 = vmatprep.subr.mxu0 %v2492
    %2554 = vmatpush1.msra.mxu0 %v2491
    %2555 = vmatprep.subr.mxu0 %v2494
    %2556 = vmatpush1.msra.mxu0 %v2493
    %2557 = vmatprep.subr.mxu0 %v2496
    %2558 = vmatpush1.msra.mxu0 %v2495
    %2559 = vmatprep.subr.mxu0 %v2498
    %2560 = vmatpush1.msra.mxu0 %v2497
    %2561 = vmatprep.subr.mxu0 0.0
    %2562 = vmatpush1.msra.mxu0 0.0
    %2563 = vmatprep.subr.mxu0 0.0
    %2564 = vmatpush1.msra.mxu0 0.0
    %2565 = vmatprep.subr.mxu0 0.0
    %2566 = vmatpush1.msra.mxu0 0.0
    %2567 = vmatprep.subr.mxu0 0.0
    %2568 = vmatpush1.msra.mxu0 0.0
    %2569 = vmatprep.mubr.f32.mxu0 %v2500
    %2570 = vmatmul.mubr.f32.gmra.mrb[0].mxu0 %v2432
    %v2571 = vpop.f32.mrb[0].mxu0
    %v2572 = vadd.f32 0.0, %v2571
    %v2573 = vpop.f32.mrb[0].mxu0
    %v2574 = vadd.f32 0.0, %v2573
    %2575 = vmatprep.mubr.f32.mxu0 %v2503
    %2576 = vmatmul.mubr.f32.gmra.mrb[0].mxu0 %v2438
    %v2577 = vpop.f32.mrb[0].mxu0
    %v2578 = vadd.f32 0.0, %v2577
    %v2579 = vpop.f32.mrb[0].mxu0
    %v2580 = vadd.f32 0.0, %v2579
    %2581 = vdwg.mxu0
    %v2582 = vadd.f32 %v2352, %v2572
    %v2583 = vadd.f32 %v2353, %v2574
    %v2584 = vadd.f32 %v2354, %v2578
    %v2585 = vadd.f32 %v2355, %v2580
    %s2586 = scalar_lea.vmem %s5, 32
    %v2587 = vld [vmem:[%s2586] sm:$0xff]
    %v2588 = vld [vmem:[%s2586 + $0x8] sm:$0x3]
    %v2590 = vsel %vm2111, %v2587, 0
    %v2593 = vsel %vm2111, %v2588, 0
    %2595 = vmatprep.subr.mxu0 %v2101
    %2596 = vmatpush1.msra.mxu0 %v2100
    %2597 = vmatprep.subr.mxu0 %v2103
    %2598 = vmatpush1.msra.mxu0 %v2102
    %2599 = vmatprep.subr.mxu0 %v2105
    %2600 = vmatpush1.msra.mxu0 %v2104
    %2601 = vmatprep.subr.mxu0 %v2123
    %2602 = vmatpush1.msra.mxu0 %v2120
    %2603 = vmatprep.subr.mxu0 0.0
    %2604 = vmatpush1.msra.mxu0 0.0
    %2605 = vmatprep.subr.mxu0 0.0
    %2606 = vmatpush1.msra.mxu0 0.0
    %2607 = vmatprep.subr.mxu0 0.0
    %2608 = vmatpush1.msra.mxu0 0.0
    %2609 = vmatprep.subr.mxu0 0.0
    %2610 = vmatpush1.msra.mxu0 0.0
    %2611 = vmatprep.subr.mxu0 0.0
    %2612 = vmatpush1.msra.mxu0 0.0
    %2613 = vmatprep.subr.mxu0 0.0
    %2614 = vmatpush1.msra.mxu0 0.0
    %2615 = vmatprep.subr.mxu0 0.0
    %2616 = vmatpush1.msra.mxu0 0.0
    %2617 = vmatprep.subr.mxu0 0.0
    %2618 = vmatpush1.msra.mxu0 0.0
    %2619 = vmatprep.subr.mxu0 0.0
    %2620 = vmatpush1.msra.mxu0 0.0
    %2621 = vmatprep.subr.mxu0 0.0
    %2622 = vmatpush1.msra.mxu0 0.0
    %2623 = vmatprep.subr.mxu0 0.0
    %2624 = vmatpush1.msra.mxu0 0.0
    %2625 = vmatprep.subr.mxu0 0.0
    %2626 = vmatpush1.msra.mxu0 0.0
    %2627 = vmatprep.subr.mxu0 0.0
    %2628 = vmatpush1.msra.mxu0 0.0
    %2629 = vmatprep.subr.mxu0 0.0
    %2630 = vmatpush1.msra.mxu0 0.0
    %2631 = vmatprep.subr.mxu0 0.0
    %2632 = vmatpush1.msra.mxu0 0.0
    %2633 = vmatprep.subr.mxu0 0.0
    %2634 = vmatpush1.msra.mxu0 0.0
    %2635 = vmatprep.subr.mxu0 0.0
    %2636 = vmatpush1.msra.mxu0 0.0
    %2637 = vmatprep.subr.mxu0 0.0
    %2638 = vmatpush1.msra.mxu0 0.0
    %2639 = vmatprep.subr.mxu0 0.0
    %2640 = vmatpush1.msra.mxu0 0.0
    %2641 = vmatprep.subr.mxu0 0.0
    %2642 = vmatpush1.msra.mxu0 0.0
    %2643 = vmatprep.subr.mxu0 0.0
    %2644 = vmatpush1.msra.mxu0 0.0
    %2645 = vmatprep.subr.mxu0 0.0
    %2646 = vmatpush1.msra.mxu0 0.0
    %2647 = vmatprep.subr.mxu0 0.0
    %2648 = vmatpush1.msra.mxu0 0.0
    %2649 = vmatprep.subr.mxu0 0.0
    %2650 = vmatpush1.msra.mxu0 0.0
    %2651 = vmatprep.subr.mxu0 0.0
    %2652 = vmatpush1.msra.mxu0 0.0
    %2653 = vmatprep.subr.mxu0 0.0
    %2654 = vmatpush1.msra.mxu0 0.0
    %2655 = vmatprep.subr.mxu0 0.0
    %2656 = vmatpush1.msra.mxu0 0.0
    %2657 = vmatprep.subr.mxu0 0.0
    %2658 = vmatpush1.msra.mxu0 0.0
    %2659 = vmatprep.mubr.f32.mxu0 0.0
    %2660 = vmatmul.mubr.f32.gmra.mrb[0].mxu0 %v2590
    %v2661 = vpop.f32.mrb[0].mxu0
    %v2662 = vadd.f32 0.0, %v2661
    %v2663 = vpop.f32.mrb[0].mxu0
    %v2664 = vadd.f32 0.0, %v2663
    %2665 = vmatprep.mubr.f32.mxu0 0.0
    %2666 = vmatmul.mubr.f32.gmra.mrb[0].mxu0 %v2593
    %v2667 = vpop.f32.mrb[0].mxu0
    %v2668 = vadd.f32 0.0, %v2667
    %v2669 = vpop.f32.mrb[0].mxu0
    %v2670 = vadd.f32 0.0, %v2669
    %2671 = vdwg.mxu0
    %s2672 = scalar_lea.vmem %s6, 896
    %v2673 = vld [vmem:[%s2672] sm:$0xff]
    %v2674 = vld [vmem:[%s2672 + $0x8] sm:$0xff]
    %v2675 = vld [vmem:[%s2672 + $0x10] sm:$0xff]
    %v2676 = vld [vmem:[%s2672 + $0x18] sm:$0xff]
    %v2677 = vld [vmem:[%s2672 + $0x20] sm:$0xff]
    %v2678 = vld [vmem:[%s2672 + $0x28] sm:$0xff]
    %v2679 = vld [vmem:[%s2672 + $0x30] sm:$0xff]
    %v2680 = vld [vmem:[%s2672 + $0x38] sm:$0xff]
    %v2681 = vld [vmem:[%s2672 + $0x40] sm:$0xff]
    %v2682 = vld [vmem:[%s2672 + $0x48] sm:$0xff]
    %v2683 = vld [vmem:[%s2672 + $0x50] sm:$0xff]
    %v2684 = vld [vmem:[%s2672 + $0x58] sm:$0xff]
    %v2685 = vld [vmem:[%s2672 + $0x60] sm:$0xff]
    %v2686 = vld [vmem:[%s2672 + $0x68] sm:$0xff]
    %v2687 = vld [vmem:[%s2672 + $0x70] sm:$0xff]
    %v2688 = vld [vmem:[%s2672 + $0x78] sm:$0xff]
    %v2689 = vld [vmem:[%s2672 + $0x80] sm:$0xff]
    %v2690 = vld [vmem:[%s2672 + $0x88] sm:$0xff]
    %v2691 = vld [vmem:[%s2672 + $0x90] sm:$0xff]
    %v2692 = vld [vmem:[%s2672 + $0x98] sm:$0xff]
    %v2693 = vld [vmem:[%s2672 + $0xa0] sm:$0xff]
    %v2694 = vld [vmem:[%s2672 + $0xa8] sm:$0xff]
    %v2695 = vld [vmem:[%s2672 + $0xb0] sm:$0xff]
    %v2696 = vld [vmem:[%s2672 + $0xb8] sm:$0xff]
    %v2697 = vld [vmem:[%s2672 + $0xc0] sm:$0xff]
    %v2698 = vld [vmem:[%s2672 + $0xc8] sm:$0xff]
    %v2699 = vld [vmem:[%s2672 + $0xd0] sm:$0xff]
    %v2700 = vld [vmem:[%s2672 + $0xd8] sm:$0xff]
    %v2701 = vld [vmem:[%s2672 + $0xe0] sm:$0xff]
    %v2702 = vld [vmem:[%s2672 + $0xe8] sm:$0xff]
    %v2703 = vld [vmem:[%s2672 + $0xf0] sm:$0xff]
    %v2704 = vld [vmem:[%s2672 + $0xf8] sm:$0xff]
    %v2705 = vld [vmem:[%s2672 + $0x100] sm:$0xff]
    %v2706 = vld [vmem:[%s2672 + $0x108] sm:$0xff]
    %v2707 = vld [vmem:[%s2672 + $0x110] sm:$0xff]
    %v2708 = vld [vmem:[%s2672 + $0x118] sm:$0xff]
    %v2709 = vld [vmem:[%s2672 + $0x120] sm:$0xff]
    %v2710 = vld [vmem:[%s2672 + $0x128] sm:$0xff]
    %v2711 = vld [vmem:[%s2672 + $0x130] sm:$0xff]
    %v2712 = vld [vmem:[%s2672 + $0x138] sm:$0xff]
    %v2713 = vld [vmem:[%s2672 + $0x140] sm:$0xff]
    %v2714 = vld [vmem:[%s2672 + $0x148] sm:$0xff]
    %v2715 = vld [vmem:[%s2672 + $0x150] sm:$0xff]
    %v2716 = vld [vmem:[%s2672 + $0x158] sm:$0xff]
    %v2717 = vld [vmem:[%s2672 + $0x160] sm:$0xff]
    %v2718 = vld [vmem:[%s2672 + $0x168] sm:$0xff]
    %v2719 = vld [vmem:[%s2672 + $0x170] sm:$0xff]
    %v2720 = vld [vmem:[%s2672 + $0x178] sm:$0xff]
    %v2721 = vld [vmem:[%s2672 + $0x180] sm:$0xff]
    %v2722 = vld [vmem:[%s2672 + $0x188] sm:$0xff]
    %v2723 = vld [vmem:[%s2672 + $0x190] sm:$0xff]
    %v2724 = vld [vmem:[%s2672 + $0x198] sm:$0xff]
    %v2725 = vld [vmem:[%s2672 + $0x1a0] sm:$0xff]
    %v2726 = vld [vmem:[%s2672 + $0x1a8] sm:$0xff]
    %v2727 = vld [vmem:[%s2672 + $0x1b0] sm:$0xff]
    %v2728 = vld [vmem:[%s2672 + $0x1b8] sm:$0xff]
    %v2730 = vsel %vm1959, %v2664, 0
    %v2733 = vsel %vm1959, %v2670, 0
    %2735 = vmatprep.subr.mxu0 %v2674
    %2736 = vmatpush1.msra.mxu0 %v2673
    %2737 = vmatprep.subr.mxu0 %v2676
    %2738 = vmatpush1.msra.mxu0 %v2675
    %2739 = vmatprep.subr.mxu0 %v2678
    %2740 = vmatpush1.msra.mxu0 %v2677
    %2741 = vmatprep.subr.mxu0 %v2680
    %2742 = vmatpush1.msra.mxu0 %v2679
    %2743 = vmatprep.subr.mxu0 %v2682
    %2744 = vmatpush1.msra.mxu0 %v2681
    %2745 = vmatprep.subr.mxu0 %v2684
    %2746 = vmatpush1.msra.mxu0 %v2683
    %2747 = vmatprep.subr.mxu0 %v2686
    %2748 = vmatpush1.msra.mxu0 %v2685
    %2749 = vmatprep.subr.mxu0 %v2688
    %2750 = vmatpush1.msra.mxu0 %v2687
    %2751 = vmatprep.subr.mxu0 %v2690
    %2752 = vmatpush1.msra.mxu0 %v2689
    %2753 = vmatprep.subr.mxu0 %v2692
    %2754 = vmatpush1.msra.mxu0 %v2691
    %2755 = vmatprep.subr.mxu0 %v2694
    %2756 = vmatpush1.msra.mxu0 %v2693
    %2757 = vmatprep.subr.mxu0 %v2696
    %2758 = vmatpush1.msra.mxu0 %v2695
    %2759 = vmatprep.subr.mxu0 %v2698
    %2760 = vmatpush1.msra.mxu0 %v2697
    %2761 = vmatprep.subr.mxu0 %v2700
    %2762 = vmatpush1.msra.mxu0 %v2699
    %2763 = vmatprep.subr.mxu0 %v2702
    %2764 = vmatpush1.msra.mxu0 %v2701
    %2765 = vmatprep.subr.mxu0 %v2704
    %2766 = vmatpush1.msra.mxu0 %v2703
    %2767 = vmatprep.subr.mxu0 %v2706
    %2768 = vmatpush1.msra.mxu0 %v2705
    %2769 = vmatprep.subr.mxu0 %v2708
    %2770 = vmatpush1.msra.mxu0 %v2707
    %2771 = vmatprep.subr.mxu0 %v2710
    %2772 = vmatpush1.msra.mxu0 %v2709
    %2773 = vmatprep.subr.mxu0 %v2712
    %2774 = vmatpush1.msra.mxu0 %v2711
    %2775 = vmatprep.subr.mxu0 %v2714
    %2776 = vmatpush1.msra.mxu0 %v2713
    %2777 = vmatprep.subr.mxu0 %v2716
    %2778 = vmatpush1.msra.mxu0 %v2715
    %2779 = vmatprep.subr.mxu0 %v2718
    %2780 = vmatpush1.msra.mxu0 %v2717
    %2781 = vmatprep.subr.mxu0 %v2720
    %2782 = vmatpush1.msra.mxu0 %v2719
    %2783 = vmatprep.subr.mxu0 %v2722
    %2784 = vmatpush1.msra.mxu0 %v2721
    %2785 = vmatprep.subr.mxu0 %v2724
    %2786 = vmatpush1.msra.mxu0 %v2723
    %2787 = vmatprep.subr.mxu0 %v2726
    %2788 = vmatpush1.msra.mxu0 %v2725
    %2789 = vmatprep.subr.mxu0 %v2728
    %2790 = vmatpush1.msra.mxu0 %v2727
    %2791 = vmatprep.subr.mxu0 0.0
    %2792 = vmatpush1.msra.mxu0 0.0
    %2793 = vmatprep.subr.mxu0 0.0
    %2794 = vmatpush1.msra.mxu0 0.0
    %2795 = vmatprep.subr.mxu0 0.0
    %2796 = vmatpush1.msra.mxu0 0.0
    %2797 = vmatprep.subr.mxu0 0.0
    %2798 = vmatpush1.msra.mxu0 0.0
    %2799 = vmatprep.mubr.f32.mxu0 %v2730
    %2800 = vmatmul.mubr.f32.gmra.mrb[0].mxu0 %v2662
    %v2801 = vpop.f32.mrb[0].mxu0
    %v2802 = vadd.f32 0.0, %v2801
    %v2803 = vpop.f32.mrb[0].mxu0
    %v2804 = vadd.f32 0.0, %v2803
    %2805 = vmatprep.mubr.f32.mxu0 %v2733
    %2806 = vmatmul.mubr.f32.gmra.mrb[0].mxu0 %v2668
    %v2807 = vpop.f32.mrb[0].mxu0
    %v2808 = vadd.f32 0.0, %v2807
    %v2809 = vpop.f32.mrb[0].mxu0
    %v2810 = vadd.f32 0.0, %v2809
    %2811 = vdwg.mxu0
    %v2812 = vadd.f32 %v2582, %v2802
    %v2813 = vadd.f32 %v2583, %v2804
    %v2814 = vadd.f32 %v2584, %v2808
    %v2815 = vadd.f32 %v2585, %v2810
    %s2816 = scalar_lea.vmem %s5, 48
    %v2817 = vld [vmem:[%s2816] sm:$0xff]
    %v2818 = vld [vmem:[%s2816 + $0x8] sm:$0x3]
    %v2820 = vsel %vm2111, %v2817, 0
    %v2823 = vsel %vm2111, %v2818, 0
    %2825 = vmatprep.subr.mxu0 %v2101
    %2826 = vmatpush1.msra.mxu0 %v2100
    %2827 = vmatprep.subr.mxu0 %v2103
    %2828 = vmatpush1.msra.mxu0 %v2102
    %2829 = vmatprep.subr.mxu0 %v2105
    %2830 = vmatpush1.msra.mxu0 %v2104
    %2831 = vmatprep.subr.mxu0 %v2123
    %2832 = vmatpush1.msra.mxu0 %v2120
    %2833 = vmatprep.subr.mxu0 0.0
    %2834 = vmatpush1.msra.mxu0 0.0
    %2835 = vmatprep.subr.mxu0 0.0
    %2836 = vmatpush1.msra.mxu0 0.0
    %2837 = vmatprep.subr.mxu0 0.0
    %2838 = vmatpush1.msra.mxu0 0.0
    %2839 = vmatprep.subr.mxu0 0.0
    %2840 = vmatpush1.msra.mxu0 0.0
    %2841 = vmatprep.subr.mxu0 0.0
    %2842 = vmatpush1.msra.mxu0 0.0
    %2843 = vmatprep.subr.mxu0 0.0
    %2844 = vmatpush1.msra.mxu0 0.0
    %2845 = vmatprep.subr.mxu0 0.0
    %2846 = vmatpush1.msra.mxu0 0.0
    %2847 = vmatprep.subr.mxu0 0.0
    %2848 = vmatpush1.msra.mxu0 0.0
    %2849 = vmatprep.subr.mxu0 0.0
    %2850 = vmatpush1.msra.mxu0 0.0
    %2851 = vmatprep.subr.mxu0 0.0
    %2852 = vmatpush1.msra.mxu0 0.0
    %2853 = vmatprep.subr.mxu0 0.0
    %2854 = vmatpush1.msra.mxu0 0.0
    %2855 = vmatprep.subr.mxu0 0.0
    %2856 = vmatpush1.msra.mxu0 0.0
    %2857 = vmatprep.subr.mxu0 0.0
    %2858 = vmatpush1.msra.mxu0 0.0
    %2859 = vmatprep.subr.mxu0 0.0
    %2860 = vmatpush1.msra.mxu0 0.0
    %2861 = vmatprep.subr.mxu0 0.0
    %2862 = vmatpush1.msra.mxu0 0.0
    %2863 = vmatprep.subr.mxu0 0.0
    %2864 = vmatpush1.msra.mxu0 0.0
    %2865 = vmatprep.subr.mxu0 0.0
    %2866 = vmatpush1.msra.mxu0 0.0
    %2867 = vmatprep.subr.mxu0 0.0
    %2868 = vmatpush1.msra.mxu0 0.0
    %2869 = vmatprep.subr.mxu0 0.0
    %2870 = vmatpush1.msra.mxu0 0.0
    %2871 = vmatprep.subr.mxu0 0.0
    %2872 = vmatpush1.msra.mxu0 0.0
    %2873 = vmatprep.subr.mxu0 0.0
    %2874 = vmatpush1.msra.mxu0 0.0
    %2875 = vmatprep.subr.mxu0 0.0
    %2876 = vmatpush1.msra.mxu0 0.0
    %2877 = vmatprep.subr.mxu0 0.0
    %2878 = vmatpush1.msra.mxu0 0.0
    %2879 = vmatprep.subr.mxu0 0.0
    %2880 = vmatpush1.msra.mxu0 0.0
    %2881 = vmatprep.subr.mxu0 0.0
    %2882 = vmatpush1.msra.mxu0 0.0
    %2883 = vmatprep.subr.mxu0 0.0
    %2884 = vmatpush1.msra.mxu0 0.0
    %2885 = vmatprep.subr.mxu0 0.0
    %2886 = vmatpush1.msra.mxu0 0.0
    %2887 = vmatprep.subr.mxu0 0.0
    %2888 = vmatpush1.msra.mxu0 0.0
    %2889 = vmatprep.mubr.f32.mxu0 0.0
    %2890 = vmatmul.mubr.f32.gmra.mrb[0].mxu0 %v2820
    %v2891 = vpop.f32.mrb[0].mxu0
    %v2892 = vadd.f32 0.0, %v2891
    %v2893 = vpop.f32.mrb[0].mxu0
    %v2894 = vadd.f32 0.0, %v2893
    %2895 = vmatprep.mubr.f32.mxu0 0.0
    %2896 = vmatmul.mubr.f32.gmra.mrb[0].mxu0 %v2823
    %v2897 = vpop.f32.mrb[0].mxu0
    %v2898 = vadd.f32 0.0, %v2897
    %v2899 = vpop.f32.mrb[0].mxu0
    %v2900 = vadd.f32 0.0, %v2899
    %2901 = vdwg.mxu0
    %s2902 = scalar_lea.vmem %s6, 1344
    %v2903 = vld [vmem:[%s2902] sm:$0xff]
    %v2904 = vld [vmem:[%s2902 + $0x8] sm:$0xff]
    %v2905 = vld [vmem:[%s2902 + $0x10] sm:$0xff]
    %v2906 = vld [vmem:[%s2902 + $0x18] sm:$0xff]
    %v2907 = vld [vmem:[%s2902 + $0x20] sm:$0xff]
    %v2908 = vld [vmem:[%s2902 + $0x28] sm:$0xff]
    %v2909 = vld [vmem:[%s2902 + $0x30] sm:$0xff]
    %v2910 = vld [vmem:[%s2902 + $0x38] sm:$0xff]
    %v2911 = vld [vmem:[%s2902 + $0x40] sm:$0xff]
    %v2912 = vld [vmem:[%s2902 + $0x48] sm:$0xff]
    %v2913 = vld [vmem:[%s2902 + $0x50] sm:$0xff]
    %v2914 = vld [vmem:[%s2902 + $0x58] sm:$0xff]
    %v2915 = vld [vmem:[%s2902 + $0x60] sm:$0xff]
    %v2916 = vld [vmem:[%s2902 + $0x68] sm:$0xff]
    %v2917 = vld [vmem:[%s2902 + $0x70] sm:$0xff]
    %v2918 = vld [vmem:[%s2902 + $0x78] sm:$0xff]
    %v2919 = vld [vmem:[%s2902 + $0x80] sm:$0xff]
    %v2920 = vld [vmem:[%s2902 + $0x88] sm:$0xff]
    %v2921 = vld [vmem:[%s2902 + $0x90] sm:$0xff]
    %v2922 = vld [vmem:[%s2902 + $0x98] sm:$0xff]
    %v2923 = vld [vmem:[%s2902 + $0xa0] sm:$0xff]
    %v2924 = vld [vmem:[%s2902 + $0xa8] sm:$0xff]
    %v2925 = vld [vmem:[%s2902 + $0xb0] sm:$0xff]
    %v2926 = vld [vmem:[%s2902 + $0xb8] sm:$0xff]
    %v2927 = vld [vmem:[%s2902 + $0xc0] sm:$0xff]
    %v2928 = vld [vmem:[%s2902 + $0xc8] sm:$0xff]
    %v2929 = vld [vmem:[%s2902 + $0xd0] sm:$0xff]
    %v2930 = vld [vmem:[%s2902 + $0xd8] sm:$0xff]
    %v2931 = vld [vmem:[%s2902 + $0xe0] sm:$0xff]
    %v2932 = vld [vmem:[%s2902 + $0xe8] sm:$0xff]
    %v2933 = vld [vmem:[%s2902 + $0xf0] sm:$0xff]
    %v2934 = vld [vmem:[%s2902 + $0xf8] sm:$0xff]
    %v2935 = vld [vmem:[%s2902 + $0x100] sm:$0xff]
    %v2936 = vld [vmem:[%s2902 + $0x108] sm:$0xff]
    %v2937 = vld [vmem:[%s2902 + $0x110] sm:$0xff]
    %v2938 = vld [vmem:[%s2902 + $0x118] sm:$0xff]
    %v2939 = vld [vmem:[%s2902 + $0x120] sm:$0xff]
    %v2940 = vld [vmem:[%s2902 + $0x128] sm:$0xff]
    %v2941 = vld [vmem:[%s2902 + $0x130] sm:$0xff]
    %v2942 = vld [vmem:[%s2902 + $0x138] sm:$0xff]
    %v2943 = vld [vmem:[%s2902 + $0x140] sm:$0xff]
    %v2944 = vld [vmem:[%s2902 + $0x148] sm:$0xff]
    %v2945 = vld [vmem:[%s2902 + $0x150] sm:$0xff]
    %v2946 = vld [vmem:[%s2902 + $0x158] sm:$0xff]
    %v2947 = vld [vmem:[%s2902 + $0x160] sm:$0xff]
    %v2948 = vld [vmem:[%s2902 + $0x168] sm:$0xff]
    %v2949 = vld [vmem:[%s2902 + $0x170] sm:$0xff]
    %v2950 = vld [vmem:[%s2902 + $0x178] sm:$0xff]
    %v2951 = vld [vmem:[%s2902 + $0x180] sm:$0xff]
    %v2952 = vld [vmem:[%s2902 + $0x188] sm:$0xff]
    %v2953 = vld [vmem:[%s2902 + $0x190] sm:$0xff]
    %v2954 = vld [vmem:[%s2902 + $0x198] sm:$0xff]
    %v2955 = vld [vmem:[%s2902 + $0x1a0] sm:$0xff]
    %v2956 = vld [vmem:[%s2902 + $0x1a8] sm:$0xff]
    %v2957 = vld [vmem:[%s2902 + $0x1b0] sm:$0xff]
    %v2958 = vld [vmem:[%s2902 + $0x1b8] sm:$0xff]
    %v2960 = vsel %vm1959, %v2894, 0
    %v2963 = vsel %vm1959, %v2900, 0
    %2965 = vmatprep.subr.mxu0 %v2904
    %2966 = vmatpush1.msra.mxu0 %v2903
    %2967 = vmatprep.subr.mxu0 %v2906
    %2968 = vmatpush1.msra.mxu0 %v2905
    %2969 = vmatprep.subr.mxu0 %v2908
    %2970 = vmatpush1.msra.mxu0 %v2907
    %2971 = vmatprep.subr.mxu0 %v2910
    %2972 = vmatpush1.msra.mxu0 %v2909
    %2973 = vmatprep.subr.mxu0 %v2912
    %2974 = vmatpush1.msra.mxu0 %v2911
    %2975 = vmatprep.subr.mxu0 %v2914
    %2976 = vmatpush1.msra.mxu0 %v2913
    %2977 = vmatprep.subr.mxu0 %v2916
    %2978 = vmatpush1.msra.mxu0 %v2915
    %2979 = vmatprep.subr.mxu0 %v2918
    %2980 = vmatpush1.msra.mxu0 %v2917
    %2981 = vmatprep.subr.mxu0 %v2920
    %2982 = vmatpush1.msra.mxu0 %v2919
    %2983 = vmatprep.subr.mxu0 %v2922
    %2984 = vmatpush1.msra.mxu0 %v2921
    %2985 = vmatprep.subr.mxu0 %v2924
    %2986 = vmatpush1.msra.mxu0 %v2923
    %2987 = vmatprep.subr.mxu0 %v2926
    %2988 = vmatpush1.msra.mxu0 %v2925
    %2989 = vmatprep.subr.mxu0 %v2928
    %2990 = vmatpush1.msra.mxu0 %v2927
    %2991 = vmatprep.subr.mxu0 %v2930
    %2992 = vmatpush1.msra.mxu0 %v2929
    %2993 = vmatprep.subr.mxu0 %v2932
    %2994 = vmatpush1.msra.mxu0 %v2931
    %2995 = vmatprep.subr.mxu0 %v2934
    %2996 = vmatpush1.msra.mxu0 %v2933
    %2997 = vmatprep.subr.mxu0 %v2936
    %2998 = vmatpush1.msra.mxu0 %v2935
    %2999 = vmatprep.subr.mxu0 %v2938
    %3000 = vmatpush1.msra.mxu0 %v2937
    %3001 = vmatprep.subr.mxu0 %v2940
    %3002 = vmatpush1.msra.mxu0 %v2939
    %3003 = vmatprep.subr.mxu0 %v2942
    %3004 = vmatpush1.msra.mxu0 %v2941
    %3005 = vmatprep.subr.mxu0 %v2944
    %3006 = vmatpush1.msra.mxu0 %v2943
    %3007 = vmatprep.subr.mxu0 %v2946
    %3008 = vmatpush1.msra.mxu0 %v2945
    %3009 = vmatprep.subr.mxu0 %v2948
    %3010 = vmatpush1.msra.mxu0 %v2947
    %3011 = vmatprep.subr.mxu0 %v2950
    %3012 = vmatpush1.msra.mxu0 %v2949
    %3013 = vmatprep.subr.mxu0 %v2952
    %3014 = vmatpush1.msra.mxu0 %v2951
    %3015 = vmatprep.subr.mxu0 %v2954
    %3016 = vmatpush1.msra.mxu0 %v2953
    %3017 = vmatprep.subr.mxu0 %v2956
    %3018 = vmatpush1.msra.mxu0 %v2955
    %3019 = vmatprep.subr.mxu0 %v2958
    %3020 = vmatpush1.msra.mxu0 %v2957
    %3021 = vmatprep.subr.mxu0 0.0
    %3022 = vmatpush1.msra.mxu0 0.0
    %3023 = vmatprep.subr.mxu0 0.0
    %3024 = vmatpush1.msra.mxu0 0.0
    %3025 = vmatprep.subr.mxu0 0.0
    %3026 = vmatpush1.msra.mxu0 0.0
    %3027 = vmatprep.subr.mxu0 0.0
    %3028 = vmatpush1.msra.mxu0 0.0
    %3029 = vmatprep.mubr.f32.mxu0 %v2960
    %3030 = vmatmul.mubr.f32.gmra.mrb[0].mxu0 %v2892
    %v3031 = vpop.f32.mrb[0].mxu0
    %v3032 = vadd.f32 0.0, %v3031
    %v3033 = vpop.f32.mrb[0].mxu0
    %v3034 = vadd.f32 0.0, %v3033
    %3035 = vmatprep.mubr.f32.mxu0 %v2963
    %3036 = vmatmul.mubr.f32.gmra.mrb[0].mxu0 %v2898
    %v3037 = vpop.f32.mrb[0].mxu0
    %v3038 = vadd.f32 0.0, %v3037
    %v3039 = vpop.f32.mrb[0].mxu0
    %v3040 = vadd.f32 0.0, %v3039
    %3041 = vdwg.mxu0
    %v3042 = vadd.f32 %v2812, %v3032
    %v3043 = vadd.f32 %v2813, %v3034
    %v3044 = vadd.f32 %v2814, %v3038
    %v3045 = vadd.f32 %v2815, %v3040
    %v3046 = vmax.f32 %v3042, 0.0
    %v3047 = vmax.f32 %v3043, 0.0
    %v3048 = vmax.f32 %v3044, 0.0
    %v3049 = vmax.f32 %v3045, 0.0
    %v3050 = vld [vmem:[%s8] sm:$0xff]
    %v3051 = vld [vmem:[%s8 + $0x8] sm:$0xff]
    %v3052 = vld [vmem:[%s8 + $0x10] sm:$0xff]
    %v3053 = vld [vmem:[%s8 + $0x18] sm:$0xff]
    %v3054 = vld [vmem:[%s8 + $0x20] sm:$0xff]
    %v3055 = vld [vmem:[%s8 + $0x28] sm:$0xff]
    %v3056 = vld [vmem:[%s8 + $0x30] sm:$0xff]
    %v3057 = vld [vmem:[%s8 + $0x38] sm:$0xff]
    %v3058 = vld [vmem:[%s8 + $0x40] sm:$0xff]
    %v3059 = vld [vmem:[%s8 + $0x48] sm:$0xff]
    %v3060 = vld [vmem:[%s8 + $0x50] sm:$0xff]
    %v3061 = vld [vmem:[%s8 + $0x58] sm:$0xff]
    %v3062 = vld [vmem:[%s8 + $0x60] sm:$0xff]
    %v3063 = vld [vmem:[%s8 + $0x68] sm:$0xff]
    %v3064 = vld [vmem:[%s8 + $0x70] sm:$0xff]
    %v3065 = vld [vmem:[%s8 + $0x78] sm:$0xff]
    %v3066 = vld [vmem:[%s8 + $0x80] sm:$0xff]
    %v3067 = vld [vmem:[%s8 + $0x88] sm:$0xff]
    %v3068 = vld [vmem:[%s8 + $0x90] sm:$0xff]
    %v3069 = vld [vmem:[%s8 + $0x98] sm:$0xff]
    %v3070 = vld [vmem:[%s8 + $0xa0] sm:$0xff]
    %v3071 = vld [vmem:[%s8 + $0xa8] sm:$0xff]
    %v3072 = vld [vmem:[%s8 + $0xb0] sm:$0xff]
    %v3073 = vld [vmem:[%s8 + $0xb8] sm:$0xff]
    %v3074 = vld [vmem:[%s8 + $0xc0] sm:$0xff]
    %v3075 = vld [vmem:[%s8 + $0xc8] sm:$0xff]
    %v3076 = vld [vmem:[%s8 + $0xd0] sm:$0xff]
    %v3077 = vld [vmem:[%s8 + $0xd8] sm:$0xff]
    %v3078 = vld [vmem:[%s8 + $0xe0] sm:$0xff]
    %v3079 = vld [vmem:[%s8 + $0xe8] sm:$0xff]
    %v3080 = vld [vmem:[%s8 + $0xf0] sm:$0xff]
    %v3081 = vld [vmem:[%s8 + $0xf8] sm:$0xff]
    %v3082 = vld [vmem:[%s8 + $0x100] sm:$0xff]
    %v3083 = vld [vmem:[%s8 + $0x108] sm:$0xff]
    %v3084 = vld [vmem:[%s8 + $0x110] sm:$0xff]
    %v3085 = vld [vmem:[%s8 + $0x118] sm:$0xff]
    %v3086 = vld [vmem:[%s8 + $0x120] sm:$0xff]
    %v3087 = vld [vmem:[%s8 + $0x128] sm:$0xff]
    %v3088 = vld [vmem:[%s8 + $0x130] sm:$0xff]
    %v3089 = vld [vmem:[%s8 + $0x138] sm:$0xff]
    %vm3090 = vcmask 261120
    %v3092 = vsel %vm3090, %v3047, 0
    %v3095 = vsel %vm3090, %v3049, 0
    %3097 = vmatprep.subr.mxu0 %v3051
    %3098 = vmatpush1.msra.mxu0 %v3050
    %3099 = vmatprep.subr.mxu0 %v3053
    %3100 = vmatpush1.msra.mxu0 %v3052
    %3101 = vmatprep.subr.mxu0 %v3055
    %3102 = vmatpush1.msra.mxu0 %v3054
    %3103 = vmatprep.subr.mxu0 %v3057
    %3104 = vmatpush1.msra.mxu0 %v3056
    %3105 = vmatprep.subr.mxu0 %v3059
    %3106 = vmatpush1.msra.mxu0 %v3058
    %3107 = vmatprep.subr.mxu0 %v3061
    %3108 = vmatpush1.msra.mxu0 %v3060
    %3109 = vmatprep.subr.mxu0 %v3063
    %3110 = vmatpush1.msra.mxu0 %v3062
    %3111 = vmatprep.subr.mxu0 %v3065
    %3112 = vmatpush1.msra.mxu0 %v3064
    %3113 = vmatprep.subr.mxu0 %v3067
    %3114 = vmatpush1.msra.mxu0 %v3066
    %3115 = vmatprep.subr.mxu0 %v3069
    %3116 = vmatpush1.msra.mxu0 %v3068
    %3117 = vmatprep.subr.mxu0 %v3071
    %3118 = vmatpush1.msra.mxu0 %v3070
    %3119 = vmatprep.subr.mxu0 %v3073
    %3120 = vmatpush1.msra.mxu0 %v3072
    %3121 = vmatprep.subr.mxu0 %v3075
    %3122 = vmatpush1.msra.mxu0 %v3074
    %3123 = vmatprep.subr.mxu0 %v3077
    %3124 = vmatpush1.msra.mxu0 %v3076
    %3125 = vmatprep.subr.mxu0 %v3079
    %3126 = vmatpush1.msra.mxu0 %v3078
    %3127 = vmatprep.subr.mxu0 %v3081
    %3128 = vmatpush1.msra.mxu0 %v3080
    %3129 = vmatprep.subr.mxu0 %v3083
    %3130 = vmatpush1.msra.mxu0 %v3082
    %3131 = vmatprep.subr.mxu0 %v3085
    %3132 = vmatpush1.msra.mxu0 %v3084
    %3133 = vmatprep.subr.mxu0 %v3087
    %3134 = vmatpush1.msra.mxu0 %v3086
    %3135 = vmatprep.subr.mxu0 %v3089
    %3136 = vmatpush1.msra.mxu0 %v3088
    %3137 = vmatprep.subr.mxu0 0.0
    %3138 = vmatpush1.msra.mxu0 0.0
    %3139 = vmatprep.subr.mxu0 0.0
    %3140 = vmatpush1.msra.mxu0 0.0
    %3141 = vmatprep.subr.mxu0 0.0
    %3142 = vmatpush1.msra.mxu0 0.0
    %3143 = vmatprep.subr.mxu0 0.0
    %3144 = vmatpush1.msra.mxu0 0.0
    %3145 = vmatprep.subr.mxu0 0.0
    %3146 = vmatpush1.msra.mxu0 0.0
    %3147 = vmatprep.subr.mxu0 0.0
    %3148 = vmatpush1.msra.mxu0 0.0
    %3149 = vmatprep.subr.mxu0 0.0
    %3150 = vmatpush1.msra.mxu0 0.0
    %3151 = vmatprep.subr.mxu0 0.0
    %3152 = vmatpush1.msra.mxu0 0.0
    %3153 = vmatprep.subr.mxu0 0.0
    %3154 = vmatpush1.msra.mxu0 0.0
    %3155 = vmatprep.subr.mxu0 0.0
    %3156 = vmatpush1.msra.mxu0 0.0
    %3157 = vmatprep.subr.mxu0 0.0
    %3158 = vmatpush1.msra.mxu0 0.0
    %3159 = vmatprep.subr.mxu0 0.0
    %3160 = vmatpush1.msra.mxu0 0.0
    %3161 = vmatprep.mubr.f32.mxu0 %v3092
    %3162 = vmatmul.mubr.f32.gmra.mrb[0].mxu0 %v3046
    %v3163 = vpop.f32.mrb[0].mxu0
    %v3164 = vadd.f32 0.0, %v3163
    %v3165 = vpop.f32.mrb[0].mxu0
    %v3166 = vadd.f32 0.0, %v3165
    %3167 = vmatprep.mubr.f32.mxu0 %v3095
    %3168 = vmatmul.mubr.f32.gmra.mrb[0].mxu0 %v3048
    %v3169 = vpop.f32.mrb[0].mxu0
    %v3170 = vadd.f32 0.0, %v3169
    %v3171 = vpop.f32.mrb[0].mxu0
    %v3172 = vadd.f32 0.0, %v3171
    %3173 = vdwg.mxu0
    %v3174 = vmax.f32 %v3046, %v3164
    %v3175 = vmax.f32 %v3047, %v3166
    %v3176 = vmax.f32 %v3048, %v3170
    %v3177 = vmax.f32 %v3049, %v3172
    %v3182 = vrot.slane %v3174, 1
    %v3183 = vrot.slane %v3176, 1
    %v3184 = vsel %vm2077, %v3182, %v3183
    %v3185 = vrot.slane %v3175, 1
    %v3186 = vrot.slane %v3177, 1
    %v3187 = vsel %vm2077, %v3185, %v3186
    %v3192 = vmax.f32 %v3174, %v3184
    %v3193 = vmax.f32 %v3175, %v3187
    %v3194 = vmax.f32 %v3176, %v3183
    %v3195 = vmax.f32 %v3177, %v3186
    %v3196 = vld [vmem:[%s10] sm:$0x1]
    %v3197 = vld [vmem:[%s9] sm:$0xff]
    %v3198 = vld [vmem:[%s9 + $0x8] sm:$0xff]
    %v3199 = vld [vmem:[%s9 + $0x10] sm:$0xff]
    %v3200 = vld [vmem:[%s9 + $0x18] sm:$0xff]
    %v3201 = vld [vmem:[%s9 + $0x20] sm:$0xff]
    %v3202 = vld [vmem:[%s9 + $0x28] sm:$0xff]
    %v3203 = vld [vmem:[%s9 + $0x30] sm:$0xff]
    %v3204 = vld [vmem:[%s9 + $0x38] sm:$0xff]
    %v3205 = vld [vmem:[%s9 + $0x40] sm:$0xff]
    %v3206 = vld [vmem:[%s9 + $0x48] sm:$0xff]
    %v3207 = vld [vmem:[%s9 + $0x50] sm:$0xff]
    %v3208 = vld [vmem:[%s9 + $0x58] sm:$0xff]
    %v3209 = vld [vmem:[%s9 + $0x60] sm:$0xff]
    %v3210 = vld [vmem:[%s9 + $0x68] sm:$0xff]
    %v3211 = vld [vmem:[%s9 + $0x70] sm:$0xff]
    %v3212 = vld [vmem:[%s9 + $0x78] sm:$0xff]
    %v3213 = vld [vmem:[%s9 + $0x80] sm:$0xff]
    %v3214 = vld [vmem:[%s9 + $0x88] sm:$0xff]
    %v3215 = vld [vmem:[%s9 + $0x90] sm:$0xff]
    %v3216 = vld [vmem:[%s9 + $0x98] sm:$0xff]
    %v3218 = vsel %vm3090, %v3193, 0
    %3220 = vmatprep.subr.mxu0 0.0
    %3221 = vmatpush1.msra.mxu0 %v3197
    %3222 = vmatprep.subr.mxu0 0.0
    %3223 = vmatpush1.msra.mxu0 %v3198
    %3224 = vmatprep.subr.mxu0 0.0
    %3225 = vmatpush1.msra.mxu0 %v3199
    %3226 = vmatprep.subr.mxu0 0.0
    %3227 = vmatpush1.msra.mxu0 %v3200
    %3228 = vmatprep.subr.mxu0 0.0
    %3229 = vmatpush1.msra.mxu0 %v3201
    %3230 = vmatprep.subr.mxu0 0.0
    %3231 = vmatpush1.msra.mxu0 %v3202
    %3232 = vmatprep.subr.mxu0 0.0
    %3233 = vmatpush1.msra.mxu0 %v3203
    %3234 = vmatprep.subr.mxu0 0.0
    %3235 = vmatpush1.msra.mxu0 %v3204
    %3236 = vmatprep.subr.mxu0 0.0
    %3237 = vmatpush1.msra.mxu0 %v3205
    %3238 = vmatprep.subr.mxu0 0.0
    %3239 = vmatpush1.msra.mxu0 %v3206
    %3240 = vmatprep.subr.mxu0 0.0
    %3241 = vmatpush1.msra.mxu0 %v3207
    %3242 = vmatprep.subr.mxu0 0.0
    %3243 = vmatpush1.msra.mxu0 %v3208
    %3244 = vmatprep.subr.mxu0 0.0
    %3245 = vmatpush1.msra.mxu0 %v3209
    %3246 = vmatprep.subr.mxu0 0.0
    %3247 = vmatpush1.msra.mxu0 %v3210
    %3248 = vmatprep.subr.mxu0 0.0
    %3249 = vmatpush1.msra.mxu0 %v3211
    %3250 = vmatprep.subr.mxu0 0.0
    %3251 = vmatpush1.msra.mxu0 %v3212
    %3252 = vmatprep.subr.mxu0 0.0
    %3253 = vmatpush1.msra.mxu0 %v3213
    %3254 = vmatprep.subr.mxu0 0.0
    %3255 = vmatpush1.msra.mxu0 %v3214
    %3256 = vmatprep.subr.mxu0 0.0
    %3257 = vmatpush1.msra.mxu0 %v3215
    %3258 = vmatprep.subr.mxu0 0.0
    %3259 = vmatpush1.msra.mxu0 %v3216
    %3260 = vmatprep.subr.mxu0 0.0
    %3261 = vmatpush1.msra.mxu0 0.0
    %3262 = vmatprep.subr.mxu0 0.0
    %3263 = vmatpush1.msra.mxu0 0.0
    %3264 = vmatprep.subr.mxu0 0.0
    %3265 = vmatpush1.msra.mxu0 0.0
    %3266 = vmatprep.subr.mxu0 0.0
    %3267 = vmatpush1.msra.mxu0 0.0
    %3268 = vmatprep.subr.mxu0 0.0
    %3269 = vmatpush1.msra.mxu0 0.0
    %3270 = vmatprep.subr.mxu0 0.0
    %3271 = vmatpush1.msra.mxu0 0.0
    %3272 = vmatprep.subr.mxu0 0.0
    %3273 = vmatpush1.msra.mxu0 0.0
    %3274 = vmatprep.subr.mxu0 0.0
    %3275 = vmatpush1.msra.mxu0 0.0
    %3276 = vmatprep.subr.mxu0 0.0
    %3277 = vmatpush1.msra.mxu0 0.0
    %3278 = vmatprep.subr.mxu0 0.0
    %3279 = vmatpush1.msra.mxu0 0.0
    %3280 = vmatprep.subr.mxu0 0.0
    %3281 = vmatpush1.msra.mxu0 0.0
    %3282 = vmatprep.subr.mxu0 0.0
    %3283 = vmatpush1.msra.mxu0 0.0
    %3284 = vmatprep.mubr.f32.mxu0 %v3218
    %3285 = vmatmul.mubr.f32.gmra.mrb[0].mxu0 %v3192
    %v3286 = vpop.f32.mrb[0].mxu0
    %v3287 = vadd.f32 0.0, %v3286
    %v3288 = vpop.f32.mrb[0].mxu0
    %3289 = vdwg.mxu0
    %v3290 = vadd.f32 %v3196, %v3287
    %s3291 = scalar_lea.vmem %s9, 160
    %v3292 = vld [vmem:[%s3291] sm:$0xff]
    %v3293 = vld [vmem:[%s3291 + $0x8] sm:$0xff]
    %v3294 = vld [vmem:[%s3291 + $0x10] sm:$0xff]
    %v3295 = vld [vmem:[%s3291 + $0x18] sm:$0xff]
    %v3296 = vld [vmem:[%s3291 + $0x20] sm:$0xff]
    %v3297 = vld [vmem:[%s3291 + $0x28] sm:$0xff]
    %v3298 = vld [vmem:[%s3291 + $0x30] sm:$0xff]
    %v3299 = vld [vmem:[%s3291 + $0x38] sm:$0xff]
    %v3300 = vld [vmem:[%s3291 + $0x40] sm:$0xff]
    %v3301 = vld [vmem:[%s3291 + $0x48] sm:$0xff]
    %v3302 = vld [vmem:[%s3291 + $0x50] sm:$0xff]
    %v3303 = vld [vmem:[%s3291 + $0x58] sm:$0xff]
    %v3304 = vld [vmem:[%s3291 + $0x60] sm:$0xff]
    %v3305 = vld [vmem:[%s3291 + $0x68] sm:$0xff]
    %v3306 = vld [vmem:[%s3291 + $0x70] sm:$0xff]
    %v3307 = vld [vmem:[%s3291 + $0x78] sm:$0xff]
    %v3308 = vld [vmem:[%s3291 + $0x80] sm:$0xff]
    %v3309 = vld [vmem:[%s3291 + $0x88] sm:$0xff]
    %v3310 = vld [vmem:[%s3291 + $0x90] sm:$0xff]
    %v3311 = vld [vmem:[%s3291 + $0x98] sm:$0xff]
    %v3313 = vrot.slane %v3192, 1
    %v3314 = vrot.slane %v3193, 1
    %v3316 = vsel %vm3090, %v3314, 0
    %3318 = vmatprep.subr.mxu0 0.0
    %3319 = vmatpush1.msra.mxu0 %v3292
    %3320 = vmatprep.subr.mxu0 0.0
    %3321 = vmatpush1.msra.mxu0 %v3293
    %3322 = vmatprep.subr.mxu0 0.0
    %3323 = vmatpush1.msra.mxu0 %v3294
    %3324 = vmatprep.subr.mxu0 0.0
    %3325 = vmatpush1.msra.mxu0 %v3295
    %3326 = vmatprep.subr.mxu0 0.0
    %3327 = vmatpush1.msra.mxu0 %v3296
    %3328 = vmatprep.subr.mxu0 0.0
    %3329 = vmatpush1.msra.mxu0 %v3297
    %3330 = vmatprep.subr.mxu0 0.0
    %3331 = vmatpush1.msra.mxu0 %v3298
    %3332 = vmatprep.subr.mxu0 0.0
    %3333 = vmatpush1.msra.mxu0 %v3299
    %3334 = vmatprep.subr.mxu0 0.0
    %3335 = vmatpush1.msra.mxu0 %v3300
    %3336 = vmatprep.subr.mxu0 0.0
    %3337 = vmatpush1.msra.mxu0 %v3301
    %3338 = vmatprep.subr.mxu0 0.0
    %3339 = vmatpush1.msra.mxu0 %v3302
    %3340 = vmatprep.subr.mxu0 0.0
    %3341 = vmatpush1.msra.mxu0 %v3303
    %3342 = vmatprep.subr.mxu0 0.0
    %3343 = vmatpush1.msra.mxu0 %v3304
    %3344 = vmatprep.subr.mxu0 0.0
    %3345 = vmatpush1.msra.mxu0 %v3305
    %3346 = vmatprep.subr.mxu0 0.0
    %3347 = vmatpush1.msra.mxu0 %v3306
    %3348 = vmatprep.subr.mxu0 0.0
    %3349 = vmatpush1.msra.mxu0 %v3307
    %3350 = vmatprep.subr.mxu0 0.0
    %3351 = vmatpush1.msra.mxu0 %v3308
    %3352 = vmatprep.subr.mxu0 0.0
    %3353 = vmatpush1.msra.mxu0 %v3309
    %3354 = vmatprep.subr.mxu0 0.0
    %3355 = vmatpush1.msra.mxu0 %v3310
    %3356 = vmatprep.subr.mxu0 0.0
    %3357 = vmatpush1.msra.mxu0 %v3311
    %3358 = vmatprep.subr.mxu0 0.0
    %3359 = vmatpush1.msra.mxu0 0.0
    %3360 = vmatprep.subr.mxu0 0.0
    %3361 = vmatpush1.msra.mxu0 0.0
    %3362 = vmatprep.subr.mxu0 0.0
    %3363 = vmatpush1.msra.mxu0 0.0
    %3364 = vmatprep.subr.mxu0 0.0
    %3365 = vmatpush1.msra.mxu0 0.0
    %3366 = vmatprep.subr.mxu0 0.0
    %3367 = vmatpush1.msra.mxu0 0.0
    %3368 = vmatprep.subr.mxu0 0.0
    %3369 = vmatpush1.msra.mxu0 0.0
    %3370 = vmatprep.subr.mxu0 0.0
    %3371 = vmatpush1.msra.mxu0 0.0
    %3372 = vmatprep.subr.mxu0 0.0
    %3373 = vmatpush1.msra.mxu0 0.0
    %3374 = vmatprep.subr.mxu0 0.0
    %3375 = vmatpush1.msra.mxu0 0.0
    %3376 = vmatprep.subr.mxu0 0.0
    %3377 = vmatpush1.msra.mxu0 0.0
    %3378 = vmatprep.subr.mxu0 0.0
    %3379 = vmatpush1.msra.mxu0 0.0
    %3380 = vmatprep.subr.mxu0 0.0
    %3381 = vmatpush1.msra.mxu0 0.0
    %3382 = vmatprep.mubr.f32.mxu0 %v3316
    %3383 = vmatmul.mubr.f32.gmra.mrb[0].mxu0 %v3313
    %v3384 = vpop.f32.mrb[0].mxu0
    %v3385 = vadd.f32 0.0, %v3384
    %v3386 = vpop.f32.mrb[0].mxu0
    %3387 = vdwg.mxu0
    %v3388 = vadd.f32 %v3290, %v3385
    %s3389 = scalar_lea.vmem %s9, 320
    %v3390 = vld [vmem:[%s3389] sm:$0xff]
    %v3391 = vld [vmem:[%s3389 + $0x8] sm:$0xff]
    %v3392 = vld [vmem:[%s3389 + $0x10] sm:$0xff]
    %v3393 = vld [vmem:[%s3389 + $0x18] sm:$0xff]
    %v3394 = vld [vmem:[%s3389 + $0x20] sm:$0xff]
    %v3395 = vld [vmem:[%s3389 + $0x28] sm:$0xff]
    %v3396 = vld [vmem:[%s3389 + $0x30] sm:$0xff]
    %v3397 = vld [vmem:[%s3389 + $0x38] sm:$0xff]
    %v3398 = vld [vmem:[%s3389 + $0x40] sm:$0xff]
    %v3399 = vld [vmem:[%s3389 + $0x48] sm:$0xff]
    %v3400 = vld [vmem:[%s3389 + $0x50] sm:$0xff]
    %v3401 = vld [vmem:[%s3389 + $0x58] sm:$0xff]
    %v3402 = vld [vmem:[%s3389 + $0x60] sm:$0xff]
    %v3403 = vld [vmem:[%s3389 + $0x68] sm:$0xff]
    %v3404 = vld [vmem:[%s3389 + $0x70] sm:$0xff]
    %v3405 = vld [vmem:[%s3389 + $0x78] sm:$0xff]
    %v3406 = vld [vmem:[%s3389 + $0x80] sm:$0xff]
    %v3407 = vld [vmem:[%s3389 + $0x88] sm:$0xff]
    %v3408 = vld [vmem:[%s3389 + $0x90] sm:$0xff]
    %v3409 = vld [vmem:[%s3389 + $0x98] sm:$0xff]
    %v3410 = vrot.slane %v3192, 2
    %v3411 = vrot.slane %v3193, 2
    %v3413 = vsel %vm3090, %v3411, 0
    %3415 = vmatprep.subr.mxu0 0.0
    %3416 = vmatpush1.msra.mxu0 %v3390
    %3417 = vmatprep.subr.mxu0 0.0
    %3418 = vmatpush1.msra.mxu0 %v3391
    %3419 = vmatprep.subr.mxu0 0.0
    %3420 = vmatpush1.msra.mxu0 %v3392
    %3421 = vmatprep.subr.mxu0 0.0
    %3422 = vmatpush1.msra.mxu0 %v3393
    %3423 = vmatprep.subr.mxu0 0.0
    %3424 = vmatpush1.msra.mxu0 %v3394
    %3425 = vmatprep.subr.mxu0 0.0
    %3426 = vmatpush1.msra.mxu0 %v3395
    %3427 = vmatprep.subr.mxu0 0.0
    %3428 = vmatpush1.msra.mxu0 %v3396
    %3429 = vmatprep.subr.mxu0 0.0
    %3430 = vmatpush1.msra.mxu0 %v3397
    %3431 = vmatprep.subr.mxu0 0.0
    %3432 = vmatpush1.msra.mxu0 %v3398
    %3433 = vmatprep.subr.mxu0 0.0
    %3434 = vmatpush1.msra.mxu0 %v3399
    %3435 = vmatprep.subr.mxu0 0.0
    %3436 = vmatpush1.msra.mxu0 %v3400
    %3437 = vmatprep.subr.mxu0 0.0
    %3438 = vmatpush1.msra.mxu0 %v3401
    %3439 = vmatprep.subr.mxu0 0.0
    %3440 = vmatpush1.msra.mxu0 %v3402
    %3441 = vmatprep.subr.mxu0 0.0
    %3442 = vmatpush1.msra.mxu0 %v3403
    %3443 = vmatprep.subr.mxu0 0.0
    %3444 = vmatpush1.msra.mxu0 %v3404
    %3445 = vmatprep.subr.mxu0 0.0
    %3446 = vmatpush1.msra.mxu0 %v3405
    %3447 = vmatprep.subr.mxu0 0.0
    %3448 = vmatpush1.msra.mxu0 %v3406
    %3449 = vmatprep.subr.mxu0 0.0
    %3450 = vmatpush1.msra.mxu0 %v3407
    %3451 = vmatprep.subr.mxu0 0.0
    %3452 = vmatpush1.msra.mxu0 %v3408
    %3453 = vmatprep.subr.mxu0 0.0
    %3454 = vmatpush1.msra.mxu0 %v3409
    %3455 = vmatprep.subr.mxu0 0.0
    %3456 = vmatpush1.msra.mxu0 0.0
    %3457 = vmatprep.subr.mxu0 0.0
    %3458 = vmatpush1.msra.mxu0 0.0
    %3459 = vmatprep.subr.mxu0 0.0
    %3460 = vmatpush1.msra.mxu0 0.0
    %3461 = vmatprep.subr.mxu0 0.0
    %3462 = vmatpush1.msra.mxu0 0.0
    %3463 = vmatprep.subr.mxu0 0.0
    %3464 = vmatpush1.msra.mxu0 0.0
    %3465 = vmatprep.subr.mxu0 0.0
    %3466 = vmatpush1.msra.mxu0 0.0
    %3467 = vmatprep.subr.mxu0 0.0
    %3468 = vmatpush1.msra.mxu0 0.0
    %3469 = vmatprep.subr.mxu0 0.0
    %3470 = vmatpush1.msra.mxu0 0.0
    %3471 = vmatprep.subr.mxu0 0.0
    %3472 = vmatpush1.msra.mxu0 0.0
    %3473 = vmatprep.subr.mxu0 0.0
    %3474 = vmatpush1.msra.mxu0 0.0
    %3475 = vmatprep.subr.mxu0 0.0
    %3476 = vmatpush1.msra.mxu0 0.0
    %3477 = vmatprep.subr.mxu0 0.0
    %3478 = vmatpush1.msra.mxu0 0.0
    %3479 = vmatprep.mubr.f32.mxu0 %v3413
    %3480 = vmatmul.mubr.f32.gmra.mrb[0].mxu0 %v3410
    %v3481 = vpop.f32.mrb[0].mxu0
    %v3482 = vadd.f32 0.0, %v3481
    %v3483 = vpop.f32.mrb[0].mxu0
    %3484 = vdwg.mxu0
    %v3485 = vadd.f32 %v3388, %v3482
    %s3486 = scalar_lea.vmem %s9, 480
    %v3487 = vld [vmem:[%s3486] sm:$0xff]
    %v3488 = vld [vmem:[%s3486 + $0x8] sm:$0xff]
    %v3489 = vld [vmem:[%s3486 + $0x10] sm:$0xff]
    %v3490 = vld [vmem:[%s3486 + $0x18] sm:$0xff]
    %v3491 = vld [vmem:[%s3486 + $0x20] sm:$0xff]
    %v3492 = vld [vmem:[%s3486 + $0x28] sm:$0xff]
    %v3493 = vld [vmem:[%s3486 + $0x30] sm:$0xff]
    %v3494 = vld [vmem:[%s3486 + $0x38] sm:$0xff]
    %v3495 = vld [vmem:[%s3486 + $0x40] sm:$0xff]
    %v3496 = vld [vmem:[%s3486 + $0x48] sm:$0xff]
    %v3497 = vld [vmem:[%s3486 + $0x50] sm:$0xff]
    %v3498 = vld [vmem:[%s3486 + $0x58] sm:$0xff]
    %v3499 = vld [vmem:[%s3486 + $0x60] sm:$0xff]
    %v3500 = vld [vmem:[%s3486 + $0x68] sm:$0xff]
    %v3501 = vld [vmem:[%s3486 + $0x70] sm:$0xff]
    %v3502 = vld [vmem:[%s3486 + $0x78] sm:$0xff]
    %v3503 = vld [vmem:[%s3486 + $0x80] sm:$0xff]
    %v3504 = vld [vmem:[%s3486 + $0x88] sm:$0xff]
    %v3505 = vld [vmem:[%s3486 + $0x90] sm:$0xff]
    %v3506 = vld [vmem:[%s3486 + $0x98] sm:$0xff]
    %v3507 = vrot.slane %v3192, 3
    %v3508 = vrot.slane %v3193, 3
    %v3510 = vsel %vm3090, %v3508, 0
    %3512 = vmatprep.subr.mxu0 0.0
    %3513 = vmatpush1.msra.mxu0 %v3487
    %3514 = vmatprep.subr.mxu0 0.0
    %3515 = vmatpush1.msra.mxu0 %v3488
    %3516 = vmatprep.subr.mxu0 0.0
    %3517 = vmatpush1.msra.mxu0 %v3489
    %3518 = vmatprep.subr.mxu0 0.0
    %3519 = vmatpush1.msra.mxu0 %v3490
    %3520 = vmatprep.subr.mxu0 0.0
    %3521 = vmatpush1.msra.mxu0 %v3491
    %3522 = vmatprep.subr.mxu0 0.0
    %3523 = vmatpush1.msra.mxu0 %v3492
    %3524 = vmatprep.subr.mxu0 0.0
    %3525 = vmatpush1.msra.mxu0 %v3493
    %3526 = vmatprep.subr.mxu0 0.0
    %3527 = vmatpush1.msra.mxu0 %v3494
    %3528 = vmatprep.subr.mxu0 0.0
    %3529 = vmatpush1.msra.mxu0 %v3495
    %3530 = vmatprep.subr.mxu0 0.0
    %3531 = vmatpush1.msra.mxu0 %v3496
    %3532 = vmatprep.subr.mxu0 0.0
    %3533 = vmatpush1.msra.mxu0 %v3497
    %3534 = vmatprep.subr.mxu0 0.0
    %3535 = vmatpush1.msra.mxu0 %v3498
    %3536 = vmatprep.subr.mxu0 0.0
    %3537 = vmatpush1.msra.mxu0 %v3499
    %3538 = vmatprep.subr.mxu0 0.0
    %3539 = vmatpush1.msra.mxu0 %v3500
    %3540 = vmatprep.subr.mxu0 0.0
    %3541 = vmatpush1.msra.mxu0 %v3501
    %3542 = vmatprep.subr.mxu0 0.0
    %3543 = vmatpush1.msra.mxu0 %v3502
    %3544 = vmatprep.subr.mxu0 0.0
    %3545 = vmatpush1.msra.mxu0 %v3503
    %3546 = vmatprep.subr.mxu0 0.0
    %3547 = vmatpush1.msra.mxu0 %v3504
    %3548 = vmatprep.subr.mxu0 0.0
    %3549 = vmatpush1.msra.mxu0 %v3505
    %3550 = vmatprep.subr.mxu0 0.0
    %3551 = vmatpush1.msra.mxu0 %v3506
    %3552 = vmatprep.subr.mxu0 0.0
    %3553 = vmatpush1.msra.mxu0 0.0
    %3554 = vmatprep.subr.mxu0 0.0
    %3555 = vmatpush1.msra.mxu0 0.0
    %3556 = vmatprep.subr.mxu0 0.0
    %3557 = vmatpush1.msra.mxu0 0.0
    %3558 = vmatprep.subr.mxu0 0.0
    %3559 = vmatpush1.msra.mxu0 0.0
    %3560 = vmatprep.subr.mxu0 0.0
    %3561 = vmatpush1.msra.mxu0 0.0
    %3562 = vmatprep.subr.mxu0 0.0
    %3563 = vmatpush1.msra.mxu0 0.0
    %3564 = vmatprep.subr.mxu0 0.0
    %3565 = vmatpush1.msra.mxu0 0.0
    %3566 = vmatprep.subr.mxu0 0.0
    %3567 = vmatpush1.msra.mxu0 0.0
    %3568 = vmatprep.subr.mxu0 0.0
    %3569 = vmatpush1.msra.mxu0 0.0
    %3570 = vmatprep.subr.mxu0 0.0
    %3571 = vmatpush1.msra.mxu0 0.0
    %3572 = vmatprep.subr.mxu0 0.0
    %3573 = vmatpush1.msra.mxu0 0.0
    %3574 = vmatprep.subr.mxu0 0.0
    %3575 = vmatpush1.msra.mxu0 0.0
    %3576 = vmatprep.mubr.f32.mxu0 %v3510
    %3577 = vmatmul.mubr.f32.gmra.mrb[0].mxu0 %v3507
    %v3578 = vpop.f32.mrb[0].mxu0
    %v3579 = vadd.f32 0.0, %v3578
    %v3580 = vpop.f32.mrb[0].mxu0
    %3581 = vdwg.mxu0
    %v3582 = vadd.f32 %v3485, %v3579
    %v3583 = vmax.f32 %v3582, 0.0
    %v3584 = vld [vmem:[%s11] sm:$0xff]
    %v3585 = vld [vmem:[%s11 + $0x8] sm:$0xff]
    %v3586 = vld [vmem:[%s11 + $0x10] sm:$0xff]
    %v3587 = vld [vmem:[%s11 + $0x18] sm:$0xff]
    %v3588 = vld [vmem:[%s12] sm:$0x1]
    %v3590 = vsel %vm3090, %v3583, 0
    %3592 = vmatprep.subr.mxu0 0.0
    %3593 = vmatpush1.msra.mxu0 %v3584
    %3594 = vmatprep.subr.mxu0 0.0
    %3595 = vmatpush1.msra.mxu0 %v3585
    %3596 = vmatprep.subr.mxu0 0.0
    %3597 = vmatpush1.msra.mxu0 %v3586
    %3598 = vmatprep.subr.mxu0 0.0
    %3599 = vmatpush1.msra.mxu0 %v3587
    %3600 = vmatprep.subr.mxu0 0.0
    %3601 = vmatpush1.msra.mxu0 0.0
    %3602 = vmatprep.subr.mxu0 0.0
    %3603 = vmatpush1.msra.mxu0 0.0
    %3604 = vmatprep.subr.mxu0 0.0
    %3605 = vmatpush1.msra.mxu0 0.0
    %3606 = vmatprep.subr.mxu0 0.0
    %3607 = vmatpush1.msra.mxu0 0.0
    %3608 = vmatprep.subr.mxu0 0.0
    %3609 = vmatpush1.msra.mxu0 0.0
    %3610 = vmatprep.subr.mxu0 0.0
    %3611 = vmatpush1.msra.mxu0 0.0
    %3612 = vmatprep.subr.mxu0 0.0
    %3613 = vmatpush1.msra.mxu0 0.0
    %3614 = vmatprep.subr.mxu0 0.0
    %3615 = vmatpush1.msra.mxu0 0.0
    %3616 = vmatprep.subr.mxu0 0.0
    %3617 = vmatpush1.msra.mxu0 0.0
    %3618 = vmatprep.subr.mxu0 0.0
    %3619 = vmatpush1.msra.mxu0 0.0
    %3620 = vmatprep.subr.mxu0 0.0
    %3621 = vmatpush1.msra.mxu0 0.0
    %3622 = vmatprep.subr.mxu0 0.0
    %3623 = vmatpush1.msra.mxu0 0.0
    %3624 = vmatprep.subr.mxu0 0.0
    %3625 = vmatpush1.msra.mxu0 0.0
    %3626 = vmatprep.subr.mxu0 0.0
    %3627 = vmatpush1.msra.mxu0 0.0
    %3628 = vmatprep.subr.mxu0 0.0
    %3629 = vmatpush1.msra.mxu0 0.0
    %3630 = vmatprep.subr.mxu0 0.0
    %3631 = vmatpush1.msra.mxu0 0.0
    %3632 = vmatprep.subr.mxu0 0.0
    %3633 = vmatpush1.msra.mxu0 0.0
    %3634 = vmatprep.subr.mxu0 0.0
    %3635 = vmatpush1.msra.mxu0 0.0
    %3636 = vmatprep.subr.mxu0 0.0
    %3637 = vmatpush1.msra.mxu0 0.0
    %3638 = vmatprep.subr.mxu0 0.0
    %3639 = vmatpush1.msra.mxu0 0.0
    %3640 = vmatprep.subr.mxu0 0.0
    %3641 = vmatpush1.msra.mxu0 0.0
    %3642 = vmatprep.subr.mxu0 0.0
    %3643 = vmatpush1.msra.mxu0 0.0
    %3644 = vmatprep.subr.mxu0 0.0
    %3645 = vmatpush1.msra.mxu0 0.0
    %3646 = vmatprep.subr.mxu0 0.0
    %3647 = vmatpush1.msra.mxu0 0.0
    %3648 = vmatprep.subr.mxu0 0.0
    %3649 = vmatpush1.msra.mxu0 0.0
    %3650 = vmatprep.subr.mxu0 0.0
    %3651 = vmatpush1.msra.mxu0 0.0
    %3652 = vmatprep.subr.mxu0 0.0
    %3653 = vmatpush1.msra.mxu0 0.0
    %3654 = vmatprep.subr.mxu0 0.0
    %3655 = vmatpush1.msra.mxu0 0.0
    %3656 = vmatprep.mubr.f32.mxu0 0.0
    %3657 = vmatmul.mubr.f32.gmra.mrb[0].mxu0 %v3590
    %v3658 = vpop.f32.mrb[0].mxu0
    %v3659 = vadd.f32 %v3588, %v3658
    %v3660 = vpop.f32.mrb[0].mxu0
    %3661 = vdwg.mxu0
    %3662 = vst [vmem:[#allocation2] sm:$0x1] %v3659
    %v3663 = vld [vmem:[%s10] sm:$0x1]
    %v3664 = vld [vmem:[%s9] sm:$0xff]
    %v3665 = vld [vmem:[%s9 + $0x8] sm:$0xff]
    %v3666 = vld [vmem:[%s9 + $0x10] sm:$0xff]
    %v3667 = vld [vmem:[%s9 + $0x18] sm:$0xff]
    %v3668 = vld [vmem:[%s9 + $0x20] sm:$0xff]
    %v3669 = vld [vmem:[%s9 + $0x28] sm:$0xff]
    %v3670 = vld [vmem:[%s9 + $0x30] sm:$0xff]
    %v3671 = vld [vmem:[%s9 + $0x38] sm:$0xff]
    %v3672 = vld [vmem:[%s9 + $0x40] sm:$0xff]
    %v3673 = vld [vmem:[%s9 + $0x48] sm:$0xff]
    %v3674 = vld [vmem:[%s9 + $0x50] sm:$0xff]
    %v3675 = vld [vmem:[%s9 + $0x58] sm:$0xff]
    %v3676 = vld [vmem:[%s9 + $0x60] sm:$0xff]
    %v3677 = vld [vmem:[%s9 + $0x68] sm:$0xff]
    %v3678 = vld [vmem:[%s9 + $0x70] sm:$0xff]
    %v3679 = vld [vmem:[%s9 + $0x78] sm:$0xff]
    %v3680 = vld [vmem:[%s9 + $0x80] sm:$0xff]
    %v3681 = vld [vmem:[%s9 + $0x88] sm:$0xff]
    %v3682 = vld [vmem:[%s9 + $0x90] sm:$0xff]
    %v3683 = vld [vmem:[%s9 + $0x98] sm:$0xff]
    %v3684 = vrot.slane %v3192, 5
    %v3685 = vrot.slane %v3193, 5
    %v3687 = vsel %vm3090, %v3685, 0
    %3689 = vmatprep.subr.mxu0 0.0
    %3690 = vmatpush1.msra.mxu0 %v3664
    %3691 = vmatprep.subr.mxu0 0.0
    %3692 = vmatpush1.msra.mxu0 %v3665
    %3693 = vmatprep.subr.mxu0 0.0
    %3694 = vmatpush1.msra.mxu0 %v3666
    %3695 = vmatprep.subr.mxu0 0.0
    %3696 = vmatpush1.msra.mxu0 %v3667
    %3697 = vmatprep.subr.mxu0 0.0
    %3698 = vmatpush1.msra.mxu0 %v3668
    %3699 = vmatprep.subr.mxu0 0.0
    %3700 = vmatpush1.msra.mxu0 %v3669
    %3701 = vmatprep.subr.mxu0 0.0
    %3702 = vmatpush1.msra.mxu0 %v3670
    %3703 = vmatprep.subr.mxu0 0.0
    %3704 = vmatpush1.msra.mxu0 %v3671
    %3705 = vmatprep.subr.mxu0 0.0
    %3706 = vmatpush1.msra.mxu0 %v3672
    %3707 = vmatprep.subr.mxu0 0.0
    %3708 = vmatpush1.msra.mxu0 %v3673
    %3709 = vmatprep.subr.mxu0 0.0
    %3710 = vmatpush1.msra.mxu0 %v3674
    %3711 = vmatprep.subr.mxu0 0.0
    %3712 = vmatpush1.msra.mxu0 %v3675
    %3713 = vmatprep.subr.mxu0 0.0
    %3714 = vmatpush1.msra.mxu0 %v3676
    %3715 = vmatprep.subr.mxu0 0.0
    %3716 = vmatpush1.msra.mxu0 %v3677
    %3717 = vmatprep.subr.mxu0 0.0
    %3718 = vmatpush1.msra.mxu0 %v3678
    %3719 = vmatprep.subr.mxu0 0.0
    %3720 = vmatpush1.msra.mxu0 %v3679
    %3721 = vmatprep.subr.mxu0 0.0
    %3722 = vmatpush1.msra.mxu0 %v3680
    %3723 = vmatprep.subr.mxu0 0.0
    %3724 = vmatpush1.msra.mxu0 %v3681
    %3725 = vmatprep.subr.mxu0 0.0
    %3726 = vmatpush1.msra.mxu0 %v3682
    %3727 = vmatprep.subr.mxu0 0.0
    %3728 = vmatpush1.msra.mxu0 %v3683
    %3729 = vmatprep.subr.mxu0 0.0
    %3730 = vmatpush1.msra.mxu0 0.0
    %3731 = vmatprep.subr.mxu0 0.0
    %3732 = vmatpush1.msra.mxu0 0.0
    %3733 = vmatprep.subr.mxu0 0.0
    %3734 = vmatpush1.msra.mxu0 0.0
    %3735 = vmatprep.subr.mxu0 0.0
    %3736 = vmatpush1.msra.mxu0 0.0
    %3737 = vmatprep.subr.mxu0 0.0
    %3738 = vmatpush1.msra.mxu0 0.0
    %3739 = vmatprep.subr.mxu0 0.0
    %3740 = vmatpush1.msra.mxu0 0.0
    %3741 = vmatprep.subr.mxu0 0.0
    %3742 = vmatpush1.msra.mxu0 0.0
    %3743 = vmatprep.subr.mxu0 0.0
    %3744 = vmatpush1.msra.mxu0 0.0
    %3745 = vmatprep.subr.mxu0 0.0
    %3746 = vmatpush1.msra.mxu0 0.0
    %3747 = vmatprep.subr.mxu0 0.0
    %3748 = vmatpush1.msra.mxu0 0.0
    %3749 = vmatprep.subr.mxu0 0.0
    %3750 = vmatpush1.msra.mxu0 0.0
    %3751 = vmatprep.subr.mxu0 0.0
    %3752 = vmatpush1.msra.mxu0 0.0
    %3753 = vmatprep.mubr.f32.mxu0 %v3687
    %3754 = vmatmul.mubr.f32.gmra.mrb[0].mxu0 %v3684
    %v3755 = vpop.f32.mrb[0].mxu0
    %v3756 = vadd.f32 0.0, %v3755
    %v3757 = vpop.f32.mrb[0].mxu0
    %3758 = vdwg.mxu0
    %v3759 = vadd.f32 %v3663, %v3756
    %v3760 = vld [vmem:[%s3291] sm:$0xff]
    %v3761 = vld [vmem:[%s3291 + $0x8] sm:$0xff]
    %v3762 = vld [vmem:[%s3291 + $0x10] sm:$0xff]
    %v3763 = vld [vmem:[%s3291 + $0x18] sm:$0xff]
    %v3764 = vld [vmem:[%s3291 + $0x20] sm:$0xff]
    %v3765 = vld [vmem:[%s3291 + $0x28] sm:$0xff]
    %v3766 = vld [vmem:[%s3291 + $0x30] sm:$0xff]
    %v3767 = vld [vmem:[%s3291 + $0x38] sm:$0xff]
    %v3768 = vld [vmem:[%s3291 + $0x40] sm:$0xff]
    %v3769 = vld [vmem:[%s3291 + $0x48] sm:$0xff]
    %v3770 = vld [vmem:[%s3291 + $0x50] sm:$0xff]
    %v3771 = vld [vmem:[%s3291 + $0x58] sm:$0xff]
    %v3772 = vld [vmem:[%s3291 + $0x60] sm:$0xff]
    %v3773 = vld [vmem:[%s3291 + $0x68] sm:$0xff]
    %v3774 = vld [vmem:[%s3291 + $0x70] sm:$0xff]
    %v3775 = vld [vmem:[%s3291 + $0x78] sm:$0xff]
    %v3776 = vld [vmem:[%s3291 + $0x80] sm:$0xff]
    %v3777 = vld [vmem:[%s3291 + $0x88] sm:$0xff]
    %v3778 = vld [vmem:[%s3291 + $0x90] sm:$0xff]
    %v3779 = vld [vmem:[%s3291 + $0x98] sm:$0xff]
    %v3780 = vrot.slane %v3192, 6
    %v3781 = vrot.slane %v3193, 6
    %v3783 = vsel %vm3090, %v3781, 0
    %3785 = vmatprep.subr.mxu0 0.0
    %3786 = vmatpush1.msra.mxu0 %v3760
    %3787 = vmatprep.subr.mxu0 0.0
    %3788 = vmatpush1.msra.mxu0 %v3761
    %3789 = vmatprep.subr.mxu0 0.0
    %3790 = vmatpush1.msra.mxu0 %v3762
    %3791 = vmatprep.subr.mxu0 0.0
    %3792 = vmatpush1.msra.mxu0 %v3763
    %3793 = vmatprep.subr.mxu0 0.0
    %3794 = vmatpush1.msra.mxu0 %v3764
    %3795 = vmatprep.subr.mxu0 0.0
    %3796 = vmatpush1.msra.mxu0 %v3765
    %3797 = vmatprep.subr.mxu0 0.0
    %3798 = vmatpush1.msra.mxu0 %v3766
    %3799 = vmatprep.subr.mxu0 0.0
    %3800 = vmatpush1.msra.mxu0 %v3767
    %3801 = vmatprep.subr.mxu0 0.0
    %3802 = vmatpush1.msra.mxu0 %v3768
    %3803 = vmatprep.subr.mxu0 0.0
    %3804 = vmatpush1.msra.mxu0 %v3769
    %3805 = vmatprep.subr.mxu0 0.0
    %3806 = vmatpush1.msra.mxu0 %v3770
    %3807 = vmatprep.subr.mxu0 0.0
    %3808 = vmatpush1.msra.mxu0 %v3771
    %3809 = vmatprep.subr.mxu0 0.0
    %3810 = vmatpush1.msra.mxu0 %v3772
    %3811 = vmatprep.subr.mxu0 0.0
    %3812 = vmatpush1.msra.mxu0 %v3773
    %3813 = vmatprep.subr.mxu0 0.0
    %3814 = vmatpush1.msra.mxu0 %v3774
    %3815 = vmatprep.subr.mxu0 0.0
    %3816 = vmatpush1.msra.mxu0 %v3775
    %3817 = vmatprep.subr.mxu0 0.0
    %3818 = vmatpush1.msra.mxu0 %v3776
    %3819 = vmatprep.subr.mxu0 0.0
    %3820 = vmatpush1.msra.mxu0 %v3777
    %3821 = vmatprep.subr.mxu0 0.0
    %3822 = vmatpush1.msra.mxu0 %v3778
    %3823 = vmatprep.subr.mxu0 0.0
    %3824 = vmatpush1.msra.mxu0 %v3779
    %3825 = vmatprep.subr.mxu0 0.0
    %3826 = vmatpush1.msra.mxu0 0.0
    %3827 = vmatprep.subr.mxu0 0.0
    %3828 = vmatpush1.msra.mxu0 0.0
    %3829 = vmatprep.subr.mxu0 0.0
    %3830 = vmatpush1.msra.mxu0 0.0
    %3831 = vmatprep.subr.mxu0 0.0
    %3832 = vmatpush1.msra.mxu0 0.0
    %3833 = vmatprep.subr.mxu0 0.0
    %3834 = vmatpush1.msra.mxu0 0.0
    %3835 = vmatprep.subr.mxu0 0.0
    %3836 = vmatpush1.msra.mxu0 0.0
    %3837 = vmatprep.subr.mxu0 0.0
    %3838 = vmatpush1.msra.mxu0 0.0
    %3839 = vmatprep.subr.mxu0 0.0
    %3840 = vmatpush1.msra.mxu0 0.0
    %3841 = vmatprep.subr.mxu0 0.0
    %3842 = vmatpush1.msra.mxu0 0.0
    %3843 = vmatprep.subr.mxu0 0.0
    %3844 = vmatpush1.msra.mxu0 0.0
    %3845 = vmatprep.subr.mxu0 0.0
    %3846 = vmatpush1.msra.mxu0 0.0
    %3847 = vmatprep.subr.mxu0 0.0
    %3848 = vmatpush1.msra.mxu0 0.0
    %3849 = vmatprep.mubr.f32.mxu0 %v3783
    %3850 = vmatmul.mubr.f32.gmra.mrb[0].mxu0 %v3780
    %v3851 = vpop.f32.mrb[0].mxu0
    %v3852 = vadd.f32 0.0, %v3851
    %v3853 = vpop.f32.mrb[0].mxu0
    %3854 = vdwg.mxu0
    %v3855 = vadd.f32 %v3759, %v3852
    %v3856 = vld [vmem:[%s3389] sm:$0xff]
    %v3857 = vld [vmem:[%s3389 + $0x8] sm:$0xff]
    %v3858 = vld [vmem:[%s3389 + $0x10] sm:$0xff]
    %v3859 = vld [vmem:[%s3389 + $0x18] sm:$0xff]
    %v3860 = vld [vmem:[%s3389 + $0x20] sm:$0xff]
    %v3861 = vld [vmem:[%s3389 + $0x28] sm:$0xff]
    %v3862 = vld [vmem:[%s3389 + $0x30] sm:$0xff]
    %v3863 = vld [vmem:[%s3389 + $0x38] sm:$0xff]
    %v3864 = vld [vmem:[%s3389 + $0x40] sm:$0xff]
    %v3865 = vld [vmem:[%s3389 + $0x48] sm:$0xff]
    %v3866 = vld [vmem:[%s3389 + $0x50] sm:$0xff]
    %v3867 = vld [vmem:[%s3389 + $0x58] sm:$0xff]
    %v3868 = vld [vmem:[%s3389 + $0x60] sm:$0xff]
    %v3869 = vld [vmem:[%s3389 + $0x68] sm:$0xff]
    %v3870 = vld [vmem:[%s3389 + $0x70] sm:$0xff]
    %v3871 = vld [vmem:[%s3389 + $0x78] sm:$0xff]
    %v3872 = vld [vmem:[%s3389 + $0x80] sm:$0xff]
    %v3873 = vld [vmem:[%s3389 + $0x88] sm:$0xff]
    %v3874 = vld [vmem:[%s3389 + $0x90] sm:$0xff]
    %v3875 = vld [vmem:[%s3389 + $0x98] sm:$0xff]
    %v3876 = vrot.slane %v3192, 7
    %v3877 = vrot.slane %v3193, 7
    %v3879 = vsel %vm3090, %v3877, 0
    %3881 = vmatprep.subr.mxu0 0.0
    %3882 = vmatpush1.msra.mxu0 %v3856
    %3883 = vmatprep.subr.mxu0 0.0
    %3884 = vmatpush1.msra.mxu0 %v3857
    %3885 = vmatprep.subr.mxu0 0.0
    %3886 = vmatpush1.msra.mxu0 %v3858
    %3887 = vmatprep.subr.mxu0 0.0
    %3888 = vmatpush1.msra.mxu0 %v3859
    %3889 = vmatprep.subr.mxu0 0.0
    %3890 = vmatpush1.msra.mxu0 %v3860
    %3891 = vmatprep.subr.mxu0 0.0
    %3892 = vmatpush1.msra.mxu0 %v3861
    %3893 = vmatprep.subr.mxu0 0.0
    %3894 = vmatpush1.msra.mxu0 %v3862
    %3895 = vmatprep.subr.mxu0 0.0
    %3896 = vmatpush1.msra.mxu0 %v3863
    %3897 = vmatprep.subr.mxu0 0.0
    %3898 = vmatpush1.msra.mxu0 %v3864
    %3899 = vmatprep.subr.mxu0 0.0
    %3900 = vmatpush1.msra.mxu0 %v3865
    %3901 = vmatprep.subr.mxu0 0.0
    %3902 = vmatpush1.msra.mxu0 %v3866
    %3903 = vmatprep.subr.mxu0 0.0
    %3904 = vmatpush1.msra.mxu0 %v3867
    %3905 = vmatprep.subr.mxu0 0.0
    %3906 = vmatpush1.msra.mxu0 %v3868
    %3907 = vmatprep.subr.mxu0 0.0
    %3908 = vmatpush1.msra.mxu0 %v3869
    %3909 = vmatprep.subr.mxu0 0.0
    %3910 = vmatpush1.msra.mxu0 %v3870
    %3911 = vmatprep.subr.mxu0 0.0
    %3912 = vmatpush1.msra.mxu0 %v3871
    %3913 = vmatprep.subr.mxu0 0.0
    %3914 = vmatpush1.msra.mxu0 %v3872
    %3915 = vmatprep.subr.mxu0 0.0
    %3916 = vmatpush1.msra.mxu0 %v3873
    %3917 = vmatprep.subr.mxu0 0.0
    %3918 = vmatpush1.msra.mxu0 %v3874
    %3919 = vmatprep.subr.mxu0 0.0
    %3920 = vmatpush1.msra.mxu0 %v3875
    %3921 = vmatprep.subr.mxu0 0.0
    %3922 = vmatpush1.msra.mxu0 0.0
    %3923 = vmatprep.subr.mxu0 0.0
    %3924 = vmatpush1.msra.mxu0 0.0
    %3925 = vmatprep.subr.mxu0 0.0
    %3926 = vmatpush1.msra.mxu0 0.0
    %3927 = vmatprep.subr.mxu0 0.0
    %3928 = vmatpush1.msra.mxu0 0.0
    %3929 = vmatprep.subr.mxu0 0.0
    %3930 = vmatpush1.msra.mxu0 0.0
    %3931 = vmatprep.subr.mxu0 0.0
    %3932 = vmatpush1.msra.mxu0 0.0
    %3933 = vmatprep.subr.mxu0 0.0
    %3934 = vmatpush1.msra.mxu0 0.0
    %3935 = vmatprep.subr.mxu0 0.0
    %3936 = vmatpush1.msra.mxu0 0.0
    %3937 = vmatprep.subr.mxu0 0.0
    %3938 = vmatpush1.msra.mxu0 0.0
    %3939 = vmatprep.subr.mxu0 0.0
    %3940 = vmatpush1.msra.mxu0 0.0
    %3941 = vmatprep.subr.mxu0 0.0
    %3942 = vmatpush1.msra.mxu0 0.0
    %3943 = vmatprep.subr.mxu0 0.0
    %3944 = vmatpush1.msra.mxu0 0.0
    %3945 = vmatprep.mubr.f32.mxu0 %v3879
    %3946 = vmatmul.mubr.f32.gmra.mrb[0].mxu0 %v3876
    %v3947 = vpop.f32.mrb[0].mxu0
    %v3948 = vadd.f32 0.0, %v3947
    %v3949 = vpop.f32.mrb[0].mxu0
    %3950 = vdwg.mxu0
    %v3951 = vadd.f32 %v3855, %v3948
    %v3952 = vld [vmem:[%s3486] sm:$0xff]
    %v3953 = vld [vmem:[%s3486 + $0x8] sm:$0xff]
    %v3954 = vld [vmem:[%s3486 + $0x10] sm:$0xff]
    %v3955 = vld [vmem:[%s3486 + $0x18] sm:$0xff]
    %v3956 = vld [vmem:[%s3486 + $0x20] sm:$0xff]
    %v3957 = vld [vmem:[%s3486 + $0x28] sm:$0xff]
    %v3958 = vld [vmem:[%s3486 + $0x30] sm:$0xff]
    %v3959 = vld [vmem:[%s3486 + $0x38] sm:$0xff]
    %v3960 = vld [vmem:[%s3486 + $0x40] sm:$0xff]
    %v3961 = vld [vmem:[%s3486 + $0x48] sm:$0xff]
    %v3962 = vld [vmem:[%s3486 + $0x50] sm:$0xff]
    %v3963 = vld [vmem:[%s3486 + $0x58] sm:$0xff]
    %v3964 = vld [vmem:[%s3486 + $0x60] sm:$0xff]
    %v3965 = vld [vmem:[%s3486 + $0x68] sm:$0xff]
    %v3966 = vld [vmem:[%s3486 + $0x70] sm:$0xff]
    %v3967 = vld [vmem:[%s3486 + $0x78] sm:$0xff]
    %v3968 = vld [vmem:[%s3486 + $0x80] sm:$0xff]
    %v3969 = vld [vmem:[%s3486 + $0x88] sm:$0xff]
    %v3970 = vld [vmem:[%s3486 + $0x90] sm:$0xff]
    %v3971 = vld [vmem:[%s3486 + $0x98] sm:$0xff]
    %v3973 = vsel %vm3090, %v3195, 0
    %3975 = vmatprep.subr.mxu0 0.0
    %3976 = vmatpush1.msra.mxu0 %v3952
    %3977 = vmatprep.subr.mxu0 0.0
    %3978 = vmatpush1.msra.mxu0 %v3953
    %3979 = vmatprep.subr.mxu0 0.0
    %3980 = vmatpush1.msra.mxu0 %v3954
    %3981 = vmatprep.subr.mxu0 0.0
    %3982 = vmatpush1.msra.mxu0 %v3955
    %3983 = vmatprep.subr.mxu0 0.0
    %3984 = vmatpush1.msra.mxu0 %v3956
    %3985 = vmatprep.subr.mxu0 0.0
    %3986 = vmatpush1.msra.mxu0 %v3957
    %3987 = vmatprep.subr.mxu0 0.0
    %3988 = vmatpush1.msra.mxu0 %v3958
    %3989 = vmatprep.subr.mxu0 0.0
    %3990 = vmatpush1.msra.mxu0 %v3959
    %3991 = vmatprep.subr.mxu0 0.0
    %3992 = vmatpush1.msra.mxu0 %v3960
    %3993 = vmatprep.subr.mxu0 0.0
    %3994 = vmatpush1.msra.mxu0 %v3961
    %3995 = vmatprep.subr.mxu0 0.0
    %3996 = vmatpush1.msra.mxu0 %v3962
    %3997 = vmatprep.subr.mxu0 0.0
    %3998 = vmatpush1.msra.mxu0 %v3963
    %3999 = vmatprep.subr.mxu0 0.0
    %4000 = vmatpush1.msra.mxu0 %v3964
    %4001 = vmatprep.subr.mxu0 0.0
    %4002 = vmatpush1.msra.mxu0 %v3965
    %4003 = vmatprep.subr.mxu0 0.0
    %4004 = vmatpush1.msra.mxu0 %v3966
    %4005 = vmatprep.subr.mxu0 0.0
    %4006 = vmatpush1.msra.mxu0 %v3967
    %4007 = vmatprep.subr.mxu0 0.0
    %4008 = vmatpush1.msra.mxu0 %v3968
    %4009 = vmatprep.subr.mxu0 0.0
    %4010 = vmatpush1.msra.mxu0 %v3969
    %4011 = vmatprep.subr.mxu0 0.0
    %4012 = vmatpush1.msra.mxu0 %v3970
    %4013 = vmatprep.subr.mxu0 0.0
    %4014 = vmatpush1.msra.mxu0 %v3971
    %4015 = vmatprep.subr.mxu0 0.0
    %4016 = vmatpush1.msra.mxu0 0.0
    %4017 = vmatprep.subr.mxu0 0.0
    %4018 = vmatpush1.msra.mxu0 0.0
    %4019 = vmatprep.subr.mxu0 0.0
    %4020 = vmatpush1.msra.mxu0 0.0
    %4021 = vmatprep.subr.mxu0 0.0
    %4022 = vmatpush1.msra.mxu0 0.0
    %4023 = vmatprep.subr.mxu0 0.0
    %4024 = vmatpush1.msra.mxu0 0.0
    %4025 = vmatprep.subr.mxu0 0.0
    %4026 = vmatpush1.msra.mxu0 0.0
    %4027 = vmatprep.subr.mxu0 0.0
    %4028 = vmatpush1.msra.mxu0 0.0
    %4029 = vmatprep.subr.mxu0 0.0
    %4030 = vmatpush1.msra.mxu0 0.0
    %4031 = vmatprep.subr.mxu0 0.0
    %4032 = vmatpush1.msra.mxu0 0.0
    %4033 = vmatprep.subr.mxu0 0.0
    %4034 = vmatpush1.msra.mxu0 0.0
    %4035 = vmatprep.subr.mxu0 0.0
    %4036 = vmatpush1.msra.mxu0 0.0
    %4037 = vmatprep.subr.mxu0 0.0
    %4038 = vmatpush1.msra.mxu0 0.0
    %4039 = vmatprep.mubr.f32.mxu0 %v3973
    %4040 = vmatmul.mubr.f32.gmra.mrb[0].mxu0 %v3194
    %v4041 = vpop.f32.mrb[0].mxu0
    %v4042 = vadd.f32 0.0, %v4041
    %v4043 = vpop.f32.mrb[0].mxu0
    %4044 = vdwg.mxu0
    %v4045 = vadd.f32 %v3951, %v4042
    %v4046 = vmax.f32 %v4045, 0.0
    %v4047 = vld [vmem:[%s11] sm:$0xff]
    %v4048 = vld [vmem:[%s11 + $0x8] sm:$0xff]
    %v4049 = vld [vmem:[%s11 + $0x10] sm:$0xff]
    %v4050 = vld [vmem:[%s11 + $0x18] sm:$0xff]
    %v4051 = vld [vmem:[%s12] sm:$0x1]
    %v4053 = vsel %vm3090, %v4046, 0
    %4055 = vmatprep.subr.mxu0 0.0
    %4056 = vmatpush1.msra.mxu0 %v4047
    %4057 = vmatprep.subr.mxu0 0.0
    %4058 = vmatpush1.msra.mxu0 %v4048
    %4059 = vmatprep.subr.mxu0 0.0
    %4060 = vmatpush1.msra.mxu0 %v4049
    %4061 = vmatprep.subr.mxu0 0.0
    %4062 = vmatpush1.msra.mxu0 %v4050
    %4063 = vmatprep.subr.mxu0 0.0
    %4064 = vmatpush1.msra.mxu0 0.0
    %4065 = vmatprep.subr.mxu0 0.0
    %4066 = vmatpush1.msra.mxu0 0.0
    %4067 = vmatprep.subr.mxu0 0.0
    %4068 = vmatpush1.msra.mxu0 0.0
    %4069 = vmatprep.subr.mxu0 0.0
    %4070 = vmatpush1.msra.mxu0 0.0
    %4071 = vmatprep.subr.mxu0 0.0
    %4072 = vmatpush1.msra.mxu0 0.0
    %4073 = vmatprep.subr.mxu0 0.0
    %4074 = vmatpush1.msra.mxu0 0.0
    %4075 = vmatprep.subr.mxu0 0.0
    %4076 = vmatpush1.msra.mxu0 0.0
    %4077 = vmatprep.subr.mxu0 0.0
    %4078 = vmatpush1.msra.mxu0 0.0
    %4079 = vmatprep.subr.mxu0 0.0
    %4080 = vmatpush1.msra.mxu0 0.0
    %4081 = vmatprep.subr.mxu0 0.0
    %4082 = vmatpush1.msra.mxu0 0.0
    %4083 = vmatprep.subr.mxu0 0.0
    %4084 = vmatpush1.msra.mxu0 0.0
    %4085 = vmatprep.subr.mxu0 0.0
    %4086 = vmatpush1.msra.mxu0 0.0
    %4087 = vmatprep.subr.mxu0 0.0
    %4088 = vmatpush1.msra.mxu0 0.0
    %4089 = vmatprep.subr.mxu0 0.0
    %4090 = vmatpush1.msra.mxu0 0.0
    %4091 = vmatprep.subr.mxu0 0.0
    %4092 = vmatpush1.msra.mxu0 0.0
    %4093 = vmatprep.subr.mxu0 0.0
    %4094 = vmatpush1.msra.mxu0 0.0
    %4095 = vmatprep.subr.mxu0 0.0
    %4096 = vmatpush1.msra.mxu0 0.0
    %4097 = vmatprep.subr.mxu0 0.0
    %4098 = vmatpush1.msra.mxu0 0.0
    %4099 = vmatprep.subr.mxu0 0.0
    %4100 = vmatpush1.msra.mxu0 0.0
    %4101 = vmatprep.subr.mxu0 0.0
    %4102 = vmatpush1.msra.mxu0 0.0
    %4103 = vmatprep.subr.mxu0 0.0
    %4104 = vmatpush1.msra.mxu0 0.0
    %4105 = vmatprep.subr.mxu0 0.0
    %4106 = vmatpush1.msra.mxu0 0.0
    %4107 = vmatprep.subr.mxu0 0.0
    %4108 = vmatpush1.msra.mxu0 0.0
    %4109 = vmatprep.subr.mxu0 0.0
    %4110 = vmatpush1.msra.mxu0 0.0
    %4111 = vmatprep.subr.mxu0 0.0
    %4112 = vmatpush1.msra.mxu0 0.0
    %4113 = vmatprep.subr.mxu0 0.0
    %4114 = vmatpush1.msra.mxu0 0.0
    %4115 = vmatprep.subr.mxu0 0.0
    %4116 = vmatpush1.msra.mxu0 0.0
    %4117 = vmatprep.subr.mxu0 0.0
    %4118 = vmatpush1.msra.mxu0 0.0
    %4119 = vmatprep.mubr.f32.mxu0 0.0
    %4120 = vmatmul.mubr.f32.gmra.mrb[0].mxu0 %v4053
    %v4121 = vpop.f32.mrb[0].mxu0
    %v4122 = vadd.f32 %v4051, %v4121
    %v4123 = vpop.f32.mrb[0].mxu0
    %4124 = vdwg.mxu0
    %4125 = vst [vmem:[#allocation2 + $0x1] sm:$0x1] %v4122
    // Predicated region
    $region54: #{lenet_forward.1} parent=1 // pred_check
      _
    $region55: #{lenet_forward.1} parent=1 // pred_check_branch
      %4127 = sbr.rel (0) target = $region57
    $region56: #{lenet_forward.1} parent=1 // pred_region
      %s4129 = ssub.s32 32, 32
      %4130 = vsyncadd [#allocation3], %s4129
      %s4132 = sshll.u32 [#allocation2], 4
      %s4133 = int_to_ptr.vmem [resolvable:$true] %s4132
      %4135 = dma.vmem_to_hbm [thread:$0]  %s4133, 32, %s13, [#allocation3]
    $region57: #{lenet_forward.1} parent=1 // pred_fallthru
      _
    // Predicated region
    $region58: #{lenet_forward.1} parent=1 // pred_check
      _
    $region59: #{lenet_forward.1} parent=1 // pred_check_branch
      %4137 = sbr.rel (0) target = $region61
    $region60: #{lenet_forward.1} parent=1 // pred_region
      %4138 = dma.done [#allocation3], 32
    $region61: #{lenet_forward.1} parent=1 // pred_fallthru
      _
    %4139 = vsyncpa [#allocation3], 1

</llo_original>
